<compile_context>
chip_gen: v7x
topology: tpu7x:2x2x1
jax: 0.10.0
libtpu: 0.0.40
codegen_flags: <defaults>
</compile_context>

<pallas_src>
import functools
import numpy as np

import jax
import jax.numpy as jnp
from jax.experimental import pallas as pl
from jax.experimental.pallas import tpu as pltpu


def _pick_row_tile(M):
    """Largest MXU-friendly row tile that divides M (falls back to full M)."""
    for t in (512, 256, 128):
        if M % t == 0:
            return t
    return M


# ----------------------------------------------------------------------------
# Pallas kernels
# ----------------------------------------------------------------------------

def _attn_block_kernel(*refs, scale, heads, eps, add_pe):
    # One batch element, all heads.  Fuses:
    #   (optional) +positional-encoding, QKV projection, multi-head attention
    #   with additive key-padding mask, output projection, residual, LayerNorm.
    if add_pe:
        (x_ref, pe_ref, wqkv_ref, bqkv_ref, wo_ref, bo_ref,
         g_ref, bb_ref, m_ref, o_ref) = refs
    else:
        (x_ref, wqkv_ref, bqkv_ref, wo_ref, bo_ref,
         g_ref, bb_ref, m_ref, o_ref) = refs

    D = x_ref.shape[2]
    Dh = D // heads

    x = x_ref[0].astype(jnp.float32)                      # [S, D]
    if add_pe:
        x = x + pe_ref[...]

    # Fused QKV projection: one matmul with a 3x-wide, lane-dense output.
    qkv = jnp.dot(x, wqkv_ref[...], preferred_element_type=jnp.float32)
    qkv = qkv + bqkv_ref[...]                             # [S, 3D]

    add_mask = m_ref[0]                                   # [1, S] additive key mask

    outs = []
    for h in range(heads):                                # static unroll over heads
        lo = h * Dh
        qh = qkv[:, lo:lo + Dh]
        kh = qkv[:, D + lo:D + lo + Dh]
        vh = qkv[:, 2 * D + lo:2 * D + lo + Dh]
        s = jnp.dot(qh, kh.T, preferred_element_type=jnp.float32) * scale
        s = s + add_mask                                  # mask padded keys
        s = s - jnp.max(s, axis=-1, keepdims=True)
        p = jnp.exp(s)
        p = p * pl.reciprocal(jnp.sum(p, axis=-1, keepdims=True), approx=True)
        outs.append(jnp.dot(p, vh, preferred_element_type=jnp.float32))
    attn = outs[0] if heads == 1 else jnp.concatenate(outs, axis=-1)   # [S, D]

    # Output projection + bias + residual + LayerNorm (no HBM round trip).
    y = jnp.dot(attn, wo_ref[...], preferred_element_type=jnp.float32)
    y = y + bo_ref[...] + x
    mu = jnp.mean(y, axis=-1, keepdims=True)
    var = jnp.mean((y - mu) ** 2, axis=-1, keepdims=True)
    yn = (y - mu) * jax.lax.rsqrt(var + eps)
    o_ref[0] = (yn * g_ref[...] + bb_ref[...]).astype(o_ref.dtype)


def attention_block(x, add_mask, wqkv, bqkv, wo, bo, gamma, beta, heads,
                    pe=None, eps=1e-5):
    """x: [B, S, D]; add_mask: [B, 1, S] (0 real / -1e9 pad) -> [B, S, D]."""
    # Note: fully-padded rows (all keys masked) give a uniform softmax (average
    # of V) rather than NaNs, matching the additive -1e9 masking convention.
    B, S, D = x.shape
    scale = 1.0 / float(np.sqrt(D // heads))
    add_pe = pe is not None

    in_specs = [pl.BlockSpec((1, S, D), lambda b: (b, 0, 0))]
    args = [x]
    if add_pe:
        in_specs.append(pl.BlockSpec((S, D), lambda b: (0, 0)))
        args.append(pe)
    in_specs += [
        pl.BlockSpec((D, 3 * D), lambda b: (0, 0)),     # wqkv resident
        pl.BlockSpec((1, 3 * D), lambda b: (0, 0)),
        pl.BlockSpec((D, D), lambda b: (0, 0)),         # wo resident
        pl.BlockSpec((1, D), lambda b: (0, 0)),
        pl.BlockSpec((1, D), lambda b: (0, 0)),
        pl.BlockSpec((1, D), lambda b: (0, 0)),
        pl.BlockSpec((1, 1, S), lambda b: (b, 0, 0)),
    ]
    args += [wqkv, bqkv.reshape(1, 3 * D), wo, bo.reshape(1, D),
             gamma.reshape(1, D), beta.reshape(1, D), add_mask]

    return pl.pallas_call(
        functools.partial(_attn_block_kernel, scale=scale, heads=heads,
                          eps=eps, add_pe=add_pe),
        out_shape=jax.ShapeDtypeStruct((B, S, D), x.dtype),
        grid_spec=pltpu.PrefetchScalarGridSpec(
            num_scalar_prefetch=0,
            grid=(B,),
            in_specs=in_specs,
            out_specs=pl.BlockSpec((1, S, D), lambda b: (b, 0, 0)),
        ),
        compiler_params=pltpu.CompilerParams(dimension_semantics=("parallel",)),
    )(*args)
    # TODO(synk): for realistic S (2-8K) switch to a KV-tiled online-softmax
    # inner loop so the full [S, S] score tile never has to fit in VMEM.


def _ffn_res_ln_kernel(x_ref, w1_ref, b1_ref, w2_ref, b2_ref, g_ref, bb_ref,
                       o_ref, *, eps):
    # FFN (w1 + ReLU + w2) + residual + LayerNorm — the [tm, Hid] intermediate
    # never leaves VMEM/vregs.
    x = x_ref[...]
    h = jnp.dot(x, w1_ref[...], preferred_element_type=jnp.float32) + b1_ref[...]
    h = jnp.maximum(h, 0.0)
    y = jnp.dot(h.astype(x.dtype), w2_ref[...],
                preferred_element_type=jnp.float32)
    y = y + b2_ref[...] + x
    mu = jnp.mean(y, axis=-1, keepdims=True)
    var = jnp.mean((y - mu) ** 2, axis=-1, keepdims=True)
    yn = (y - mu) * jax.lax.rsqrt(var + eps)
    o_ref[...] = (yn * g_ref[...] + bb_ref[...]).astype(o_ref.dtype)


def ffn_residual_layernorm(x, w1, b1, w2, b2, gamma, beta, eps=1e-5):
    M, D = x.shape
    _, H = w1.shape
    tm = _pick_row_tile(M)
    return pl.pallas_call(
        functools.partial(_ffn_res_ln_kernel, eps=eps),
        out_shape=jax.ShapeDtypeStruct((M, D), x.dtype),
        grid_spec=pltpu.PrefetchScalarGridSpec(
            num_scalar_prefetch=0,
            grid=(M // tm,),
            in_specs=[
                pl.BlockSpec((tm, D), lambda i: (i, 0)),
                pl.BlockSpec((D, H), lambda i: (0, 0)),   # w1 resident
                pl.BlockSpec((1, H), lambda i: (0, 0)),
                pl.BlockSpec((H, D), lambda i: (0, 0)),   # w2 resident
                pl.BlockSpec((1, D), lambda i: (0, 0)),
                pl.BlockSpec((1, D), lambda i: (0, 0)),
                pl.BlockSpec((1, D), lambda i: (0, 0)),
            ],
            out_specs=pl.BlockSpec((tm, D), lambda i: (i, 0)),
        ),
        compiler_params=pltpu.CompilerParams(dimension_semantics=("parallel",)),
    )(x, w1, b1.reshape(1, H), w2, b2.reshape(1, D),
      gamma.reshape(1, D), beta.reshape(1, D))


# ----------------------------------------------------------------------------
# Model glue (parameter setup, embedding gather)
# ----------------------------------------------------------------------------

def sinusoidal_pe(seq_len, d):
    pos = np.arange(seq_len, dtype=np.float32)[:, None]
    i = np.arange(d, dtype=np.float32)[None, :]
    angle = pos / np.power(10000.0, (2.0 * np.floor(i / 2.0)) / d)
    pe = np.zeros((seq_len, d), dtype=np.float32)
    pe[:, 0::2] = np.sin(angle[:, 0::2])
    pe[:, 1::2] = np.cos(angle[:, 1::2])
    return jnp.asarray(pe)


def init_params(key, vocab_size, seq_len, d, no_blocks, expansion, heads):
    keys = jax.random.split(key, 1 + no_blocks)
    scale = 0.02
    params = {
        "embedding": scale * jax.random.normal(keys[0], (vocab_size, d), jnp.float32),
        "pe": sinusoidal_pe(seq_len, d),
        "no_heads": heads,
        "blocks": [],
    }
    hid = d * expansion
    for bi in range(no_blocks):
        bk = jax.random.split(keys[1 + bi], 6)
        # Q/K/V projections are stored pre-fused as one [D, 3D] weight.
        wq = scale * jax.random.normal(bk[0], (d, d), jnp.float32)
        wk = scale * jax.random.normal(bk[1], (d, d), jnp.float32)
        wv = scale * jax.random.normal(bk[2], (d, d), jnp.float32)
        blk = {
            "wqkv": jnp.concatenate([wq, wk, wv], axis=1),
            "bqkv": jnp.zeros((3 * d,), jnp.float32),
            "wo": scale * jax.random.normal(bk[3], (d, d), jnp.float32),
            "bo": jnp.zeros((d,), jnp.float32),
            "g1": jnp.ones((d,), jnp.float32),
            "b1": jnp.zeros((d,), jnp.float32),
            "w1": scale * jax.random.normal(bk[4], (d, hid), jnp.float32),
            "bf1": jnp.zeros((hid,), jnp.float32),
            "w2": scale * jax.random.normal(bk[5], (hid, d), jnp.float32),
            "bf2": jnp.zeros((d,), jnp.float32),
            "g2": jnp.ones((d,), jnp.float32),
            "b2": jnp.zeros((d,), jnp.float32),
        }
        params["blocks"].append(blk)
    return params


def encoder_block(x, add_mask, p, heads, pe=None):
    """x: [B, S, D] -> [B, S, D].  Exactly 2 pallas_calls."""
    B, S, D = x.shape

    # 1) fused attention block (QKV proj + MHA + out-proj + residual + LN);
    #    block 0 also folds in the positional-encoding add.
    x = attention_block(x, add_mask, p["wqkv"], p["bqkv"], p["wo"], p["bo"],
                        p["g1"], p["b1"], heads, pe=pe)

    # 2) fused FFN + residual + LayerNorm over flat rows (dropout = identity
    #    at eval; hidden activation never hits HBM)
    x2 = ffn_residual_layernorm(x.reshape(B * S, D), p["w1"], p["bf1"],
                                p["w2"], p["bf2"], p["g2"], p["b2"])
    return x2.reshape(B, S, D)


def encoder_forward(params, tokens):
    B, S = tokens.shape
    heads = params["no_heads"]

    # Additive key-padding mask: 0 for real tokens, -1e9 for pads (token == 0).
    add_mask = jnp.where(tokens != 0, 0.0, -1e9).astype(jnp.float32).reshape(B, 1, S)

    # Embedding lookup stays as a JAX gather (data-dependent row gather).
    x = jnp.take(params["embedding"], tokens, axis=0)        # [B, S, D]
    # dropout_layer is identity at inference (eval mode)

    if not params["blocks"]:
        return x + params["pe"][None]                        # edge case: 0 blocks

    for bi, blk in enumerate(params["blocks"]):
        # PE add is fused into the first block's attention kernel.
        pe = params["pe"] if bi == 0 else None
        x = encoder_block(x, add_mask, blk, heads, pe=pe)
    return x


# ----------------------------------------------------------------------------
# Driver
# ----------------------------------------------------------------------------

if __name__ == "__main__":
    # small, forward-consistent shapes
    batch_size = 2
    seq_len = 8
    vocab_size = 50
    embedding_dim = 32
    no_blocks = 2
    expansion_factor = 4
    no_heads = 8

    root = jax.random.PRNGKey(0)
    pkey, tkey = jax.random.split(root)
    params = init_params(pkey, vocab_size, seq_len, embedding_dim,
                         no_blocks, expansion_factor, no_heads)
    tokens = jax.random.randint(tkey, (batch_size, seq_len), 0, vocab_size,
                                dtype=jnp.int32)   # 0 acts as padding token

    fwd = jax.jit(lambda t: encoder_forward(params, t))
    out = fwd(tokens)
    out = jax.block_until_ready(out)

    assert out.shape == (batch_size, seq_len, embedding_dim)
    assert bool(jnp.all(jnp.isfinite(out)))
    print("KERNEL_OK")
</pallas_src>

<mosaic_0001>
module attributes {stable_mosaic.version = 11 : i64} {
  func.func @_ffn_res_ln_kernel(%arg0: i32, %arg1: memref<16x32xf32, #tpu.memory_space<vmem>>, %arg2: memref<32x128xf32, #tpu.memory_space<vmem>>, %arg3: memref<1x128xf32, #tpu.memory_space<vmem>>, %arg4: memref<128x32xf32, #tpu.memory_space<vmem>>, %arg5: memref<1x32xf32, #tpu.memory_space<vmem>>, %arg6: memref<1x32xf32, #tpu.memory_space<vmem>>, %arg7: memref<1x32xf32, #tpu.memory_space<vmem>>, %arg8: memref<16x32xf32, #tpu.memory_space<vmem>>) attributes {dimension_semantics = [#tpu.dimension_semantics<parallel>], iteration_bounds = array<i64: 1>, scalar_prefetch = 0 : i64, scratch_operands = 0 : i64, tpu.core_type = #tpu.core_type<tc>, window_params = [{transform_indices = @transform_0, window_bounds = array<i64: 16, 32>}, {pipeline_mode = #tpu.pipeline_mode<synchronous>, transform_indices = @transform_1, window_bounds = array<i64: 32, 128>}, {pipeline_mode = #tpu.pipeline_mode<synchronous>, transform_indices = @transform_2, window_bounds = array<i64: 1, 128>}, {pipeline_mode = #tpu.pipeline_mode<synchronous>, transform_indices = @transform_3, window_bounds = array<i64: 128, 32>}, {pipeline_mode = #tpu.pipeline_mode<synchronous>, transform_indices = @transform_4, window_bounds = array<i64: 1, 32>}, {pipeline_mode = #tpu.pipeline_mode<synchronous>, transform_indices = @transform_5, window_bounds = array<i64: 1, 32>}, {pipeline_mode = #tpu.pipeline_mode<synchronous>, transform_indices = @transform_6, window_bounds = array<i64: 1, 32>}, {transform_indices = @transform_7, window_bounds = array<i64: 16, 32>}]} {
    %c0 = arith.constant 0 : index
    %c0_0 = arith.constant 0 : index
    %0 = vector.load %arg1[%c0, %c0_0] : memref<16x32xf32, #tpu.memory_space<vmem>>, vector<16x32xf32>
    %c0_1 = arith.constant 0 : index
    %c0_2 = arith.constant 0 : index
    %1 = vector.load %arg2[%c0_1, %c0_2] : memref<32x128xf32, #tpu.memory_space<vmem>>, vector<32x128xf32>
    %cst = arith.constant dense<0.000000e+00> : vector<16x128xf32>
    %2 = tpu.matmul %0, %1, %cst {dimension_numbers = #tpu.dot_dimension_numbers<[1], [0], [0], [1], [0, 0, 1, 1], [], []>} : vector<16x32xf32>, vector<32x128xf32>, vector<16x128xf32> -> vector<16x128xf32>
    %c0_3 = arith.constant 0 : index
    %c0_4 = arith.constant 0 : index
    %3 = vector.load %arg3[%c0_3, %c0_4] : memref<1x128xf32, #tpu.memory_space<vmem>>, vector<1x128xf32>
    %4 = vector.broadcast %3 : vector<1x128xf32> to vector<16x128xf32>
    %5 = arith.addf %2, %4 : vector<16x128xf32>
    %cst_5 = arith.constant 0.000000e+00 : f32
    %6 = vector.broadcast %cst_5 : f32 to vector<16x128xf32>
    %7 = arith.maximumf %5, %6 : vector<16x128xf32>
    %c0_6 = arith.constant 0 : index
    %c0_7 = arith.constant 0 : index
    %8 = vector.load %arg4[%c0_6, %c0_7] : memref<128x32xf32, #tpu.memory_space<vmem>>, vector<128x32xf32>
    %cst_8 = arith.constant dense<0.000000e+00> : vector<16x32xf32>
    %9 = tpu.matmul %7, %8, %cst_8 {dimension_numbers = #tpu.dot_dimension_numbers<[1], [0], [0], [1], [0, 0, 1, 1], [], []>} : vector<16x128xf32>, vector<128x32xf32>, vector<16x32xf32> -> vector<16x32xf32>
    %c0_9 = arith.constant 0 : index
    %c0_10 = arith.constant 0 : index
    %10 = vector.load %arg5[%c0_9, %c0_10] : memref<1x32xf32, #tpu.memory_space<vmem>>, vector<1x32xf32>
    %11 = vector.broadcast %10 : vector<1x32xf32> to vector<16x32xf32>
    %12 = arith.addf %9, %11 : vector<16x32xf32>
    %13 = arith.addf %12, %0 : vector<16x32xf32>
    %cst_11 = arith.constant dense<0.000000e+00> : vector<16xf32>
    %14 = vector.multi_reduction <add>, %13, %cst_11 [1] : vector<16x32xf32> to vector<16xf32>
    %15 = vector.shape_cast %14 : vector<16xf32> to vector<16x1xf32>
    %cst_12 = arith.constant 3.200000e+01 : f32
    %16 = vector.broadcast %cst_12 : f32 to vector<16x1xf32>
    %17 = arith.divf %15, %16 : vector<16x1xf32>
    %18 = vector.broadcast %17 : vector<16x1xf32> to vector<16x32xf32>
    %19 = arith.subf %13, %18 : vector<16x32xf32>
    %20 = arith.mulf %19, %19 : vector<16x32xf32>
    %cst_13 = arith.constant dense<0.000000e+00> : vector<16xf32>
    %21 = vector.multi_reduction <add>, %20, %cst_13 [1] : vector<16x32xf32> to vector<16xf32>
    %22 = vector.shape_cast %21 : vector<16xf32> to vector<16x1xf32>
    %cst_14 = arith.constant 3.200000e+01 : f32
    %23 = vector.broadcast %cst_14 : f32 to vector<16x1xf32>
    %24 = arith.divf %22, %23 : vector<16x1xf32>
    %25 = vector.broadcast %17 : vector<16x1xf32> to vector<16x32xf32>
    %26 = arith.subf %13, %25 : vector<16x32xf32>
    %cst_15 = arith.constant 9.99999974E-6 : f32
    %27 = vector.broadcast %cst_15 : f32 to vector<16x1xf32>
    %28 = arith.addf %24, %27 : vector<16x1xf32>
    %29 = math.rsqrt %28 : vector<16x1xf32>
    %30 = vector.broadcast %29 : vector<16x1xf32> to vector<16x32xf32>
    %31 = arith.mulf %26, %30 : vector<16x32xf32>
    %c0_16 = arith.constant 0 : index
    %c0_17 = arith.constant 0 : index
    %32 = vector.load %arg6[%c0_16, %c0_17] : memref<1x32xf32, #tpu.memory_space<vmem>>, vector<1x32xf32>
    %33 = vector.broadcast %32 : vector<1x32xf32> to vector<16x32xf32>
    %34 = arith.mulf %31, %33 : vector<16x32xf32>
    %c0_18 = arith.constant 0 : index
    %c0_19 = arith.constant 0 : index
    %35 = vector.load %arg7[%c0_18, %c0_19] : memref<1x32xf32, #tpu.memory_space<vmem>>, vector<1x32xf32>
    %36 = vector.broadcast %35 : vector<1x32xf32> to vector<16x32xf32>
    %37 = arith.addf %34, %36 : vector<16x32xf32>
    %c0_20 = arith.constant 0 : index
    %c0_21 = arith.constant 0 : index
    %38 = vector.load %arg8[%c0_20, %c0_21] : memref<16x32xf32, #tpu.memory_space<vmem>>, vector<16x32xf32>
    tpu.vector_store %arg8[%c0_20, %c0_21], %37 {strides = array<i32>} : memref<16x32xf32, #tpu.memory_space<vmem>>, vector<16x32xf32>,
    return
  }
  func.func @transform_0(%arg0: i32) -> (i32, i32) {
    %c0_i32 = arith.constant 0 : i32
    %c0_i32_0 = arith.constant 0 : i32
    return %arg0, %c0_i32 : i32, i32
  }
  func.func @transform_1(%arg0: i32) -> (i32, i32) {
    %c0_i32 = arith.constant 0 : i32
    %c0_i32_0 = arith.constant 0 : i32
    %c0_i32_1 = arith.constant 0 : i32
    return %c0_i32, %c0_i32_0 : i32, i32
  }
  func.func @transform_2(%arg0: i32) -> (i32, i32) {
    %c0_i32 = arith.constant 0 : i32
    %c0_i32_0 = arith.constant 0 : i32
    %c0_i32_1 = arith.constant 0 : i32
    return %c0_i32, %c0_i32_0 : i32, i32
  }
  func.func @transform_3(%arg0: i32) -> (i32, i32) {
    %c0_i32 = arith.constant 0 : i32
    %c0_i32_0 = arith.constant 0 : i32
    %c0_i32_1 = arith.constant 0 : i32
    return %c0_i32, %c0_i32_0 : i32, i32
  }
  func.func @transform_4(%arg0: i32) -> (i32, i32) {
    %c0_i32 = arith.constant 0 : i32
    %c0_i32_0 = arith.constant 0 : i32
    %c0_i32_1 = arith.constant 0 : i32
    return %c0_i32, %c0_i32_0 : i32, i32
  }
  func.func @transform_5(%arg0: i32) -> (i32, i32) {
    %c0_i32 = arith.constant 0 : i32
    %c0_i32_0 = arith.constant 0 : i32
    %c0_i32_1 = arith.constant 0 : i32
    return %c0_i32, %c0_i32_0 : i32, i32
  }
  func.func @transform_6(%arg0: i32) -> (i32, i32) {
    %c0_i32 = arith.constant 0 : i32
    %c0_i32_0 = arith.constant 0 : i32
    %c0_i32_1 = arith.constant 0 : i32
    return %c0_i32, %c0_i32_0 : i32, i32
  }
  func.func @transform_7(%arg0: i32) -> (i32, i32) {
    %c0_i32 = arith.constant 0 : i32
    %c0_i32_0 = arith.constant 0 : i32
    return %arg0, %c0_i32 : i32, i32
  }
}

module attributes {stable_mosaic.version = 11 : i64} {
  func.func @_attn_block_kernel(%arg0: i32, %arg1: memref<1x8x32xf32, #tpu.memory_space<vmem>>, %arg2: memref<8x32xf32, #tpu.memory_space<vmem>>, %arg3: memref<32x96xf32, #tpu.memory_space<vmem>>, %arg4: memref<1x96xf32, #tpu.memory_space<vmem>>, %arg5: memref<32x32xf32, #tpu.memory_space<vmem>>, %arg6: memref<1x32xf32, #tpu.memory_space<vmem>>, %arg7: memref<1x32xf32, #tpu.memory_space<vmem>>, %arg8: memref<1x32xf32, #tpu.memory_space<vmem>>, %arg9: memref<1x1x8xf32, #tpu.memory_space<vmem>>, %arg10: memref<1x8x32xf32, #tpu.memory_space<vmem>>) attributes {dimension_semantics = [#tpu.dimension_semantics<parallel>], iteration_bounds = array<i64: 2>, scalar_prefetch = 0 : i64, scratch_operands = 0 : i64, tpu.core_type = #tpu.core_type<tc>, window_params = [{transform_indices = @transform_0, window_bounds = array<i64: 1, 8, 32>}, {pipeline_mode = #tpu.pipeline_mode<synchronous>, transform_indices = @transform_1, window_bounds = array<i64: 8, 32>}, {pipeline_mode = #tpu.pipeline_mode<synchronous>, transform_indices = @transform_2, window_bounds = array<i64: 32, 96>}, {pipeline_mode = #tpu.pipeline_mode<synchronous>, transform_indices = @transform_3, window_bounds = array<i64: 1, 96>}, {pipeline_mode = #tpu.pipeline_mode<synchronous>, transform_indices = @transform_4, window_bounds = array<i64: 32, 32>}, {pipeline_mode = #tpu.pipeline_mode<synchronous>, transform_indices = @transform_5, window_bounds = array<i64: 1, 32>}, {pipeline_mode = #tpu.pipeline_mode<synchronous>, transform_indices = @transform_6, window_bounds = array<i64: 1, 32>}, {pipeline_mode = #tpu.pipeline_mode<synchronous>, transform_indices = @transform_7, window_bounds = array<i64: 1, 32>}, {transform_indices = @transform_8, window_bounds = array<i64: 1, 1, 8>}, {transform_indices = @transform_9, window_bounds = array<i64: 1, 8, 32>}]} {
    %c0 = arith.constant 0 : index
    %c0_0 = arith.constant 0 : index
    %c0_1 = arith.constant 0 : index
    %0 = vector.load %arg1[%c0, %c0_0, %c0_1] : memref<1x8x32xf32, #tpu.memory_space<vmem>>, vector<1x8x32xf32>
    %1 = vector.shape_cast %0 : vector<1x8x32xf32> to vector<8x32xf32>
    %c0_2 = arith.constant 0 : index
    %c0_3 = arith.constant 0 : index
    %2 = vector.load %arg2[%c0_2, %c0_3] : memref<8x32xf32, #tpu.memory_space<vmem>>, vector<8x32xf32>
    %3 = arith.addf %1, %2 : vector<8x32xf32>
    %c0_4 = arith.constant 0 : index
    %c0_5 = arith.constant 0 : index
    %4 = vector.load %arg3[%c0_4, %c0_5] : memref<32x96xf32, #tpu.memory_space<vmem>>, vector<32x96xf32>
    %cst = arith.constant dense<0.000000e+00> : vector<8x96xf32>
    %5 = tpu.matmul %3, %4, %cst {dimension_numbers = #tpu.dot_dimension_numbers<[1], [0], [0], [1], [0, 0, 1, 1], [], []>} : vector<8x32xf32>, vector<32x96xf32>, vector<8x96xf32> -> vector<8x96xf32>
    %c0_6 = arith.constant 0 : index
    %c0_7 = arith.constant 0 : index
    %6 = vector.load %arg4[%c0_6, %c0_7] : memref<1x96xf32, #tpu.memory_space<vmem>>, vector<1x96xf32>
    %7 = vector.broadcast %6 : vector<1x96xf32> to vector<8x96xf32>
    %8 = arith.addf %5, %7 : vector<8x96xf32>
    %c0_8 = arith.constant 0 : index
    %c0_9 = arith.constant 0 : index
    %c0_10 = arith.constant 0 : index
    %9 = vector.load %arg9[%c0_8, %c0_9, %c0_10] : memref<1x1x8xf32, #tpu.memory_space<vmem>>, vector<1x1x8xf32>
    %10 = vector.shape_cast %9 : vector<1x1x8xf32> to vector<1x8xf32>
    %11 = vector.extract_strided_slice %8 {offsets = [0, 0], sizes = [8, 4], strides = [1, 1]} : vector<8x96xf32> to vector<8x4xf32>
    %12 = vector.extract_strided_slice %8 {offsets = [0, 32], sizes = [8, 4], strides = [1, 1]} : vector<8x96xf32> to vector<8x4xf32>
    %13 = vector.extract_strided_slice %8 {offsets = [0, 64], sizes = [8, 4], strides = [1, 1]} : vector<8x96xf32> to vector<8x4xf32>
    %14 = tpu.transpose %12, [1, 0] : vector<8x4xf32> -> vector<4x8xf32>
    %cst_11 = arith.constant dense<0.000000e+00> : vector<8x8xf32>
    %15 = tpu.matmul %11, %14, %cst_11 {dimension_numbers = #tpu.dot_dimension_numbers<[1], [0], [0], [1], [0, 0, 1, 1], [], []>} : vector<8x4xf32>, vector<4x8xf32>, vector<8x8xf32> -> vector<8x8xf32>
    %cst_12 = arith.constant 5.000000e-01 : f32
    %16 = vector.broadcast %cst_12 : f32 to vector<8x8xf32>
    %17 = arith.mulf %15, %16 : vector<8x8xf32>
    %18 = vector.broadcast %10 : vector<1x8xf32> to vector<8x8xf32>
    %19 = arith.addf %17, %18 : vector<8x8xf32>
    %cst_13 = arith.constant dense<0xFF800000> : vector<8xf32>
    %20 = vector.multi_reduction <maximumf>, %19, %cst_13 [1] : vector<8x8xf32> to vector<8xf32>
    %21 = vector.shape_cast %20 : vector<8xf32> to vector<8x1xf32>
    %22 = vector.broadcast %21 : vector<8x1xf32> to vector<8x8xf32>
    %23 = arith.subf %19, %22 : vector<8x8xf32>
    %24 = math.exp %23 : vector<8x8xf32>
    %cst_14 = arith.constant dense<0.000000e+00> : vector<8xf32>
    %25 = vector.multi_reduction <add>, %24, %cst_14 [1] : vector<8x8xf32> to vector<8xf32>
    %26 = vector.shape_cast %25 : vector<8xf32> to vector<8x1xf32>
    %27 = tpu.reciprocal %26 {approx = true} : vector<8x1xf32> -> vector<8x1xf32>
    %28 = vector.broadcast %27 : vector<8x1xf32> to vector<8x8xf32>
    %29 = arith.mulf %24, %28 : vector<8x8xf32>
    %cst_15 = arith.constant dense<0.000000e+00> : vector<8x4xf32>
    %30 = tpu.matmul %29, %13, %cst_15 {dimension_numbers = #tpu.dot_dimension_numbers<[1], [0], [0], [1], [0, 0, 1, 1], [], []>} : vector<8x8xf32>, vector<8x4xf32>, vector<8x4xf32> -> vector<8x4xf32>
    %31 = vector.extract_strided_slice %8 {offsets = [0, 4], sizes = [8, 4], strides = [1, 1]} : vector<8x96xf32> to vector<8x4xf32>
    %32 = vector.extract_strided_slice %8 {offsets = [0, 36], sizes = [8, 4], strides = [1, 1]} : vector<8x96xf32> to vector<8x4xf32>
    %33 = vector.extract_strided_slice %8 {offsets = [0, 68], sizes = [8, 4], strides = [1, 1]} : vector<8x96xf32> to vector<8x4xf32>
    %34 = tpu.transpose %32, [1, 0] : vector<8x4xf32> -> vector<4x8xf32>
    %cst_16 = arith.constant dense<0.000000e+00> : vector<8x8xf32>
    %35 = tpu.matmul %31, %34, %cst_16 {dimension_numbers = #tpu.dot_dimension_numbers<[1], [0], [0], [1], [0, 0, 1, 1], [], []>} : vector<8x4xf32>, vector<4x8xf32>, vector<8x8xf32> -> vector<8x8xf32>
    %cst_17 = arith.constant 5.000000e-01 : f32
    %36 = vector.broadcast %cst_17 : f32 to vector<8x8xf32>
    %37 = arith.mulf %35, %36 : vector<8x8xf32>
    %38 = vector.broadcast %10 : vector<1x8xf32> to vector<8x8xf32>
    %39 = arith.addf %37, %38 : vector<8x8xf32>
    %cst_18 = arith.constant dense<0xFF800000> : vector<8xf32>
    %40 = vector.multi_reduction <maximumf>, %39, %cst_18 [1] : vector<8x8xf32> to vector<8xf32>
    %41 = vector.shape_cast %40 : vector<8xf32> to vector<8x1xf32>
    %42 = vector.broadcast %41 : vector<8x1xf32> to vector<8x8xf32>
    %43 = arith.subf %39, %42 : vector<8x8xf32>
    %44 = math.exp %43 : vector<8x8xf32>
    %cst_19 = arith.constant dense<0.000000e+00> : vector<8xf32>
    %45 = vector.multi_reduction <add>, %44, %cst_19 [1] : vector<8x8xf32> to vector<8xf32>
    %46 = vector.shape_cast %45 : vector<8xf32> to vector<8x1xf32>
    %47 = tpu.reciprocal %46 {approx = true} : vector<8x1xf32> -> vector<8x1xf32>
    %48 = vector.broadcast %47 : vector<8x1xf32> to vector<8x8xf32>
    %49 = arith.mulf %44, %48 : vector<8x8xf32>
    %cst_20 = arith.constant dense<0.000000e+00> : vector<8x4xf32>
    %50 = tpu.matmul %49, %33, %cst_20 {dimension_numbers = #tpu.dot_dimension_numbers<[1], [0], [0], [1], [0, 0, 1, 1], [], []>} : vector<8x8xf32>, vector<8x4xf32>, vector<8x4xf32> -> vector<8x4xf32>
    %51 = vector.extract_strided_slice %8 {offsets = [0, 8], sizes = [8, 4], strides = [1, 1]} : vector<8x96xf32> to vector<8x4xf32>
    %52 = vector.extract_strided_slice %8 {offsets = [0, 40], sizes = [8, 4], strides = [1, 1]} : vector<8x96xf32> to vector<8x4xf32>
    %53 = vector.extract_strided_slice %8 {offsets = [0, 72], sizes = [8, 4], strides = [1, 1]} : vector<8x96xf32> to vector<8x4xf32>
    %54 = tpu.transpose %52, [1, 0] : vector<8x4xf32> -> vector<4x8xf32>
    %cst_21 = arith.constant dense<0.000000e+00> : vector<8x8xf32>
    %55 = tpu.matmul %51, %54, %cst_21 {dimension_numbers = #tpu.dot_dimension_numbers<[1], [0], [0], [1], [0, 0, 1, 1], [], []>} : vector<8x4xf32>, vector<4x8xf32>, vector<8x8xf32> -> vector<8x8xf32>
    %cst_22 = arith.constant 5.000000e-01 : f32
    %56 = vector.broadcast %cst_22 : f32 to vector<8x8xf32>
    %57 = arith.mulf %55, %56 : vector<8x8xf32>
    %58 = vector.broadcast %10 : vector<1x8xf32> to vector<8x8xf32>
    %59 = arith.addf %57, %58 : vector<8x8xf32>
    %cst_23 = arith.constant dense<0xFF800000> : vector<8xf32>
    %60 = vector.multi_reduction <maximumf>, %59, %cst_23 [1] : vector<8x8xf32> to vector<8xf32>
    %61 = vector.shape_cast %60 : vector<8xf32> to vector<8x1xf32>
    %62 = vector.broadcast %61 : vector<8x1xf32> to vector<8x8xf32>
    %63 = arith.subf %59, %62 : vector<8x8xf32>
    %64 = math.exp %63 : vector<8x8xf32>
    %cst_24 = arith.constant dense<0.000000e+00> : vector<8xf32>
    %65 = vector.multi_reduction <add>, %64, %cst_24 [1] : vector<8x8xf32> to vector<8xf32>
    %66 = vector.shape_cast %65 : vector<8xf32> to vector<8x1xf32>
    %67 = tpu.reciprocal %66 {approx = true} : vector<8x1xf32> -> vector<8x1xf32>
    %68 = vector.broadcast %67 : vector<8x1xf32> to vector<8x8xf32>
    %69 = arith.mulf %64, %68 : vector<8x8xf32>
    %cst_25 = arith.constant dense<0.000000e+00> : vector<8x4xf32>
    %70 = tpu.matmul %69, %53, %cst_25 {dimension_numbers = #tpu.dot_dimension_numbers<[1], [0], [0], [1], [0, 0, 1, 1], [], []>} : vector<8x8xf32>, vector<8x4xf32>, vector<8x4xf32> -> vector<8x4xf32>
    %71 = vector.extract_strided_slice %8 {offsets = [0, 12], sizes = [8, 4], strides = [1, 1]} : vector<8x96xf32> to vector<8x4xf32>
    %72 = vector.extract_strided_slice %8 {offsets = [0, 44], sizes = [8, 4], strides = [1, 1]} : vector<8x96xf32> to vector<8x4xf32>
    %73 = vector.extract_strided_slice %8 {offsets = [0, 76], sizes = [8, 4], strides = [1, 1]} : vector<8x96xf32> to vector<8x4xf32>
    %74 = tpu.transpose %72, [1, 0] : vector<8x4xf32> -> vector<4x8xf32>
    %cst_26 = arith.constant dense<0.000000e+00> : vector<8x8xf32>
    %75 = tpu.matmul %71, %74, %cst_26 {dimension_numbers = #tpu.dot_dimension_numbers<[1], [0], [0], [1], [0, 0, 1, 1], [], []>} : vector<8x4xf32>, vector<4x8xf32>, vector<8x8xf32> -> vector<8x8xf32>
    %cst_27 = arith.constant 5.000000e-01 : f32
    %76 = vector.broadcast %cst_27 : f32 to vector<8x8xf32>
    %77 = arith.mulf %75, %76 : vector<8x8xf32>
    %78 = vector.broadcast %10 : vector<1x8xf32> to vector<8x8xf32>
    %79 = arith.addf %77, %78 : vector<8x8xf32>
    %cst_28 = arith.constant dense<0xFF800000> : vector<8xf32>
    %80 = vector.multi_reduction <maximumf>, %79, %cst_28 [1] : vector<8x8xf32> to vector<8xf32>
    %81 = vector.shape_cast %80 : vector<8xf32> to vector<8x1xf32>
    %82 = vector.broadcast %81 : vector<8x1xf32> to vector<8x8xf32>
    %83 = arith.subf %79, %82 : vector<8x8xf32>
    %84 = math.exp %83 : vector<8x8xf32>
    %cst_29 = arith.constant dense<0.000000e+00> : vector<8xf32>
    %85 = vector.multi_reduction <add>, %84, %cst_29 [1] : vector<8x8xf32> to vector<8xf32>
    %86 = vector.shape_cast %85 : vector<8xf32> to vector<8x1xf32>
    %87 = tpu.reciprocal %86 {approx = true} : vector<8x1xf32> -> vector<8x1xf32>
    %88 = vector.broadcast %87 : vector<8x1xf32> to vector<8x8xf32>
    %89 = arith.mulf %84, %88 : vector<8x8xf32>
    %cst_30 = arith.constant dense<0.000000e+00> : vector<8x4xf32>
    %90 = tpu.matmul %89, %73, %cst_30 {dimension_numbers = #tpu.dot_dimension_numbers<[1], [0], [0], [1], [0, 0, 1, 1], [], []>} : vector<8x8xf32>, vector<8x4xf32>, vector<8x4xf32> -> vector<8x4xf32>
    %91 = vector.extract_strided_slice %8 {offsets = [0, 16], sizes = [8, 4], strides = [1, 1]} : vector<8x96xf32> to vector<8x4xf32>
    %92 = vector.extract_strided_slice %8 {offsets = [0, 48], sizes = [8, 4], strides = [1, 1]} : vector<8x96xf32> to vector<8x4xf32>
    %93 = vector.extract_strided_slice %8 {offsets = [0, 80], sizes = [8, 4], strides = [1, 1]} : vector<8x96xf32> to vector<8x4xf32>
    %94 = tpu.transpose %92, [1, 0] : vector<8x4xf32> -> vector<4x8xf32>
    %cst_31 = arith.constant dense<0.000000e+00> : vector<8x8xf32>
    %95 = tpu.matmul %91, %94, %cst_31 {dimension_numbers = #tpu.dot_dimension_numbers<[1], [0], [0], [1], [0, 0, 1, 1], [], []>} : vector<8x4xf32>, vector<4x8xf32>, vector<8x8xf32> -> vector<8x8xf32>
    %cst_32 = arith.constant 5.000000e-01 : f32
    %96 = vector.broadcast %cst_32 : f32 to vector<8x8xf32>
    %97 = arith.mulf %95, %96 : vector<8x8xf32>
    %98 = vector.broadcast %10 : vector<1x8xf32> to vector<8x8xf32>
    %99 = arith.addf %97, %98 : vector<8x8xf32>
    %cst_33 = arith.constant dense<0xFF800000> : vector<8xf32>
    %100 = vector.multi_reduction <maximumf>, %99, %cst_33 [1] : vector<8x8xf32> to vector<8xf32>
    %101 = vector.shape_cast %100 : vector<8xf32> to vector<8x1xf32>
    %102 = vector.broadcast %101 : vector<8x1xf32> to vector<8x8xf32>
    %103 = arith.subf %99, %102 : vector<8x8xf32>
    %104 = math.exp %103 : vector<8x8xf32>
    %cst_34 = arith.constant dense<0.000000e+00> : vector<8xf32>
    %105 = vector.multi_reduction <add>, %104, %cst_34 [1] : vector<8x8xf32> to vector<8xf32>
    %106 = vector.shape_cast %105 : vector<8xf32> to vector<8x1xf32>
    %107 = tpu.reciprocal %106 {approx = true} : vector<8x1xf32> -> vector<8x1xf32>
    %108 = vector.broadcast %107 : vector<8x1xf32> to vector<8x8xf32>
    %109 = arith.mulf %104, %108 : vector<8x8xf32>
    %cst_35 = arith.constant dense<0.000000e+00> : vector<8x4xf32>
    %110 = tpu.matmul %109, %93, %cst_35 {dimension_numbers = #tpu.dot_dimension_numbers<[1], [0], [0], [1], [0, 0, 1, 1], [], []>} : vector<8x8xf32>, vector<8x4xf32>, vector<8x4xf32> -> vector<8x4xf32>
    %111 = vector.extract_strided_slice %8 {offsets = [0, 20], sizes = [8, 4], strides = [1, 1]} : vector<8x96xf32> to vector<8x4xf32>
    %112 = vector.extract_strided_slice %8 {offsets = [0, 52], sizes = [8, 4], strides = [1, 1]} : vector<8x96xf32> to vector<8x4xf32>
    %113 = vector.extract_strided_slice %8 {offsets = [0, 84], sizes = [8, 4], strides = [1, 1]} : vector<8x96xf32> to vector<8x4xf32>
    %114 = tpu.transpose %112, [1, 0] : vector<8x4xf32> -> vector<4x8xf32>
    %cst_36 = arith.constant dense<0.000000e+00> : vector<8x8xf32>
    %115 = tpu.matmul %111, %114, %cst_36 {dimension_numbers = #tpu.dot_dimension_numbers<[1], [0], [0], [1], [0, 0, 1, 1], [], []>} : vector<8x4xf32>, vector<4x8xf32>, vector<8x8xf32> -> vector<8x8xf32>
    %cst_37 = arith.constant 5.000000e-01 : f32
    %116 = vector.broadcast %cst_37 : f32 to vector<8x8xf32>
    %117 = arith.mulf %115, %116 : vector<8x8xf32>
    %118 = vector.broadcast %10 : vector<1x8xf32> to vector<8x8xf32>
    %119 = arith.addf %117, %118 : vector<8x8xf32>
    %cst_38 = arith.constant dense<0xFF800000> : vector<8xf32>
    %120 = vector.multi_reduction <maximumf>, %119, %cst_38 [1] : vector<8x8xf32> to vector<8xf32>
    %121 = vector.shape_cast %120 : vector<8xf32> to vector<8x1xf32>
    %122 = vector.broadcast %121 : vector<8x1xf32> to vector<8x8xf32>
    %123 = arith.subf %119, %122 : vector<8x8xf32>
    %124 = math.exp %123 : vector<8x8xf32>
    %cst_39 = arith.constant dense<0.000000e+00> : vector<8xf32>
    %125 = vector.multi_reduction <add>, %124, %cst_39 [1] : vector<8x8xf32> to vector<8xf32>
    %126 = vector.shape_cast %125 : vector<8xf32> to vector<8x1xf32>
    %127 = tpu.reciprocal %126 {approx = true} : vector<8x1xf32> -> vector<8x1xf32>
    %128 = vector.broadcast %127 : vector<8x1xf32> to vector<8x8xf32>
    %129 = arith.mulf %124, %128 : vector<8x8xf32>
    %cst_40 = arith.constant dense<0.000000e+00> : vector<8x4xf32>
    %130 = tpu.matmul %129, %113, %cst_40 {dimension_numbers = #tpu.dot_dimension_numbers<[1], [0], [0], [1], [0, 0, 1, 1], [], []>} : vector<8x8xf32>, vector<8x4xf32>, vector<8x4xf32> -> vector<8x4xf32>
    %131 = vector.extract_strided_slice %8 {offsets = [0, 24], sizes = [8, 4], strides = [1, 1]} : vector<8x96xf32> to vector<8x4xf32>
    %132 = vector.extract_strided_slice %8 {offsets = [0, 56], sizes = [8, 4], strides = [1, 1]} : vector<8x96xf32> to vector<8x4xf32>
    %133 = vector.extract_strided_slice %8 {offsets = [0, 88], sizes = [8, 4], strides = [1, 1]} : vector<8x96xf32> to vector<8x4xf32>
    %134 = tpu.transpose %132, [1, 0] : vector<8x4xf32> -> vector<4x8xf32>
    %cst_41 = arith.constant dense<0.000000e+00> : vector<8x8xf32>
    %135 = tpu.matmul %131, %134, %cst_41 {dimension_numbers = #tpu.dot_dimension_numbers<[1], [0], [0], [1], [0, 0, 1, 1], [], []>} : vector<8x4xf32>, vector<4x8xf32>, vector<8x8xf32> -> vector<8x8xf32>
    %cst_42 = arith.constant 5.000000e-01 : f32
    %136 = vector.broadcast %cst_42 : f32 to vector<8x8xf32>
    %137 = arith.mulf %135, %136 : vector<8x8xf32>
    %138 = vector.broadcast %10 : vector<1x8xf32> to vector<8x8xf32>
    %139 = arith.addf %137, %138 : vector<8x8xf32>
    %cst_43 = arith.constant dense<0xFF800000> : vector<8xf32>
    %140 = vector.multi_reduction <maximumf>, %139, %cst_43 [1] : vector<8x8xf32> to vector<8xf32>
    %141 = vector.shape_cast %140 : vector<8xf32> to vector<8x1xf32>
    %142 = vector.broadcast %141 : vector<8x1xf32> to vector<8x8xf32>
    %143 = arith.subf %139, %142 : vector<8x8xf32>
    %144 = math.exp %143 : vector<8x8xf32>
    %cst_44 = arith.constant dense<0.000000e+00> : vector<8xf32>
    %145 = vector.multi_reduction <add>, %144, %cst_44 [1] : vector<8x8xf32> to vector<8xf32>
    %146 = vector.shape_cast %145 : vector<8xf32> to vector<8x1xf32>
    %147 = tpu.reciprocal %146 {approx = true} : vector<8x1xf32> -> vector<8x1xf32>
    %148 = vector.broadcast %147 : vector<8x1xf32> to vector<8x8xf32>
    %149 = arith.mulf %144, %148 : vector<8x8xf32>
    %cst_45 = arith.constant dense<0.000000e+00> : vector<8x4xf32>
    %150 = tpu.matmul %149, %133, %cst_45 {dimension_numbers = #tpu.dot_dimension_numbers<[1], [0], [0], [1], [0, 0, 1, 1], [], []>} : vector<8x8xf32>, vector<8x4xf32>, vector<8x4xf32> -> vector<8x4xf32>
    %151 = vector.extract_strided_slice %8 {offsets = [0, 28], sizes = [8, 4], strides = [1, 1]} : vector<8x96xf32> to vector<8x4xf32>
    %152 = vector.extract_strided_slice %8 {offsets = [0, 60], sizes = [8, 4], strides = [1, 1]} : vector<8x96xf32> to vector<8x4xf32>
    %153 = vector.extract_strided_slice %8 {offsets = [0, 92], sizes = [8, 4], strides = [1, 1]} : vector<8x96xf32> to vector<8x4xf32>
    %154 = tpu.transpose %152, [1, 0] : vector<8x4xf32> -> vector<4x8xf32>
    %cst_46 = arith.constant dense<0.000000e+00> : vector<8x8xf32>
    %155 = tpu.matmul %151, %154, %cst_46 {dimension_numbers = #tpu.dot_dimension_numbers<[1], [0], [0], [1], [0, 0, 1, 1], [], []>} : vector<8x4xf32>, vector<4x8xf32>, vector<8x8xf32> -> vector<8x8xf32>
    %cst_47 = arith.constant 5.000000e-01 : f32
    %156 = vector.broadcast %cst_47 : f32 to vector<8x8xf32>
    %157 = arith.mulf %155, %156 : vector<8x8xf32>
    %158 = vector.broadcast %10 : vector<1x8xf32> to vector<8x8xf32>
    %159 = arith.addf %157, %158 : vector<8x8xf32>
    %cst_48 = arith.constant dense<0xFF800000> : vector<8xf32>
    %160 = vector.multi_reduction <maximumf>, %159, %cst_48 [1] : vector<8x8xf32> to vector<8xf32>
    %161 = vector.shape_cast %160 : vector<8xf32> to vector<8x1xf32>
    %162 = vector.broadcast %161 : vector<8x1xf32> to vector<8x8xf32>
    %163 = arith.subf %159, %162 : vector<8x8xf32>
    %164 = math.exp %163 : vector<8x8xf32>
    %cst_49 = arith.constant dense<0.000000e+00> : vector<8xf32>
    %165 = vector.multi_reduction <add>, %164, %cst_49 [1] : vector<8x8xf32> to vector<8xf32>
    %166 = vector.shape_cast %165 : vector<8xf32> to vector<8x1xf32>
    %167 = tpu.reciprocal %166 {approx = true} : vector<8x1xf32> -> vector<8x1xf32>
    %168 = vector.broadcast %167 : vector<8x1xf32> to vector<8x8xf32>
    %169 = arith.mulf %164, %168 : vector<8x8xf32>
    %cst_50 = arith.constant dense<0.000000e+00> : vector<8x4xf32>
    %170 = tpu.matmul %169, %153, %cst_50 {dimension_numbers = #tpu.dot_dimension_numbers<[1], [0], [0], [1], [0, 0, 1, 1], [], []>} : vector<8x8xf32>, vector<8x4xf32>, vector<8x4xf32> -> vector<8x4xf32>
    %171 = tpu.concatenate %30, %50, %70, %90, %110, %130, %150, %170 in 1 : vector<8x4xf32>, vector<8x4xf32>, vector<8x4xf32>, vector<8x4xf32>, vector<8x4xf32>, vector<8x4xf32>, vector<8x4xf32>, vector<8x4xf32> -> vector<8x32xf32>
    %c0_51 = arith.constant 0 : index
    %c0_52 = arith.constant 0 : index
    %172 = vector.load %arg5[%c0_51, %c0_52] : memref<32x32xf32, #tpu.memory_space<vmem>>, vector<32x32xf32>
    %cst_53 = arith.constant dense<0.000000e+00> : vector<8x32xf32>
    %173 = tpu.matmul %171, %172, %cst_53 {dimension_numbers = #tpu.dot_dimension_numbers<[1], [0], [0], [1], [0, 0, 1, 1], [], []>} : vector<8x32xf32>, vector<32x32xf32>, vector<8x32xf32> -> vector<8x32xf32>
    %c0_54 = arith.constant 0 : index
    %c0_55 = arith.constant 0 : index
    %174 = vector.load %arg6[%c0_54, %c0_55] : memref<1x32xf32, #tpu.memory_space<vmem>>, vector<1x32xf32>
    %175 = vector.broadcast %174 : vector<1x32xf32> to vector<8x32xf32>
    %176 = arith.addf %173, %175 : vector<8x32xf32>
    %177 = arith.addf %176, %3 : vector<8x32xf32>
    %cst_56 = arith.constant dense<0.000000e+00> : vector<8xf32>
    %178 = vector.multi_reduction <add>, %177, %cst_56 [1] : vector<8x32xf32> to vector<8xf32>
    %179 = vector.shape_cast %178 : vector<8xf32> to vector<8x1xf32>
    %cst_57 = arith.constant 3.200000e+01 : f32
    %180 = vector.broadcast %cst_57 : f32 to vector<8x1xf32>
    %181 = arith.divf %179, %180 : vector<8x1xf32>
    %182 = vector.broadcast %181 : vector<8x1xf32> to vector<8x32xf32>
    %183 = arith.subf %177, %182 : vector<8x32xf32>
    %184 = arith.mulf %183, %183 : vector<8x32xf32>
    %cst_58 = arith.constant dense<0.000000e+00> : vector<8xf32>
    %185 = vector.multi_reduction <add>, %184, %cst_58 [1] : vector<8x32xf32> to vector<8xf32>
    %186 = vector.shape_cast %185 : vector<8xf32> to vector<8x1xf32>
    %cst_59 = arith.constant 3.200000e+01 : f32
    %187 = vector.broadcast %cst_59 : f32 to vector<8x1xf32>
    %188 = arith.divf %186, %187 : vector<8x1xf32>
    %189 = vector.broadcast %181 : vector<8x1xf32> to vector<8x32xf32>
    %190 = arith.subf %177, %189 : vector<8x32xf32>
    %cst_60 = arith.constant 9.99999974E-6 : f32
    %191 = vector.broadcast %cst_60 : f32 to vector<8x1xf32>
    %192 = arith.addf %188, %191 : vector<8x1xf32>
    %193 = math.rsqrt %192 : vector<8x1xf32>
    %194 = vector.broadcast %193 : vector<8x1xf32> to vector<8x32xf32>
    %195 = arith.mulf %190, %194 : vector<8x32xf32>
    %c0_61 = arith.constant 0 : index
    %c0_62 = arith.constant 0 : index
    %196 = vector.load %arg7[%c0_61, %c0_62] : memref<1x32xf32, #tpu.memory_space<vmem>>, vector<1x32xf32>
    %197 = vector.broadcast %196 : vector<1x32xf32> to vector<8x32xf32>
    %198 = arith.mulf %195, %197 : vector<8x32xf32>
    %c0_63 = arith.constant 0 : index
    %c0_64 = arith.constant 0 : index
    %199 = vector.load %arg8[%c0_63, %c0_64] : memref<1x32xf32, #tpu.memory_space<vmem>>, vector<1x32xf32>
    %200 = vector.broadcast %199 : vector<1x32xf32> to vector<8x32xf32>
    %201 = arith.addf %198, %200 : vector<8x32xf32>
    %c0_65 = arith.constant 0 : index
    %c0_66 = arith.constant 0 : index
    %c0_67 = arith.constant 0 : index
    %202 = vector.load %arg10[%c0_65, %c0_66, %c0_67] : memref<1x8x32xf32, #tpu.memory_space<vmem>>, vector<1x8x32xf32>
    %203 = vector.shape_cast %202 : vector<1x8x32xf32> to vector<8x32xf32>
    %204 = vector.shape_cast %201 : vector<8x32xf32> to vector<1x8x32xf32>
    tpu.vector_store %arg10[%c0_65, %c0_66, %c0_67], %204 {strides = array<i32>} : memref<1x8x32xf32, #tpu.memory_space<vmem>>, vector<1x8x32xf32>,
    return
  }
  func.func @transform_0(%arg0: i32) -> (i32, i32, i32) {
    %c0_i32 = arith.constant 0 : i32
    %c0_i32_0 = arith.constant 0 : i32
    %c0_i32_1 = arith.constant 0 : i32
    return %arg0, %c0_i32, %c0_i32_0 : i32, i32, i32
  }
  func.func @transform_1(%arg0: i32) -> (i32, i32) {
    %c0_i32 = arith.constant 0 : i32
    %c0_i32_0 = arith.constant 0 : i32
    %c0_i32_1 = arith.constant 0 : i32
    return %c0_i32, %c0_i32_0 : i32, i32
  }
  func.func @transform_2(%arg0: i32) -> (i32, i32) {
    %c0_i32 = arith.constant 0 : i32
    %c0_i32_0 = arith.constant 0 : i32
    %c0_i32_1 = arith.constant 0 : i32
    return %c0_i32, %c0_i32_0 : i32, i32
  }
  func.func @transform_3(%arg0: i32) -> (i32, i32) {
    %c0_i32 = arith.constant 0 : i32
    %c0_i32_0 = arith.constant 0 : i32
    %c0_i32_1 = arith.constant 0 : i32
    return %c0_i32, %c0_i32_0 : i32, i32
  }
  func.func @transform_4(%arg0: i32) -> (i32, i32) {
    %c0_i32 = arith.constant 0 : i32
    %c0_i32_0 = arith.constant 0 : i32
    %c0_i32_1 = arith.constant 0 : i32
    return %c0_i32, %c0_i32_0 : i32, i32
  }
  func.func @transform_5(%arg0: i32) -> (i32, i32) {
    %c0_i32 = arith.constant 0 : i32
    %c0_i32_0 = arith.constant 0 : i32
    %c0_i32_1 = arith.constant 0 : i32
    return %c0_i32, %c0_i32_0 : i32, i32
  }
  func.func @transform_6(%arg0: i32) -> (i32, i32) {
    %c0_i32 = arith.constant 0 : i32
    %c0_i32_0 = arith.constant 0 : i32
    %c0_i32_1 = arith.constant 0 : i32
    return %c0_i32, %c0_i32_0 : i32, i32
  }
  func.func @transform_7(%arg0: i32) -> (i32, i32) {
    %c0_i32 = arith.constant 0 : i32
    %c0_i32_0 = arith.constant 0 : i32
    %c0_i32_1 = arith.constant 0 : i32
    return %c0_i32, %c0_i32_0 : i32, i32
  }
  func.func @transform_8(%arg0: i32) -> (i32, i32, i32) {
    %c0_i32 = arith.constant 0 : i32
    %c0_i32_0 = arith.constant 0 : i32
    %c0_i32_1 = arith.constant 0 : i32
    return %arg0, %c0_i32, %c0_i32_0 : i32, i32, i32
  }
  func.func @transform_9(%arg0: i32) -> (i32, i32, i32) {
    %c0_i32 = arith.constant 0 : i32
    %c0_i32_0 = arith.constant 0 : i32
    %c0_i32_1 = arith.constant 0 : i32
    return %arg0, %c0_i32, %c0_i32_0 : i32, i32, i32
  }
}

module attributes {stable_mosaic.version = 11 : i64} {
  func.func @_ffn_res_ln_kernel(%arg0: i32, %arg1: memref<16x32xf32, #tpu.memory_space<vmem>>, %arg2: memref<32x128xf32, #tpu.memory_space<vmem>>, %arg3: memref<1x128xf32, #tpu.memory_space<vmem>>, %arg4: memref<128x32xf32, #tpu.memory_space<vmem>>, %arg5: memref<1x32xf32, #tpu.memory_space<vmem>>, %arg6: memref<1x32xf32, #tpu.memory_space<vmem>>, %arg7: memref<1x32xf32, #tpu.memory_space<vmem>>, %arg8: memref<16x32xf32, #tpu.memory_space<vmem>>) attributes {dimension_semantics = [#tpu.dimension_semantics<parallel>], iteration_bounds = array<i64: 1>, scalar_prefetch = 0 : i64, scratch_operands = 0 : i64, tpu.core_type = #tpu.core_type<tc>, window_params = [{transform_indices = @transform_0, window_bounds = array<i64: 16, 32>}, {pipeline_mode = #tpu.pipeline_mode<synchronous>, transform_indices = @transform_1, window_bounds = array<i64: 32, 128>}, {pipeline_mode = #tpu.pipeline_mode<synchronous>, transform_indices = @transform_2, window_bounds = array<i64: 1, 128>}, {pipeline_mode = #tpu.pipeline_mode<synchronous>, transform_indices = @transform_3, window_bounds = array<i64: 128, 32>}, {pipeline_mode = #tpu.pipeline_mode<synchronous>, transform_indices = @transform_4, window_bounds = array<i64: 1, 32>}, {pipeline_mode = #tpu.pipeline_mode<synchronous>, transform_indices = @transform_5, window_bounds = array<i64: 1, 32>}, {pipeline_mode = #tpu.pipeline_mode<synchronous>, transform_indices = @transform_6, window_bounds = array<i64: 1, 32>}, {transform_indices = @transform_7, window_bounds = array<i64: 16, 32>}]} {
    %c0 = arith.constant 0 : index
    %c0_0 = arith.constant 0 : index
    %0 = vector.load %arg1[%c0, %c0_0] : memref<16x32xf32, #tpu.memory_space<vmem>>, vector<16x32xf32>
    %c0_1 = arith.constant 0 : index
    %c0_2 = arith.constant 0 : index
    %1 = vector.load %arg2[%c0_1, %c0_2] : memref<32x128xf32, #tpu.memory_space<vmem>>, vector<32x128xf32>
    %cst = arith.constant dense<0.000000e+00> : vector<16x128xf32>
    %2 = tpu.matmul %0, %1, %cst {dimension_numbers = #tpu.dot_dimension_numbers<[1], [0], [0], [1], [0, 0, 1, 1], [], []>} : vector<16x32xf32>, vector<32x128xf32>, vector<16x128xf32> -> vector<16x128xf32>
    %c0_3 = arith.constant 0 : index
    %c0_4 = arith.constant 0 : index
    %3 = vector.load %arg3[%c0_3, %c0_4] : memref<1x128xf32, #tpu.memory_space<vmem>>, vector<1x128xf32>
    %4 = vector.broadcast %3 : vector<1x128xf32> to vector<16x128xf32>
    %5 = arith.addf %2, %4 : vector<16x128xf32>
    %cst_5 = arith.constant 0.000000e+00 : f32
    %6 = vector.broadcast %cst_5 : f32 to vector<16x128xf32>
    %7 = arith.maximumf %5, %6 : vector<16x128xf32>
    %c0_6 = arith.constant 0 : index
    %c0_7 = arith.constant 0 : index
    %8 = vector.load %arg4[%c0_6, %c0_7] : memref<128x32xf32, #tpu.memory_space<vmem>>, vector<128x32xf32>
    %cst_8 = arith.constant dense<0.000000e+00> : vector<16x32xf32>
    %9 = tpu.matmul %7, %8, %cst_8 {dimension_numbers = #tpu.dot_dimension_numbers<[1], [0], [0], [1], [0, 0, 1, 1], [], []>} : vector<16x128xf32>, vector<128x32xf32>, vector<16x32xf32> -> vector<16x32xf32>
    %c0_9 = arith.constant 0 : index
    %c0_10 = arith.constant 0 : index
    %10 = vector.load %arg5[%c0_9, %c0_10] : memref<1x32xf32, #tpu.memory_space<vmem>>, vector<1x32xf32>
    %11 = vector.broadcast %10 : vector<1x32xf32> to vector<16x32xf32>
    %12 = arith.addf %9, %11 : vector<16x32xf32>
    %13 = arith.addf %12, %0 : vector<16x32xf32>
    %cst_11 = arith.constant dense<0.000000e+00> : vector<16xf32>
    %14 = vector.multi_reduction <add>, %13, %cst_11 [1] : vector<16x32xf32> to vector<16xf32>
    %15 = vector.shape_cast %14 : vector<16xf32> to vector<16x1xf32>
    %cst_12 = arith.constant 3.200000e+01 : f32
    %16 = vector.broadcast %cst_12 : f32 to vector<16x1xf32>
    %17 = arith.divf %15, %16 : vector<16x1xf32>
    %18 = vector.broadcast %17 : vector<16x1xf32> to vector<16x32xf32>
    %19 = arith.subf %13, %18 : vector<16x32xf32>
    %20 = arith.mulf %19, %19 : vector<16x32xf32>
    %cst_13 = arith.constant dense<0.000000e+00> : vector<16xf32>
    %21 = vector.multi_reduction <add>, %20, %cst_13 [1] : vector<16x32xf32> to vector<16xf32>
    %22 = vector.shape_cast %21 : vector<16xf32> to vector<16x1xf32>
    %cst_14 = arith.constant 3.200000e+01 : f32
    %23 = vector.broadcast %cst_14 : f32 to vector<16x1xf32>
    %24 = arith.divf %22, %23 : vector<16x1xf32>
    %25 = vector.broadcast %17 : vector<16x1xf32> to vector<16x32xf32>
    %26 = arith.subf %13, %25 : vector<16x32xf32>
    %cst_15 = arith.constant 9.99999974E-6 : f32
    %27 = vector.broadcast %cst_15 : f32 to vector<16x1xf32>
    %28 = arith.addf %24, %27 : vector<16x1xf32>
    %29 = math.rsqrt %28 : vector<16x1xf32>
    %30 = vector.broadcast %29 : vector<16x1xf32> to vector<16x32xf32>
    %31 = arith.mulf %26, %30 : vector<16x32xf32>
    %c0_16 = arith.constant 0 : index
    %c0_17 = arith.constant 0 : index
    %32 = vector.load %arg6[%c0_16, %c0_17] : memref<1x32xf32, #tpu.memory_space<vmem>>, vector<1x32xf32>
    %33 = vector.broadcast %32 : vector<1x32xf32> to vector<16x32xf32>
    %34 = arith.mulf %31, %33 : vector<16x32xf32>
    %c0_18 = arith.constant 0 : index
    %c0_19 = arith.constant 0 : index
    %35 = vector.load %arg7[%c0_18, %c0_19] : memref<1x32xf32, #tpu.memory_space<vmem>>, vector<1x32xf32>
    %36 = vector.broadcast %35 : vector<1x32xf32> to vector<16x32xf32>
    %37 = arith.addf %34, %36 : vector<16x32xf32>
    %c0_20 = arith.constant 0 : index
    %c0_21 = arith.constant 0 : index
    %38 = vector.load %arg8[%c0_20, %c0_21] : memref<16x32xf32, #tpu.memory_space<vmem>>, vector<16x32xf32>
    tpu.vector_store %arg8[%c0_20, %c0_21], %37 {strides = array<i32>} : memref<16x32xf32, #tpu.memory_space<vmem>>, vector<16x32xf32>,
    return
  }
  func.func @transform_0(%arg0: i32) -> (i32, i32) {
    %c0_i32 = arith.constant 0 : i32
    %c0_i32_0 = arith.constant 0 : i32
    return %arg0, %c0_i32 : i32, i32
  }
  func.func @transform_1(%arg0: i32) -> (i32, i32) {
    %c0_i32 = arith.constant 0 : i32
    %c0_i32_0 = arith.constant 0 : i32
    %c0_i32_1 = arith.constant 0 : i32
    return %c0_i32, %c0_i32_0 : i32, i32
  }
  func.func @transform_2(%arg0: i32) -> (i32, i32) {
    %c0_i32 = arith.constant 0 : i32
    %c0_i32_0 = arith.constant 0 : i32
    %c0_i32_1 = arith.constant 0 : i32
    return %c0_i32, %c0_i32_0 : i32, i32
  }
  func.func @transform_3(%arg0: i32) -> (i32, i32) {
    %c0_i32 = arith.constant 0 : i32
    %c0_i32_0 = arith.constant 0 : i32
    %c0_i32_1 = arith.constant 0 : i32
    return %c0_i32, %c0_i32_0 : i32, i32
  }
  func.func @transform_4(%arg0: i32) -> (i32, i32) {
    %c0_i32 = arith.constant 0 : i32
    %c0_i32_0 = arith.constant 0 : i32
    %c0_i32_1 = arith.constant 0 : i32
    return %c0_i32, %c0_i32_0 : i32, i32
  }
  func.func @transform_5(%arg0: i32) -> (i32, i32) {
    %c0_i32 = arith.constant 0 : i32
    %c0_i32_0 = arith.constant 0 : i32
    %c0_i32_1 = arith.constant 0 : i32
    return %c0_i32, %c0_i32_0 : i32, i32
  }
  func.func @transform_6(%arg0: i32) -> (i32, i32) {
    %c0_i32 = arith.constant 0 : i32
    %c0_i32_0 = arith.constant 0 : i32
    %c0_i32_1 = arith.constant 0 : i32
    return %c0_i32, %c0_i32_0 : i32, i32
  }
  func.func @transform_7(%arg0: i32) -> (i32, i32) {
    %c0_i32 = arith.constant 0 : i32
    %c0_i32_0 = arith.constant 0 : i32
    return %arg0, %c0_i32 : i32, i32
  }
}

module attributes {stable_mosaic.version = 11 : i64} {
  func.func @_attn_block_kernel(%arg0: i32, %arg1: memref<1x8x32xf32, #tpu.memory_space<vmem>>, %arg2: memref<32x96xf32, #tpu.memory_space<vmem>>, %arg3: memref<1x96xf32, #tpu.memory_space<vmem>>, %arg4: memref<32x32xf32, #tpu.memory_space<vmem>>, %arg5: memref<1x32xf32, #tpu.memory_space<vmem>>, %arg6: memref<1x32xf32, #tpu.memory_space<vmem>>, %arg7: memref<1x32xf32, #tpu.memory_space<vmem>>, %arg8: memref<1x1x8xf32, #tpu.memory_space<vmem>>, %arg9: memref<1x8x32xf32, #tpu.memory_space<vmem>>) attributes {dimension_semantics = [#tpu.dimension_semantics<parallel>], iteration_bounds = array<i64: 2>, scalar_prefetch = 0 : i64, scratch_operands = 0 : i64, tpu.core_type = #tpu.core_type<tc>, window_params = [{transform_indices = @transform_0, window_bounds = array<i64: 1, 8, 32>}, {pipeline_mode = #tpu.pipeline_mode<synchronous>, transform_indices = @transform_1, window_bounds = array<i64: 32, 96>}, {pipeline_mode = #tpu.pipeline_mode<synchronous>, transform_indices = @transform_2, window_bounds = array<i64: 1, 96>}, {pipeline_mode = #tpu.pipeline_mode<synchronous>, transform_indices = @transform_3, window_bounds = array<i64: 32, 32>}, {pipeline_mode = #tpu.pipeline_mode<synchronous>, transform_indices = @transform_4, window_bounds = array<i64: 1, 32>}, {pipeline_mode = #tpu.pipeline_mode<synchronous>, transform_indices = @transform_5, window_bounds = array<i64: 1, 32>}, {pipeline_mode = #tpu.pipeline_mode<synchronous>, transform_indices = @transform_6, window_bounds = array<i64: 1, 32>}, {transform_indices = @transform_7, window_bounds = array<i64: 1, 1, 8>}, {transform_indices = @transform_8, window_bounds = array<i64: 1, 8, 32>}]} {
    %c0 = arith.constant 0 : index
    %c0_0 = arith.constant 0 : index
    %c0_1 = arith.constant 0 : index
    %0 = vector.load %arg1[%c0, %c0_0, %c0_1] : memref<1x8x32xf32, #tpu.memory_space<vmem>>, vector<1x8x32xf32>
    %1 = vector.shape_cast %0 : vector<1x8x32xf32> to vector<8x32xf32>
    %c0_2 = arith.constant 0 : index
    %c0_3 = arith.constant 0 : index
    %2 = vector.load %arg2[%c0_2, %c0_3] : memref<32x96xf32, #tpu.memory_space<vmem>>, vector<32x96xf32>
    %cst = arith.constant dense<0.000000e+00> : vector<8x96xf32>
    %3 = tpu.matmul %1, %2, %cst {dimension_numbers = #tpu.dot_dimension_numbers<[1], [0], [0], [1], [0, 0, 1, 1], [], []>} : vector<8x32xf32>, vector<32x96xf32>, vector<8x96xf32> -> vector<8x96xf32>
    %c0_4 = arith.constant 0 : index
    %c0_5 = arith.constant 0 : index
    %4 = vector.load %arg3[%c0_4, %c0_5] : memref<1x96xf32, #tpu.memory_space<vmem>>, vector<1x96xf32>
    %5 = vector.broadcast %4 : vector<1x96xf32> to vector<8x96xf32>
    %6 = arith.addf %3, %5 : vector<8x96xf32>
    %c0_6 = arith.constant 0 : index
    %c0_7 = arith.constant 0 : index
    %c0_8 = arith.constant 0 : index
    %7 = vector.load %arg8[%c0_6, %c0_7, %c0_8] : memref<1x1x8xf32, #tpu.memory_space<vmem>>, vector<1x1x8xf32>
    %8 = vector.shape_cast %7 : vector<1x1x8xf32> to vector<1x8xf32>
    %9 = vector.extract_strided_slice %6 {offsets = [0, 0], sizes = [8, 4], strides = [1, 1]} : vector<8x96xf32> to vector<8x4xf32>
    %10 = vector.extract_strided_slice %6 {offsets = [0, 32], sizes = [8, 4], strides = [1, 1]} : vector<8x96xf32> to vector<8x4xf32>
    %11 = vector.extract_strided_slice %6 {offsets = [0, 64], sizes = [8, 4], strides = [1, 1]} : vector<8x96xf32> to vector<8x4xf32>
    %12 = tpu.transpose %10, [1, 0] : vector<8x4xf32> -> vector<4x8xf32>
    %cst_9 = arith.constant dense<0.000000e+00> : vector<8x8xf32>
    %13 = tpu.matmul %9, %12, %cst_9 {dimension_numbers = #tpu.dot_dimension_numbers<[1], [0], [0], [1], [0, 0, 1, 1], [], []>} : vector<8x4xf32>, vector<4x8xf32>, vector<8x8xf32> -> vector<8x8xf32>
    %cst_10 = arith.constant 5.000000e-01 : f32
    %14 = vector.broadcast %cst_10 : f32 to vector<8x8xf32>
    %15 = arith.mulf %13, %14 : vector<8x8xf32>
    %16 = vector.broadcast %8 : vector<1x8xf32> to vector<8x8xf32>
    %17 = arith.addf %15, %16 : vector<8x8xf32>
    %cst_11 = arith.constant dense<0xFF800000> : vector<8xf32>
    %18 = vector.multi_reduction <maximumf>, %17, %cst_11 [1] : vector<8x8xf32> to vector<8xf32>
    %19 = vector.shape_cast %18 : vector<8xf32> to vector<8x1xf32>
    %20 = vector.broadcast %19 : vector<8x1xf32> to vector<8x8xf32>
    %21 = arith.subf %17, %20 : vector<8x8xf32>
    %22 = math.exp %21 : vector<8x8xf32>
    %cst_12 = arith.constant dense<0.000000e+00> : vector<8xf32>
    %23 = vector.multi_reduction <add>, %22, %cst_12 [1] : vector<8x8xf32> to vector<8xf32>
    %24 = vector.shape_cast %23 : vector<8xf32> to vector<8x1xf32>
    %25 = tpu.reciprocal %24 {approx = true} : vector<8x1xf32> -> vector<8x1xf32>
    %26 = vector.broadcast %25 : vector<8x1xf32> to vector<8x8xf32>
    %27 = arith.mulf %22, %26 : vector<8x8xf32>
    %cst_13 = arith.constant dense<0.000000e+00> : vector<8x4xf32>
    %28 = tpu.matmul %27, %11, %cst_13 {dimension_numbers = #tpu.dot_dimension_numbers<[1], [0], [0], [1], [0, 0, 1, 1], [], []>} : vector<8x8xf32>, vector<8x4xf32>, vector<8x4xf32> -> vector<8x4xf32>
    %29 = vector.extract_strided_slice %6 {offsets = [0, 4], sizes = [8, 4], strides = [1, 1]} : vector<8x96xf32> to vector<8x4xf32>
    %30 = vector.extract_strided_slice %6 {offsets = [0, 36], sizes = [8, 4], strides = [1, 1]} : vector<8x96xf32> to vector<8x4xf32>
    %31 = vector.extract_strided_slice %6 {offsets = [0, 68], sizes = [8, 4], strides = [1, 1]} : vector<8x96xf32> to vector<8x4xf32>
    %32 = tpu.transpose %30, [1, 0] : vector<8x4xf32> -> vector<4x8xf32>
    %cst_14 = arith.constant dense<0.000000e+00> : vector<8x8xf32>
    %33 = tpu.matmul %29, %32, %cst_14 {dimension_numbers = #tpu.dot_dimension_numbers<[1], [0], [0], [1], [0, 0, 1, 1], [], []>} : vector<8x4xf32>, vector<4x8xf32>, vector<8x8xf32> -> vector<8x8xf32>
    %cst_15 = arith.constant 5.000000e-01 : f32
    %34 = vector.broadcast %cst_15 : f32 to vector<8x8xf32>
    %35 = arith.mulf %33, %34 : vector<8x8xf32>
    %36 = vector.broadcast %8 : vector<1x8xf32> to vector<8x8xf32>
    %37 = arith.addf %35, %36 : vector<8x8xf32>
    %cst_16 = arith.constant dense<0xFF800000> : vector<8xf32>
    %38 = vector.multi_reduction <maximumf>, %37, %cst_16 [1] : vector<8x8xf32> to vector<8xf32>
    %39 = vector.shape_cast %38 : vector<8xf32> to vector<8x1xf32>
    %40 = vector.broadcast %39 : vector<8x1xf32> to vector<8x8xf32>
    %41 = arith.subf %37, %40 : vector<8x8xf32>
    %42 = math.exp %41 : vector<8x8xf32>
    %cst_17 = arith.constant dense<0.000000e+00> : vector<8xf32>
    %43 = vector.multi_reduction <add>, %42, %cst_17 [1] : vector<8x8xf32> to vector<8xf32>
    %44 = vector.shape_cast %43 : vector<8xf32> to vector<8x1xf32>
    %45 = tpu.reciprocal %44 {approx = true} : vector<8x1xf32> -> vector<8x1xf32>
    %46 = vector.broadcast %45 : vector<8x1xf32> to vector<8x8xf32>
    %47 = arith.mulf %42, %46 : vector<8x8xf32>
    %cst_18 = arith.constant dense<0.000000e+00> : vector<8x4xf32>
    %48 = tpu.matmul %47, %31, %cst_18 {dimension_numbers = #tpu.dot_dimension_numbers<[1], [0], [0], [1], [0, 0, 1, 1], [], []>} : vector<8x8xf32>, vector<8x4xf32>, vector<8x4xf32> -> vector<8x4xf32>
    %49 = vector.extract_strided_slice %6 {offsets = [0, 8], sizes = [8, 4], strides = [1, 1]} : vector<8x96xf32> to vector<8x4xf32>
    %50 = vector.extract_strided_slice %6 {offsets = [0, 40], sizes = [8, 4], strides = [1, 1]} : vector<8x96xf32> to vector<8x4xf32>
    %51 = vector.extract_strided_slice %6 {offsets = [0, 72], sizes = [8, 4], strides = [1, 1]} : vector<8x96xf32> to vector<8x4xf32>
    %52 = tpu.transpose %50, [1, 0] : vector<8x4xf32> -> vector<4x8xf32>
    %cst_19 = arith.constant dense<0.000000e+00> : vector<8x8xf32>
    %53 = tpu.matmul %49, %52, %cst_19 {dimension_numbers = #tpu.dot_dimension_numbers<[1], [0], [0], [1], [0, 0, 1, 1], [], []>} : vector<8x4xf32>, vector<4x8xf32>, vector<8x8xf32> -> vector<8x8xf32>
    %cst_20 = arith.constant 5.000000e-01 : f32
    %54 = vector.broadcast %cst_20 : f32 to vector<8x8xf32>
    %55 = arith.mulf %53, %54 : vector<8x8xf32>
    %56 = vector.broadcast %8 : vector<1x8xf32> to vector<8x8xf32>
    %57 = arith.addf %55, %56 : vector<8x8xf32>
    %cst_21 = arith.constant dense<0xFF800000> : vector<8xf32>
    %58 = vector.multi_reduction <maximumf>, %57, %cst_21 [1] : vector<8x8xf32> to vector<8xf32>
    %59 = vector.shape_cast %58 : vector<8xf32> to vector<8x1xf32>
    %60 = vector.broadcast %59 : vector<8x1xf32> to vector<8x8xf32>
    %61 = arith.subf %57, %60 : vector<8x8xf32>
    %62 = math.exp %61 : vector<8x8xf32>
    %cst_22 = arith.constant dense<0.000000e+00> : vector<8xf32>
    %63 = vector.multi_reduction <add>, %62, %cst_22 [1] : vector<8x8xf32> to vector<8xf32>
    %64 = vector.shape_cast %63 : vector<8xf32> to vector<8x1xf32>
    %65 = tpu.reciprocal %64 {approx = true} : vector<8x1xf32> -> vector<8x1xf32>
    %66 = vector.broadcast %65 : vector<8x1xf32> to vector<8x8xf32>
    %67 = arith.mulf %62, %66 : vector<8x8xf32>
    %cst_23 = arith.constant dense<0.000000e+00> : vector<8x4xf32>
    %68 = tpu.matmul %67, %51, %cst_23 {dimension_numbers = #tpu.dot_dimension_numbers<[1], [0], [0], [1], [0, 0, 1, 1], [], []>} : vector<8x8xf32>, vector<8x4xf32>, vector<8x4xf32> -> vector<8x4xf32>
    %69 = vector.extract_strided_slice %6 {offsets = [0, 12], sizes = [8, 4], strides = [1, 1]} : vector<8x96xf32> to vector<8x4xf32>
    %70 = vector.extract_strided_slice %6 {offsets = [0, 44], sizes = [8, 4], strides = [1, 1]} : vector<8x96xf32> to vector<8x4xf32>
    %71 = vector.extract_strided_slice %6 {offsets = [0, 76], sizes = [8, 4], strides = [1, 1]} : vector<8x96xf32> to vector<8x4xf32>
    %72 = tpu.transpose %70, [1, 0] : vector<8x4xf32> -> vector<4x8xf32>
    %cst_24 = arith.constant dense<0.000000e+00> : vector<8x8xf32>
    %73 = tpu.matmul %69, %72, %cst_24 {dimension_numbers = #tpu.dot_dimension_numbers<[1], [0], [0], [1], [0, 0, 1, 1], [], []>} : vector<8x4xf32>, vector<4x8xf32>, vector<8x8xf32> -> vector<8x8xf32>
    %cst_25 = arith.constant 5.000000e-01 : f32
    %74 = vector.broadcast %cst_25 : f32 to vector<8x8xf32>
    %75 = arith.mulf %73, %74 : vector<8x8xf32>
    %76 = vector.broadcast %8 : vector<1x8xf32> to vector<8x8xf32>
    %77 = arith.addf %75, %76 : vector<8x8xf32>
    %cst_26 = arith.constant dense<0xFF800000> : vector<8xf32>
    %78 = vector.multi_reduction <maximumf>, %77, %cst_26 [1] : vector<8x8xf32> to vector<8xf32>
    %79 = vector.shape_cast %78 : vector<8xf32> to vector<8x1xf32>
    %80 = vector.broadcast %79 : vector<8x1xf32> to vector<8x8xf32>
    %81 = arith.subf %77, %80 : vector<8x8xf32>
    %82 = math.exp %81 : vector<8x8xf32>
    %cst_27 = arith.constant dense<0.000000e+00> : vector<8xf32>
    %83 = vector.multi_reduction <add>, %82, %cst_27 [1] : vector<8x8xf32> to vector<8xf32>
    %84 = vector.shape_cast %83 : vector<8xf32> to vector<8x1xf32>
    %85 = tpu.reciprocal %84 {approx = true} : vector<8x1xf32> -> vector<8x1xf32>
    %86 = vector.broadcast %85 : vector<8x1xf32> to vector<8x8xf32>
    %87 = arith.mulf %82, %86 : vector<8x8xf32>
    %cst_28 = arith.constant dense<0.000000e+00> : vector<8x4xf32>
    %88 = tpu.matmul %87, %71, %cst_28 {dimension_numbers = #tpu.dot_dimension_numbers<[1], [0], [0], [1], [0, 0, 1, 1], [], []>} : vector<8x8xf32>, vector<8x4xf32>, vector<8x4xf32> -> vector<8x4xf32>
    %89 = vector.extract_strided_slice %6 {offsets = [0, 16], sizes = [8, 4], strides = [1, 1]} : vector<8x96xf32> to vector<8x4xf32>
    %90 = vector.extract_strided_slice %6 {offsets = [0, 48], sizes = [8, 4], strides = [1, 1]} : vector<8x96xf32> to vector<8x4xf32>
    %91 = vector.extract_strided_slice %6 {offsets = [0, 80], sizes = [8, 4], strides = [1, 1]} : vector<8x96xf32> to vector<8x4xf32>
    %92 = tpu.transpose %90, [1, 0] : vector<8x4xf32> -> vector<4x8xf32>
    %cst_29 = arith.constant dense<0.000000e+00> : vector<8x8xf32>
    %93 = tpu.matmul %89, %92, %cst_29 {dimension_numbers = #tpu.dot_dimension_numbers<[1], [0], [0], [1], [0, 0, 1, 1], [], []>} : vector<8x4xf32>, vector<4x8xf32>, vector<8x8xf32> -> vector<8x8xf32>
    %cst_30 = arith.constant 5.000000e-01 : f32
    %94 = vector.broadcast %cst_30 : f32 to vector<8x8xf32>
    %95 = arith.mulf %93, %94 : vector<8x8xf32>
    %96 = vector.broadcast %8 : vector<1x8xf32> to vector<8x8xf32>
    %97 = arith.addf %95, %96 : vector<8x8xf32>
    %cst_31 = arith.constant dense<0xFF800000> : vector<8xf32>
    %98 = vector.multi_reduction <maximumf>, %97, %cst_31 [1] : vector<8x8xf32> to vector<8xf32>
    %99 = vector.shape_cast %98 : vector<8xf32> to vector<8x1xf32>
    %100 = vector.broadcast %99 : vector<8x1xf32> to vector<8x8xf32>
    %101 = arith.subf %97, %100 : vector<8x8xf32>
    %102 = math.exp %101 : vector<8x8xf32>
    %cst_32 = arith.constant dense<0.000000e+00> : vector<8xf32>
    %103 = vector.multi_reduction <add>, %102, %cst_32 [1] : vector<8x8xf32> to vector<8xf32>
    %104 = vector.shape_cast %103 : vector<8xf32> to vector<8x1xf32>
    %105 = tpu.reciprocal %104 {approx = true} : vector<8x1xf32> -> vector<8x1xf32>
    %106 = vector.broadcast %105 : vector<8x1xf32> to vector<8x8xf32>
    %107 = arith.mulf %102, %106 : vector<8x8xf32>
    %cst_33 = arith.constant dense<0.000000e+00> : vector<8x4xf32>
    %108 = tpu.matmul %107, %91, %cst_33 {dimension_numbers = #tpu.dot_dimension_numbers<[1], [0], [0], [1], [0, 0, 1, 1], [], []>} : vector<8x8xf32>, vector<8x4xf32>, vector<8x4xf32> -> vector<8x4xf32>
    %109 = vector.extract_strided_slice %6 {offsets = [0, 20], sizes = [8, 4], strides = [1, 1]} : vector<8x96xf32> to vector<8x4xf32>
    %110 = vector.extract_strided_slice %6 {offsets = [0, 52], sizes = [8, 4], strides = [1, 1]} : vector<8x96xf32> to vector<8x4xf32>
    %111 = vector.extract_strided_slice %6 {offsets = [0, 84], sizes = [8, 4], strides = [1, 1]} : vector<8x96xf32> to vector<8x4xf32>
    %112 = tpu.transpose %110, [1, 0] : vector<8x4xf32> -> vector<4x8xf32>
    %cst_34 = arith.constant dense<0.000000e+00> : vector<8x8xf32>
    %113 = tpu.matmul %109, %112, %cst_34 {dimension_numbers = #tpu.dot_dimension_numbers<[1], [0], [0], [1], [0, 0, 1, 1], [], []>} : vector<8x4xf32>, vector<4x8xf32>, vector<8x8xf32> -> vector<8x8xf32>
    %cst_35 = arith.constant 5.000000e-01 : f32
    %114 = vector.broadcast %cst_35 : f32 to vector<8x8xf32>
    %115 = arith.mulf %113, %114 : vector<8x8xf32>
    %116 = vector.broadcast %8 : vector<1x8xf32> to vector<8x8xf32>
    %117 = arith.addf %115, %116 : vector<8x8xf32>
    %cst_36 = arith.constant dense<0xFF800000> : vector<8xf32>
    %118 = vector.multi_reduction <maximumf>, %117, %cst_36 [1] : vector<8x8xf32> to vector<8xf32>
    %119 = vector.shape_cast %118 : vector<8xf32> to vector<8x1xf32>
    %120 = vector.broadcast %119 : vector<8x1xf32> to vector<8x8xf32>
    %121 = arith.subf %117, %120 : vector<8x8xf32>
    %122 = math.exp %121 : vector<8x8xf32>
    %cst_37 = arith.constant dense<0.000000e+00> : vector<8xf32>
    %123 = vector.multi_reduction <add>, %122, %cst_37 [1] : vector<8x8xf32> to vector<8xf32>
    %124 = vector.shape_cast %123 : vector<8xf32> to vector<8x1xf32>
    %125 = tpu.reciprocal %124 {approx = true} : vector<8x1xf32> -> vector<8x1xf32>
    %126 = vector.broadcast %125 : vector<8x1xf32> to vector<8x8xf32>
    %127 = arith.mulf %122, %126 : vector<8x8xf32>
    %cst_38 = arith.constant dense<0.000000e+00> : vector<8x4xf32>
    %128 = tpu.matmul %127, %111, %cst_38 {dimension_numbers = #tpu.dot_dimension_numbers<[1], [0], [0], [1], [0, 0, 1, 1], [], []>} : vector<8x8xf32>, vector<8x4xf32>, vector<8x4xf32> -> vector<8x4xf32>
    %129 = vector.extract_strided_slice %6 {offsets = [0, 24], sizes = [8, 4], strides = [1, 1]} : vector<8x96xf32> to vector<8x4xf32>
    %130 = vector.extract_strided_slice %6 {offsets = [0, 56], sizes = [8, 4], strides = [1, 1]} : vector<8x96xf32> to vector<8x4xf32>
    %131 = vector.extract_strided_slice %6 {offsets = [0, 88], sizes = [8, 4], strides = [1, 1]} : vector<8x96xf32> to vector<8x4xf32>
    %132 = tpu.transpose %130, [1, 0] : vector<8x4xf32> -> vector<4x8xf32>
    %cst_39 = arith.constant dense<0.000000e+00> : vector<8x8xf32>
    %133 = tpu.matmul %129, %132, %cst_39 {dimension_numbers = #tpu.dot_dimension_numbers<[1], [0], [0], [1], [0, 0, 1, 1], [], []>} : vector<8x4xf32>, vector<4x8xf32>, vector<8x8xf32> -> vector<8x8xf32>
    %cst_40 = arith.constant 5.000000e-01 : f32
    %134 = vector.broadcast %cst_40 : f32 to vector<8x8xf32>
    %135 = arith.mulf %133, %134 : vector<8x8xf32>
    %136 = vector.broadcast %8 : vector<1x8xf32> to vector<8x8xf32>
    %137 = arith.addf %135, %136 : vector<8x8xf32>
    %cst_41 = arith.constant dense<0xFF800000> : vector<8xf32>
    %138 = vector.multi_reduction <maximumf>, %137, %cst_41 [1] : vector<8x8xf32> to vector<8xf32>
    %139 = vector.shape_cast %138 : vector<8xf32> to vector<8x1xf32>
    %140 = vector.broadcast %139 : vector<8x1xf32> to vector<8x8xf32>
    %141 = arith.subf %137, %140 : vector<8x8xf32>
    %142 = math.exp %141 : vector<8x8xf32>
    %cst_42 = arith.constant dense<0.000000e+00> : vector<8xf32>
    %143 = vector.multi_reduction <add>, %142, %cst_42 [1] : vector<8x8xf32> to vector<8xf32>
    %144 = vector.shape_cast %143 : vector<8xf32> to vector<8x1xf32>
    %145 = tpu.reciprocal %144 {approx = true} : vector<8x1xf32> -> vector<8x1xf32>
    %146 = vector.broadcast %145 : vector<8x1xf32> to vector<8x8xf32>
    %147 = arith.mulf %142, %146 : vector<8x8xf32>
    %cst_43 = arith.constant dense<0.000000e+00> : vector<8x4xf32>
    %148 = tpu.matmul %147, %131, %cst_43 {dimension_numbers = #tpu.dot_dimension_numbers<[1], [0], [0], [1], [0, 0, 1, 1], [], []>} : vector<8x8xf32>, vector<8x4xf32>, vector<8x4xf32> -> vector<8x4xf32>
    %149 = vector.extract_strided_slice %6 {offsets = [0, 28], sizes = [8, 4], strides = [1, 1]} : vector<8x96xf32> to vector<8x4xf32>
    %150 = vector.extract_strided_slice %6 {offsets = [0, 60], sizes = [8, 4], strides = [1, 1]} : vector<8x96xf32> to vector<8x4xf32>
    %151 = vector.extract_strided_slice %6 {offsets = [0, 92], sizes = [8, 4], strides = [1, 1]} : vector<8x96xf32> to vector<8x4xf32>
    %152 = tpu.transpose %150, [1, 0] : vector<8x4xf32> -> vector<4x8xf32>
    %cst_44 = arith.constant dense<0.000000e+00> : vector<8x8xf32>
    %153 = tpu.matmul %149, %152, %cst_44 {dimension_numbers = #tpu.dot_dimension_numbers<[1], [0], [0], [1], [0, 0, 1, 1], [], []>} : vector<8x4xf32>, vector<4x8xf32>, vector<8x8xf32> -> vector<8x8xf32>
    %cst_45 = arith.constant 5.000000e-01 : f32
    %154 = vector.broadcast %cst_45 : f32 to vector<8x8xf32>
    %155 = arith.mulf %153, %154 : vector<8x8xf32>
    %156 = vector.broadcast %8 : vector<1x8xf32> to vector<8x8xf32>
    %157 = arith.addf %155, %156 : vector<8x8xf32>
    %cst_46 = arith.constant dense<0xFF800000> : vector<8xf32>
    %158 = vector.multi_reduction <maximumf>, %157, %cst_46 [1] : vector<8x8xf32> to vector<8xf32>
    %159 = vector.shape_cast %158 : vector<8xf32> to vector<8x1xf32>
    %160 = vector.broadcast %159 : vector<8x1xf32> to vector<8x8xf32>
    %161 = arith.subf %157, %160 : vector<8x8xf32>
    %162 = math.exp %161 : vector<8x8xf32>
    %cst_47 = arith.constant dense<0.000000e+00> : vector<8xf32>
    %163 = vector.multi_reduction <add>, %162, %cst_47 [1] : vector<8x8xf32> to vector<8xf32>
    %164 = vector.shape_cast %163 : vector<8xf32> to vector<8x1xf32>
    %165 = tpu.reciprocal %164 {approx = true} : vector<8x1xf32> -> vector<8x1xf32>
    %166 = vector.broadcast %165 : vector<8x1xf32> to vector<8x8xf32>
    %167 = arith.mulf %162, %166 : vector<8x8xf32>
    %cst_48 = arith.constant dense<0.000000e+00> : vector<8x4xf32>
    %168 = tpu.matmul %167, %151, %cst_48 {dimension_numbers = #tpu.dot_dimension_numbers<[1], [0], [0], [1], [0, 0, 1, 1], [], []>} : vector<8x8xf32>, vector<8x4xf32>, vector<8x4xf32> -> vector<8x4xf32>
    %169 = tpu.concatenate %28, %48, %68, %88, %108, %128, %148, %168 in 1 : vector<8x4xf32>, vector<8x4xf32>, vector<8x4xf32>, vector<8x4xf32>, vector<8x4xf32>, vector<8x4xf32>, vector<8x4xf32>, vector<8x4xf32> -> vector<8x32xf32>
    %c0_49 = arith.constant 0 : index
    %c0_50 = arith.constant 0 : index
    %170 = vector.load %arg4[%c0_49, %c0_50] : memref<32x32xf32, #tpu.memory_space<vmem>>, vector<32x32xf32>
    %cst_51 = arith.constant dense<0.000000e+00> : vector<8x32xf32>
    %171 = tpu.matmul %169, %170, %cst_51 {dimension_numbers = #tpu.dot_dimension_numbers<[1], [0], [0], [1], [0, 0, 1, 1], [], []>} : vector<8x32xf32>, vector<32x32xf32>, vector<8x32xf32> -> vector<8x32xf32>
    %c0_52 = arith.constant 0 : index
    %c0_53 = arith.constant 0 : index
    %172 = vector.load %arg5[%c0_52, %c0_53] : memref<1x32xf32, #tpu.memory_space<vmem>>, vector<1x32xf32>
    %173 = vector.broadcast %172 : vector<1x32xf32> to vector<8x32xf32>
    %174 = arith.addf %171, %173 : vector<8x32xf32>
    %175 = arith.addf %174, %1 : vector<8x32xf32>
    %cst_54 = arith.constant dense<0.000000e+00> : vector<8xf32>
    %176 = vector.multi_reduction <add>, %175, %cst_54 [1] : vector<8x32xf32> to vector<8xf32>
    %177 = vector.shape_cast %176 : vector<8xf32> to vector<8x1xf32>
    %cst_55 = arith.constant 3.200000e+01 : f32
    %178 = vector.broadcast %cst_55 : f32 to vector<8x1xf32>
    %179 = arith.divf %177, %178 : vector<8x1xf32>
    %180 = vector.broadcast %179 : vector<8x1xf32> to vector<8x32xf32>
    %181 = arith.subf %175, %180 : vector<8x32xf32>
    %182 = arith.mulf %181, %181 : vector<8x32xf32>
    %cst_56 = arith.constant dense<0.000000e+00> : vector<8xf32>
    %183 = vector.multi_reduction <add>, %182, %cst_56 [1] : vector<8x32xf32> to vector<8xf32>
    %184 = vector.shape_cast %183 : vector<8xf32> to vector<8x1xf32>
    %cst_57 = arith.constant 3.200000e+01 : f32
    %185 = vector.broadcast %cst_57 : f32 to vector<8x1xf32>
    %186 = arith.divf %184, %185 : vector<8x1xf32>
    %187 = vector.broadcast %179 : vector<8x1xf32> to vector<8x32xf32>
    %188 = arith.subf %175, %187 : vector<8x32xf32>
    %cst_58 = arith.constant 9.99999974E-6 : f32
    %189 = vector.broadcast %cst_58 : f32 to vector<8x1xf32>
    %190 = arith.addf %186, %189 : vector<8x1xf32>
    %191 = math.rsqrt %190 : vector<8x1xf32>
    %192 = vector.broadcast %191 : vector<8x1xf32> to vector<8x32xf32>
    %193 = arith.mulf %188, %192 : vector<8x32xf32>
    %c0_59 = arith.constant 0 : index
    %c0_60 = arith.constant 0 : index
    %194 = vector.load %arg6[%c0_59, %c0_60] : memref<1x32xf32, #tpu.memory_space<vmem>>, vector<1x32xf32>
    %195 = vector.broadcast %194 : vector<1x32xf32> to vector<8x32xf32>
    %196 = arith.mulf %193, %195 : vector<8x32xf32>
    %c0_61 = arith.constant 0 : index
    %c0_62 = arith.constant 0 : index
    %197 = vector.load %arg7[%c0_61, %c0_62] : memref<1x32xf32, #tpu.memory_space<vmem>>, vector<1x32xf32>
    %198 = vector.broadcast %197 : vector<1x32xf32> to vector<8x32xf32>
    %199 = arith.addf %196, %198 : vector<8x32xf32>
    %c0_63 = arith.constant 0 : index
    %c0_64 = arith.constant 0 : index
    %c0_65 = arith.constant 0 : index
    %200 = vector.load %arg9[%c0_63, %c0_64, %c0_65] : memref<1x8x32xf32, #tpu.memory_space<vmem>>, vector<1x8x32xf32>
    %201 = vector.shape_cast %200 : vector<1x8x32xf32> to vector<8x32xf32>
    %202 = vector.shape_cast %199 : vector<8x32xf32> to vector<1x8x32xf32>
    tpu.vector_store %arg9[%c0_63, %c0_64, %c0_65], %202 {strides = array<i32>} : memref<1x8x32xf32, #tpu.memory_space<vmem>>, vector<1x8x32xf32>,
    return
  }
  func.func @transform_0(%arg0: i32) -> (i32, i32, i32) {
    %c0_i32 = arith.constant 0 : i32
    %c0_i32_0 = arith.constant 0 : i32
    %c0_i32_1 = arith.constant 0 : i32
    return %arg0, %c0_i32, %c0_i32_0 : i32, i32, i32
  }
  func.func @transform_1(%arg0: i32) -> (i32, i32) {
    %c0_i32 = arith.constant 0 : i32
    %c0_i32_0 = arith.constant 0 : i32
    %c0_i32_1 = arith.constant 0 : i32
    return %c0_i32, %c0_i32_0 : i32, i32
  }
  func.func @transform_2(%arg0: i32) -> (i32, i32) {
    %c0_i32 = arith.constant 0 : i32
    %c0_i32_0 = arith.constant 0 : i32
    %c0_i32_1 = arith.constant 0 : i32
    return %c0_i32, %c0_i32_0 : i32, i32
  }
  func.func @transform_3(%arg0: i32) -> (i32, i32) {
    %c0_i32 = arith.constant 0 : i32
    %c0_i32_0 = arith.constant 0 : i32
    %c0_i32_1 = arith.constant 0 : i32
    return %c0_i32, %c0_i32_0 : i32, i32
  }
  func.func @transform_4(%arg0: i32) -> (i32, i32) {
    %c0_i32 = arith.constant 0 : i32
    %c0_i32_0 = arith.constant 0 : i32
    %c0_i32_1 = arith.constant 0 : i32
    return %c0_i32, %c0_i32_0 : i32, i32
  }
  func.func @transform_5(%arg0: i32) -> (i32, i32) {
    %c0_i32 = arith.constant 0 : i32
    %c0_i32_0 = arith.constant 0 : i32
    %c0_i32_1 = arith.constant 0 : i32
    return %c0_i32, %c0_i32_0 : i32, i32
  }
  func.func @transform_6(%arg0: i32) -> (i32, i32) {
    %c0_i32 = arith.constant 0 : i32
    %c0_i32_0 = arith.constant 0 : i32
    %c0_i32_1 = arith.constant 0 : i32
    return %c0_i32, %c0_i32_0 : i32, i32
  }
  func.func @transform_7(%arg0: i32) -> (i32, i32, i32) {
    %c0_i32 = arith.constant 0 : i32
    %c0_i32_0 = arith.constant 0 : i32
    %c0_i32_1 = arith.constant 0 : i32
    return %arg0, %c0_i32, %c0_i32_0 : i32, i32, i32
  }
  func.func @transform_8(%arg0: i32) -> (i32, i32, i32) {
    %c0_i32 = arith.constant 0 : i32
    %c0_i32_0 = arith.constant 0 : i32
    %c0_i32_1 = arith.constant 0 : i32
    return %arg0, %c0_i32, %c0_i32_0 : i32, i32, i32
  }
}

</mosaic_0001>

<llo_original>
// kernel: _lambda_.5
$region0: #{_lambda_.5}
  #allocation0 [shape = 'u32[]', space=smem, size = 0x4, offset = 0x4, fixed_abs, tag = 'smem constant byte address 0x4 - core index']
  #allocation1 [shape = 'u32[144,128]{1,0:T(1,128)}', space=vmem, size = 0x12000, scoped, tag = 'internal scratch']
  %s0 = inlined_call_operand.vmem [shape: f32[16,32], index: 0, kind: input, shape index: {}]
  %s1 = inlined_call_operand.vmem [shape: f32[32,128], index: 1, kind: input, shape index: {}]
  %s2 = inlined_call_operand.vmem [shape: f32[1,128], index: 2, kind: input, shape index: {}]
  %s3 = inlined_call_operand.vmem [shape: f32[128,32], index: 3, kind: input, shape index: {}]
  %s4 = inlined_call_operand.vmem [shape: f32[1,32], index: 4, kind: input, shape index: {}, may-alias: {4,6}]
  %s5 = inlined_call_operand.vmem [shape: f32[1,32], index: 5, kind: input, shape index: {}]
  %s6 = inlined_call_operand.vmem [shape: f32[1,32], index: 6, kind: input, shape index: {}, may-alias: {4,6}]
  %s7 = inlined_call_operand.vmem [shape: f32[16,32], index: 7, kind: output, shape index: {}]
  %s8 = sld [smem:[#allocation0]]
  $region38: #{_lambda_.5} parent=0
    _
  %s10 = ssub.s32 1, %s8
  %s11 = scalar_select 0, %s10, %s8
  // Predicated region
  $region2: #{_lambda_.5} parent=0 // pred_check
    _
  $region3: #{_lambda_.5} parent=0 // pred_check_branch
    %13 = sbr.rel (0) target = $region5
  $region4: #{_lambda_.5} parent=0 // pred_region
    _
  $region5: #{_lambda_.5} parent=0 // pred_fallthru
    _
  // Predicated region
  $region6: #{_lambda_.5} parent=0 // pred_check
    _
  $region7: #{_lambda_.5} parent=0 // pred_check_branch
    %15 = sbr.rel (0) target = $region9
  $region8: #{_lambda_.5} parent=0 // pred_region
    _
  $region9: #{_lambda_.5} parent=0 // pred_fallthru
    _
  // Predicated region
  $region10: #{_lambda_.5} parent=0 // pred_check
    _
  $region11: #{_lambda_.5} parent=0 // pred_check_branch
    %17 = sbr.rel (0) target = $region13
  $region12: #{_lambda_.5} parent=0 // pred_region
    _
  $region13: #{_lambda_.5} parent=0 // pred_fallthru
    _
  // Predicated region
  $region14: #{_lambda_.5} parent=0 // pred_check
    _
  $region15: #{_lambda_.5} parent=0 // pred_check_branch
    %19 = sbr.rel (0) target = $region17
  $region16: #{_lambda_.5} parent=0 // pred_region
    _
  $region17: #{_lambda_.5} parent=0 // pred_fallthru
    _
  // Predicated region
  $region18: #{_lambda_.5} parent=0 // pred_check
    _
  $region19: #{_lambda_.5} parent=0 // pred_check_branch
    %21 = sbr.rel (0) target = $region21
  $region20: #{_lambda_.5} parent=0 // pred_region
    _
  $region21: #{_lambda_.5} parent=0 // pred_fallthru
    _
  // Predicated region
  $region22: #{_lambda_.5} parent=0 // pred_check
    _
  $region23: #{_lambda_.5} parent=0 // pred_check_branch
    %23 = sbr.rel (0) target = $region25
  $region24: #{_lambda_.5} parent=0 // pred_region
    _
  $region25: #{_lambda_.5} parent=0 // pred_fallthru
    _
  // Predicated region
  $region26: #{_lambda_.5} parent=0 // pred_check
    _
  $region27: #{_lambda_.5} parent=0 // pred_check_branch
    %25 = sbr.rel (0) target = $region29
  $region28: #{_lambda_.5} parent=0 // pred_region
    _
  $region29: #{_lambda_.5} parent=0 // pred_fallthru
    _
  %v26 = vld [vmem:[%s0] sm:$0xff]
  %v27 = vld [vmem:[%s0 + $0x8] sm:$0xff]
  %v28 = vld [vmem:[%s1] sm:$0xff]
  %v29 = vld [vmem:[%s1 + $0x8] sm:$0xff]
  %v30 = vld [vmem:[%s1 + $0x10] sm:$0xff]
  %v31 = vld [vmem:[%s1 + $0x18] sm:$0xff]
  %v32 = vld [vmem:[%s2] sm:$0x1]
  %v34 = vlaneseq
  %v35 = vshrl.u32 %v34, 7
  %v36 = vsub.s32 0, %v35
  %v37 = vrot.slane %v32, %v36
  %vm39 = vcmask 261120
  %v41 = vsel %vm39, %v26, 0
  %v44 = vsel %vm39, %v27, 0
  %46 = vmatprep.subr.mxu0 0.0
  %47 = vmatpush1.msra.mxu0 %v28
  %48 = vmatprep.subr.mxu0 0.0
  %49 = vmatpush1.msra.mxu0 %v29
  %50 = vmatprep.subr.mxu0 0.0
  %51 = vmatpush1.msra.mxu0 %v30
  %52 = vmatprep.subr.mxu0 0.0
  %53 = vmatpush1.msra.mxu0 %v31
  %54 = vmatprep.subr.mxu0 0.0
  %55 = vmatpush1.msra.mxu0 0.0
  %56 = vmatprep.subr.mxu0 0.0
  %57 = vmatpush1.msra.mxu0 0.0
  %58 = vmatprep.subr.mxu0 0.0
  %59 = vmatpush1.msra.mxu0 0.0
  %60 = vmatprep.subr.mxu0 0.0
  %61 = vmatpush1.msra.mxu0 0.0
  %62 = vmatprep.subr.mxu0 0.0
  %63 = vmatpush1.msra.mxu0 0.0
  %64 = vmatprep.subr.mxu0 0.0
  %65 = vmatpush1.msra.mxu0 0.0
  %66 = vmatprep.subr.mxu0 0.0
  %67 = vmatpush1.msra.mxu0 0.0
  %68 = vmatprep.subr.mxu0 0.0
  %69 = vmatpush1.msra.mxu0 0.0
  %70 = vmatprep.subr.mxu0 0.0
  %71 = vmatpush1.msra.mxu0 0.0
  %72 = vmatprep.subr.mxu0 0.0
  %73 = vmatpush1.msra.mxu0 0.0
  %74 = vmatprep.subr.mxu0 0.0
  %75 = vmatpush1.msra.mxu0 0.0
  %76 = vmatprep.subr.mxu0 0.0
  %77 = vmatpush1.msra.mxu0 0.0
  %78 = vmatprep.subr.mxu0 0.0
  %79 = vmatpush1.msra.mxu0 0.0
  %80 = vmatprep.subr.mxu0 0.0
  %81 = vmatpush1.msra.mxu0 0.0
  %82 = vmatprep.subr.mxu0 0.0
  %83 = vmatpush1.msra.mxu0 0.0
  %84 = vmatprep.subr.mxu0 0.0
  %85 = vmatpush1.msra.mxu0 0.0
  %86 = vmatprep.subr.mxu0 0.0
  %87 = vmatpush1.msra.mxu0 0.0
  %88 = vmatprep.subr.mxu0 0.0
  %89 = vmatpush1.msra.mxu0 0.0
  %90 = vmatprep.subr.mxu0 0.0
  %91 = vmatpush1.msra.mxu0 0.0
  %92 = vmatprep.subr.mxu0 0.0
  %93 = vmatpush1.msra.mxu0 0.0
  %94 = vmatprep.subr.mxu0 0.0
  %95 = vmatpush1.msra.mxu0 0.0
  %96 = vmatprep.subr.mxu0 0.0
  %97 = vmatpush1.msra.mxu0 0.0
  %98 = vmatprep.subr.mxu0 0.0
  %99 = vmatpush1.msra.mxu0 0.0
  %100 = vmatprep.subr.mxu0 0.0
  %101 = vmatpush1.msra.mxu0 0.0
  %102 = vmatprep.subr.mxu0 0.0
  %103 = vmatpush1.msra.mxu0 0.0
  %104 = vmatprep.subr.mxu0 0.0
  %105 = vmatpush1.msra.mxu0 0.0
  %106 = vmatprep.subr.mxu0 0.0
  %107 = vmatpush1.msra.mxu0 0.0
  %108 = vmatprep.subr.mxu0 0.0
  %109 = vmatpush1.msra.mxu0 0.0
  %110 = vmatprep.mubr.f32.mxu0 0.0
  %111 = vmatmul.mubr.f32.gmra.mrb[0].mxu0 %v41
  %v112 = vpop.f32.mrb[0].mxu0
  %v113 = vadd.f32 %v37, %v112
  %v114 = vpop.f32.mrb[0].mxu0
  %115 = vmatprep.mubr.f32.mxu0 0.0
  %116 = vmatmul.mubr.f32.gmra.mrb[0].mxu0 %v44
  %v117 = vpop.f32.mrb[0].mxu0
  %v118 = vadd.f32 %v37, %v117
  %v119 = vpop.f32.mrb[0].mxu0
  %120 = vdwg.mxu0
  %v121 = vmax.f32 %v113, 0.0
  %v122 = vmax.f32 %v118, 0.0
  %v123 = vld [vmem:[%s3] sm:$0xff]
  %v124 = vld [vmem:[%s3 + $0x8] sm:$0xff]
  %v125 = vld [vmem:[%s3 + $0x10] sm:$0xff]
  %v126 = vld [vmem:[%s3 + $0x18] sm:$0xff]
  %v127 = vld [vmem:[%s3 + $0x20] sm:$0xff]
  %v128 = vld [vmem:[%s3 + $0x28] sm:$0xff]
  %v129 = vld [vmem:[%s3 + $0x30] sm:$0xff]
  %v130 = vld [vmem:[%s3 + $0x38] sm:$0xff]
  %v131 = vld [vmem:[%s3 + $0x40] sm:$0xff]
  %v132 = vld [vmem:[%s3 + $0x48] sm:$0xff]
  %v133 = vld [vmem:[%s3 + $0x50] sm:$0xff]
  %v134 = vld [vmem:[%s3 + $0x58] sm:$0xff]
  %v135 = vld [vmem:[%s3 + $0x60] sm:$0xff]
  %v136 = vld [vmem:[%s3 + $0x68] sm:$0xff]
  %v137 = vld [vmem:[%s3 + $0x70] sm:$0xff]
  %v138 = vld [vmem:[%s3 + $0x78] sm:$0xff]
  %v139 = vld [vmem:[%s4] sm:$0x1]
  %v141 = vlaneseq
  %v142 = vshrl.u32 %v141, 7
  %v143 = vsub.s32 0, %v142
  %v144 = vrot.slane %v139, %v143
  %146 = vmatprep.subr.mxu0 0.0
  %147 = vmatpush1.msra.mxu0 %v123
  %148 = vmatprep.subr.mxu0 0.0
  %149 = vmatpush1.msra.mxu0 %v124
  %150 = vmatprep.subr.mxu0 0.0
  %151 = vmatpush1.msra.mxu0 %v125
  %152 = vmatprep.subr.mxu0 0.0
  %153 = vmatpush1.msra.mxu0 %v126
  %154 = vmatprep.subr.mxu0 0.0
  %155 = vmatpush1.msra.mxu0 %v127
  %156 = vmatprep.subr.mxu0 0.0
  %157 = vmatpush1.msra.mxu0 %v128
  %158 = vmatprep.subr.mxu0 0.0
  %159 = vmatpush1.msra.mxu0 %v129
  %160 = vmatprep.subr.mxu0 0.0
  %161 = vmatpush1.msra.mxu0 %v130
  %162 = vmatprep.subr.mxu0 0.0
  %163 = vmatpush1.msra.mxu0 %v131
  %164 = vmatprep.subr.mxu0 0.0
  %165 = vmatpush1.msra.mxu0 %v132
  %166 = vmatprep.subr.mxu0 0.0
  %167 = vmatpush1.msra.mxu0 %v133
  %168 = vmatprep.subr.mxu0 0.0
  %169 = vmatpush1.msra.mxu0 %v134
  %170 = vmatprep.subr.mxu0 0.0
  %171 = vmatpush1.msra.mxu0 %v135
  %172 = vmatprep.subr.mxu0 0.0
  %173 = vmatpush1.msra.mxu0 %v136
  %174 = vmatprep.subr.mxu0 0.0
  %175 = vmatpush1.msra.mxu0 %v137
  %176 = vmatprep.subr.mxu0 0.0
  %177 = vmatpush1.msra.mxu0 %v138
  %178 = vmatprep.subr.mxu0 0.0
  %179 = vmatpush1.msra.mxu0 0.0
  %180 = vmatprep.subr.mxu0 0.0
  %181 = vmatpush1.msra.mxu0 0.0
  %182 = vmatprep.subr.mxu0 0.0
  %183 = vmatpush1.msra.mxu0 0.0
  %184 = vmatprep.subr.mxu0 0.0
  %185 = vmatpush1.msra.mxu0 0.0
  %186 = vmatprep.subr.mxu0 0.0
  %187 = vmatpush1.msra.mxu0 0.0
  %188 = vmatprep.subr.mxu0 0.0
  %189 = vmatpush1.msra.mxu0 0.0
  %190 = vmatprep.subr.mxu0 0.0
  %191 = vmatpush1.msra.mxu0 0.0
  %192 = vmatprep.subr.mxu0 0.0
  %193 = vmatpush1.msra.mxu0 0.0
  %194 = vmatprep.subr.mxu0 0.0
  %195 = vmatpush1.msra.mxu0 0.0
  %196 = vmatprep.subr.mxu0 0.0
  %197 = vmatpush1.msra.mxu0 0.0
  %198 = vmatprep.subr.mxu0 0.0
  %199 = vmatpush1.msra.mxu0 0.0
  %200 = vmatprep.subr.mxu0 0.0
  %201 = vmatpush1.msra.mxu0 0.0
  %202 = vmatprep.subr.mxu0 0.0
  %203 = vmatpush1.msra.mxu0 0.0
  %204 = vmatprep.subr.mxu0 0.0
  %205 = vmatpush1.msra.mxu0 0.0
  %206 = vmatprep.subr.mxu0 0.0
  %207 = vmatpush1.msra.mxu0 0.0
  %208 = vmatprep.subr.mxu0 0.0
  %209 = vmatpush1.msra.mxu0 0.0
  %210 = vmatprep.mubr.f32.mxu0 0.0
  %211 = vmatmul.mubr.f32.gmra.mrb[0].mxu0 %v121
  %v212 = vpop.f32.mrb[0].mxu0
  %v213 = vadd.f32 %v144, %v212
  %v214 = vpop.f32.mrb[0].mxu0
  %215 = vmatprep.mubr.f32.mxu0 0.0
  %216 = vmatmul.mubr.f32.gmra.mrb[0].mxu0 %v122
  %v217 = vpop.f32.mrb[0].mxu0
  %v218 = vadd.f32 %v144, %v217
  %v219 = vpop.f32.mrb[0].mxu0
  %220 = vdwg.mxu0
  %v221 = vadd.f32 %v213, %v26
  %v222 = vadd.f32 %v218, %v27
  %v223 = vsel %vm39, %v221, 0.0
  %224 = vadd.xlane.f32.xlu0 %v223
  %v225 = vpop.xlane.xlu0 %224
  %v226 = vsel %vm39, %v222, 0.0
  %227 = vadd.xlane.f32.xlu0 %v226
  %v228 = vpop.xlane.xlu0 %227
  %v229 = vrcp.pop 32.0
  %v230 = vmul.f32 %v225, %v229
  %v231 = vmul.f32 %v228, %v229
  %v232 = vsub.f32 %v221, %v230
  %v233 = vsub.f32 %v222, %v231
  %v234 = vmul.f32 %v232, %v232
  %v235 = vmul.f32 %v233, %v233
  %v236 = vsel %vm39, %v234, 0.0
  %237 = vadd.xlane.f32.xlu0 %v236
  %v238 = vpop.xlane.xlu0 %237
  %v239 = vsel %vm39, %v235, 0.0
  %240 = vadd.xlane.f32.xlu0 %v239
  %v241 = vpop.xlane.xlu0 %240
  %v242 = vmul.f32 %v238, %v229
  %v243 = vmul.f32 %v241, %v229
  %v244 = vadd.f32 %v242, 1e-05
  %v245 = vadd.f32 %v243, 1e-05
  %v246 = vrsqrt.pop %v244
  %v247 = vrsqrt.pop %v245
  %v248 = vmul.f32 %v232, %v246
  %v249 = vmul.f32 %v233, %v247
  %v250 = vld [vmem:[%s5] sm:$0x1]
  %v252 = vlaneseq
  %v253 = vshrl.u32 %v252, 7
  %v254 = vsub.s32 0, %v253
  %v255 = vrot.slane %v250, %v254
  %v257 = vmul.f32 %v248, %v255
  %v258 = vmul.f32 %v249, %v255
  %v259 = vld [vmem:[%s6] sm:$0x1]
  %v261 = vlaneseq
  %v262 = vshrl.u32 %v261, 7
  %v263 = vsub.s32 0, %v262
  %v264 = vrot.slane %v259, %v263
  %v266 = vadd.f32 %v257, %v264
  %v267 = vadd.f32 %v258, %v264
  %268 = vst.msk [vmem:[%s7] sm:$0xff] %vm39, %v266
  %269 = vst.msk [vmem:[%s7 + $0x8] sm:$0xff] %vm39, %v267
  // Predicated region
  $region30: #{_lambda_.5} parent=0 // pred_check
    _
  $region31: #{_lambda_.5} parent=0 // pred_check_branch
    %271 = sbr.rel (0) target = $region33
  $region32: #{_lambda_.5} parent=0 // pred_region
    _
  $region33: #{_lambda_.5} parent=0 // pred_fallthru
    _
  // Predicated region
  $region34: #{_lambda_.5} parent=0 // pred_check
    _
  $region35: #{_lambda_.5} parent=0 // pred_check_branch
    %273 = sbr.rel (0) target = $region37
  $region36: #{_lambda_.5} parent=0 // pred_region
    _
  $region37: #{_lambda_.5} parent=0 // pred_fallthru
    _

// kernel: _lambda_.7
$region0: #{_lambda_.7}
  #allocation0 [shape = 'u32[]', space=smem, size = 0x4, offset = 0x4, fixed_abs, tag = 'smem constant byte address 0x4 - core index']
  #allocation1 [shape = 'u32[144,128]{1,0:T(1,128)}', space=vmem, size = 0x12000, scoped, tag = 'internal scratch']
  %s0 = inlined_call_operand.vmem [shape: f32[16,32], index: 0, kind: input, shape index: {}]
  %s1 = inlined_call_operand.vmem [shape: f32[32,128], index: 1, kind: input, shape index: {}]
  %s2 = inlined_call_operand.vmem [shape: f32[1,128], index: 2, kind: input, shape index: {}]
  %s3 = inlined_call_operand.vmem [shape: f32[128,32], index: 3, kind: input, shape index: {}]
  %s4 = inlined_call_operand.vmem [shape: f32[1,32], index: 4, kind: input, shape index: {}, may-alias: {4,6}]
  %s5 = inlined_call_operand.vmem [shape: f32[1,32], index: 5, kind: input, shape index: {}]
  %s6 = inlined_call_operand.vmem [shape: f32[1,32], index: 6, kind: input, shape index: {}, may-alias: {4,6}]
  %s7 = inlined_call_operand.hbm [shape: f32[16,32], index: 7, kind: output, shape index: {}]
  %s8 = sld [smem:[#allocation0]]
  $region38: #{_lambda_.7} parent=0
    _
  %s10 = ssub.s32 1, %s8
  %s11 = scalar_select 0, %s10, %s8
  $region1: #{_lambda_.7} parent=0
    #allocation2 [shape = 'u8[8192]{0}', space=vmem, size = 0x2000, scoped, tag = 'output window, operand 0, single buffered']
    #allocation3 [shape = 's32[1]{0}', space=sflag, size = 0x4, scoped, tag = 'scoped memory for _lambda_.7']
    %12 = vsyncpa [#allocation3], 0
    // Predicated region
    $region2: #{_lambda_.7} parent=1 // pred_check
      _
    $region3: #{_lambda_.7} parent=1 // pred_check_branch
      %14 = sbr.rel (0) target = $region5
    $region4: #{_lambda_.7} parent=1 // pred_region
      _
    $region5: #{_lambda_.7} parent=1 // pred_fallthru
      _
    // Predicated region
    $region6: #{_lambda_.7} parent=1 // pred_check
      _
    $region7: #{_lambda_.7} parent=1 // pred_check_branch
      %16 = sbr.rel (0) target = $region9
    $region8: #{_lambda_.7} parent=1 // pred_region
      _
    $region9: #{_lambda_.7} parent=1 // pred_fallthru
      _
    // Predicated region
    $region10: #{_lambda_.7} parent=1 // pred_check
      _
    $region11: #{_lambda_.7} parent=1 // pred_check_branch
      %18 = sbr.rel (0) target = $region13
    $region12: #{_lambda_.7} parent=1 // pred_region
      _
    $region13: #{_lambda_.7} parent=1 // pred_fallthru
      _
    // Predicated region
    $region14: #{_lambda_.7} parent=1 // pred_check
      _
    $region15: #{_lambda_.7} parent=1 // pred_check_branch
      %20 = sbr.rel (0) target = $region17
    $region16: #{_lambda_.7} parent=1 // pred_region
      _
    $region17: #{_lambda_.7} parent=1 // pred_fallthru
      _
    // Predicated region
    $region18: #{_lambda_.7} parent=1 // pred_check
      _
    $region19: #{_lambda_.7} parent=1 // pred_check_branch
      %22 = sbr.rel (0) target = $region21
    $region20: #{_lambda_.7} parent=1 // pred_region
      _
    $region21: #{_lambda_.7} parent=1 // pred_fallthru
      _
    // Predicated region
    $region22: #{_lambda_.7} parent=1 // pred_check
      _
    $region23: #{_lambda_.7} parent=1 // pred_check_branch
      %24 = sbr.rel (0) target = $region25
    $region24: #{_lambda_.7} parent=1 // pred_region
      _
    $region25: #{_lambda_.7} parent=1 // pred_fallthru
      _
    // Predicated region
    $region26: #{_lambda_.7} parent=1 // pred_check
      _
    $region27: #{_lambda_.7} parent=1 // pred_check_branch
      %26 = sbr.rel (0) target = $region29
    $region28: #{_lambda_.7} parent=1 // pred_region
      _
    $region29: #{_lambda_.7} parent=1 // pred_fallthru
      _
    %v27 = vld [vmem:[%s0] sm:$0xff]
    %v28 = vld [vmem:[%s0 + $0x8] sm:$0xff]
    %v29 = vld [vmem:[%s1] sm:$0xff]
    %v30 = vld [vmem:[%s1 + $0x8] sm:$0xff]
    %v31 = vld [vmem:[%s1 + $0x10] sm:$0xff]
    %v32 = vld [vmem:[%s1 + $0x18] sm:$0xff]
    %v33 = vld [vmem:[%s2] sm:$0x1]
    %v35 = vlaneseq
    %v36 = vshrl.u32 %v35, 7
    %v37 = vsub.s32 0, %v36
    %v38 = vrot.slane %v33, %v37
    %vm40 = vcmask 261120
    %v42 = vsel %vm40, %v27, 0
    %v45 = vsel %vm40, %v28, 0
    %47 = vmatprep.subr.mxu0 0.0
    %48 = vmatpush1.msra.mxu0 %v29
    %49 = vmatprep.subr.mxu0 0.0
    %50 = vmatpush1.msra.mxu0 %v30
    %51 = vmatprep.subr.mxu0 0.0
    %52 = vmatpush1.msra.mxu0 %v31
    %53 = vmatprep.subr.mxu0 0.0
    %54 = vmatpush1.msra.mxu0 %v32
    %55 = vmatprep.subr.mxu0 0.0
    %56 = vmatpush1.msra.mxu0 0.0
    %57 = vmatprep.subr.mxu0 0.0
    %58 = vmatpush1.msra.mxu0 0.0
    %59 = vmatprep.subr.mxu0 0.0
    %60 = vmatpush1.msra.mxu0 0.0
    %61 = vmatprep.subr.mxu0 0.0
    %62 = vmatpush1.msra.mxu0 0.0
    %63 = vmatprep.subr.mxu0 0.0
    %64 = vmatpush1.msra.mxu0 0.0
    %65 = vmatprep.subr.mxu0 0.0
    %66 = vmatpush1.msra.mxu0 0.0
    %67 = vmatprep.subr.mxu0 0.0
    %68 = vmatpush1.msra.mxu0 0.0
    %69 = vmatprep.subr.mxu0 0.0
    %70 = vmatpush1.msra.mxu0 0.0
    %71 = vmatprep.subr.mxu0 0.0
    %72 = vmatpush1.msra.mxu0 0.0
    %73 = vmatprep.subr.mxu0 0.0
    %74 = vmatpush1.msra.mxu0 0.0
    %75 = vmatprep.subr.mxu0 0.0
    %76 = vmatpush1.msra.mxu0 0.0
    %77 = vmatprep.subr.mxu0 0.0
    %78 = vmatpush1.msra.mxu0 0.0
    %79 = vmatprep.subr.mxu0 0.0
    %80 = vmatpush1.msra.mxu0 0.0
    %81 = vmatprep.subr.mxu0 0.0
    %82 = vmatpush1.msra.mxu0 0.0
    %83 = vmatprep.subr.mxu0 0.0
    %84 = vmatpush1.msra.mxu0 0.0
    %85 = vmatprep.subr.mxu0 0.0
    %86 = vmatpush1.msra.mxu0 0.0
    %87 = vmatprep.subr.mxu0 0.0
    %88 = vmatpush1.msra.mxu0 0.0
    %89 = vmatprep.subr.mxu0 0.0
    %90 = vmatpush1.msra.mxu0 0.0
    %91 = vmatprep.subr.mxu0 0.0
    %92 = vmatpush1.msra.mxu0 0.0
    %93 = vmatprep.subr.mxu0 0.0
    %94 = vmatpush1.msra.mxu0 0.0
    %95 = vmatprep.subr.mxu0 0.0
    %96 = vmatpush1.msra.mxu0 0.0
    %97 = vmatprep.subr.mxu0 0.0
    %98 = vmatpush1.msra.mxu0 0.0
    %99 = vmatprep.subr.mxu0 0.0
    %100 = vmatpush1.msra.mxu0 0.0
    %101 = vmatprep.subr.mxu0 0.0
    %102 = vmatpush1.msra.mxu0 0.0
    %103 = vmatprep.subr.mxu0 0.0
    %104 = vmatpush1.msra.mxu0 0.0
    %105 = vmatprep.subr.mxu0 0.0
    %106 = vmatpush1.msra.mxu0 0.0
    %107 = vmatprep.subr.mxu0 0.0
    %108 = vmatpush1.msra.mxu0 0.0
    %109 = vmatprep.subr.mxu0 0.0
    %110 = vmatpush1.msra.mxu0 0.0
    %111 = vmatprep.mubr.f32.mxu0 0.0
    %112 = vmatmul.mubr.f32.gmra.mrb[0].mxu0 %v42
    %v113 = vpop.f32.mrb[0].mxu0
    %v114 = vadd.f32 %v38, %v113
    %v115 = vpop.f32.mrb[0].mxu0
    %116 = vmatprep.mubr.f32.mxu0 0.0
    %117 = vmatmul.mubr.f32.gmra.mrb[0].mxu0 %v45
    %v118 = vpop.f32.mrb[0].mxu0
    %v119 = vadd.f32 %v38, %v118
    %v120 = vpop.f32.mrb[0].mxu0
    %121 = vdwg.mxu0
    %v122 = vmax.f32 %v114, 0.0
    %v123 = vmax.f32 %v119, 0.0
    %v124 = vld [vmem:[%s3] sm:$0xff]
    %v125 = vld [vmem:[%s3 + $0x8] sm:$0xff]
    %v126 = vld [vmem:[%s3 + $0x10] sm:$0xff]
    %v127 = vld [vmem:[%s3 + $0x18] sm:$0xff]
    %v128 = vld [vmem:[%s3 + $0x20] sm:$0xff]
    %v129 = vld [vmem:[%s3 + $0x28] sm:$0xff]
    %v130 = vld [vmem:[%s3 + $0x30] sm:$0xff]
    %v131 = vld [vmem:[%s3 + $0x38] sm:$0xff]
    %v132 = vld [vmem:[%s3 + $0x40] sm:$0xff]
    %v133 = vld [vmem:[%s3 + $0x48] sm:$0xff]
    %v134 = vld [vmem:[%s3 + $0x50] sm:$0xff]
    %v135 = vld [vmem:[%s3 + $0x58] sm:$0xff]
    %v136 = vld [vmem:[%s3 + $0x60] sm:$0xff]
    %v137 = vld [vmem:[%s3 + $0x68] sm:$0xff]
    %v138 = vld [vmem:[%s3 + $0x70] sm:$0xff]
    %v139 = vld [vmem:[%s3 + $0x78] sm:$0xff]
    %v140 = vld [vmem:[%s4] sm:$0x1]
    %v142 = vlaneseq
    %v143 = vshrl.u32 %v142, 7
    %v144 = vsub.s32 0, %v143
    %v145 = vrot.slane %v140, %v144
    %147 = vmatprep.subr.mxu0 0.0
    %148 = vmatpush1.msra.mxu0 %v124
    %149 = vmatprep.subr.mxu0 0.0
    %150 = vmatpush1.msra.mxu0 %v125
    %151 = vmatprep.subr.mxu0 0.0
    %152 = vmatpush1.msra.mxu0 %v126
    %153 = vmatprep.subr.mxu0 0.0
    %154 = vmatpush1.msra.mxu0 %v127
    %155 = vmatprep.subr.mxu0 0.0
    %156 = vmatpush1.msra.mxu0 %v128
    %157 = vmatprep.subr.mxu0 0.0
    %158 = vmatpush1.msra.mxu0 %v129
    %159 = vmatprep.subr.mxu0 0.0
    %160 = vmatpush1.msra.mxu0 %v130
    %161 = vmatprep.subr.mxu0 0.0
    %162 = vmatpush1.msra.mxu0 %v131
    %163 = vmatprep.subr.mxu0 0.0
    %164 = vmatpush1.msra.mxu0 %v132
    %165 = vmatprep.subr.mxu0 0.0
    %166 = vmatpush1.msra.mxu0 %v133
    %167 = vmatprep.subr.mxu0 0.0
    %168 = vmatpush1.msra.mxu0 %v134
    %169 = vmatprep.subr.mxu0 0.0
    %170 = vmatpush1.msra.mxu0 %v135
    %171 = vmatprep.subr.mxu0 0.0
    %172 = vmatpush1.msra.mxu0 %v136
    %173 = vmatprep.subr.mxu0 0.0
    %174 = vmatpush1.msra.mxu0 %v137
    %175 = vmatprep.subr.mxu0 0.0
    %176 = vmatpush1.msra.mxu0 %v138
    %177 = vmatprep.subr.mxu0 0.0
    %178 = vmatpush1.msra.mxu0 %v139
    %179 = vmatprep.subr.mxu0 0.0
    %180 = vmatpush1.msra.mxu0 0.0
    %181 = vmatprep.subr.mxu0 0.0
    %182 = vmatpush1.msra.mxu0 0.0
    %183 = vmatprep.subr.mxu0 0.0
    %184 = vmatpush1.msra.mxu0 0.0
    %185 = vmatprep.subr.mxu0 0.0
    %186 = vmatpush1.msra.mxu0 0.0
    %187 = vmatprep.subr.mxu0 0.0
    %188 = vmatpush1.msra.mxu0 0.0
    %189 = vmatprep.subr.mxu0 0.0
    %190 = vmatpush1.msra.mxu0 0.0
    %191 = vmatprep.subr.mxu0 0.0
    %192 = vmatpush1.msra.mxu0 0.0
    %193 = vmatprep.subr.mxu0 0.0
    %194 = vmatpush1.msra.mxu0 0.0
    %195 = vmatprep.subr.mxu0 0.0
    %196 = vmatpush1.msra.mxu0 0.0
    %197 = vmatprep.subr.mxu0 0.0
    %198 = vmatpush1.msra.mxu0 0.0
    %199 = vmatprep.subr.mxu0 0.0
    %200 = vmatpush1.msra.mxu0 0.0
    %201 = vmatprep.subr.mxu0 0.0
    %202 = vmatpush1.msra.mxu0 0.0
    %203 = vmatprep.subr.mxu0 0.0
    %204 = vmatpush1.msra.mxu0 0.0
    %205 = vmatprep.subr.mxu0 0.0
    %206 = vmatpush1.msra.mxu0 0.0
    %207 = vmatprep.subr.mxu0 0.0
    %208 = vmatpush1.msra.mxu0 0.0
    %209 = vmatprep.subr.mxu0 0.0
    %210 = vmatpush1.msra.mxu0 0.0
    %211 = vmatprep.mubr.f32.mxu0 0.0
    %212 = vmatmul.mubr.f32.gmra.mrb[0].mxu0 %v122
    %v213 = vpop.f32.mrb[0].mxu0
    %v214 = vadd.f32 %v145, %v213
    %v215 = vpop.f32.mrb[0].mxu0
    %216 = vmatprep.mubr.f32.mxu0 0.0
    %217 = vmatmul.mubr.f32.gmra.mrb[0].mxu0 %v123
    %v218 = vpop.f32.mrb[0].mxu0
    %v219 = vadd.f32 %v145, %v218
    %v220 = vpop.f32.mrb[0].mxu0
    %221 = vdwg.mxu0
    %v222 = vadd.f32 %v214, %v27
    %v223 = vadd.f32 %v219, %v28
    %v224 = vsel %vm40, %v222, 0.0
    %225 = vadd.xlane.f32.xlu0 %v224
    %v226 = vpop.xlane.xlu0 %225
    %v227 = vsel %vm40, %v223, 0.0
    %228 = vadd.xlane.f32.xlu0 %v227
    %v229 = vpop.xlane.xlu0 %228
    %v230 = vrcp.pop 32.0
    %v231 = vmul.f32 %v226, %v230
    %v232 = vmul.f32 %v229, %v230
    %v233 = vsub.f32 %v222, %v231
    %v234 = vsub.f32 %v223, %v232
    %v235 = vmul.f32 %v233, %v233
    %v236 = vmul.f32 %v234, %v234
    %v237 = vsel %vm40, %v235, 0.0
    %238 = vadd.xlane.f32.xlu0 %v237
    %v239 = vpop.xlane.xlu0 %238
    %v240 = vsel %vm40, %v236, 0.0
    %241 = vadd.xlane.f32.xlu0 %v240
    %v242 = vpop.xlane.xlu0 %241
    %v243 = vmul.f32 %v239, %v230
    %v244 = vmul.f32 %v242, %v230
    %v245 = vadd.f32 %v243, 1e-05
    %v246 = vadd.f32 %v244, 1e-05
    %v247 = vrsqrt.pop %v245
    %v248 = vrsqrt.pop %v246
    %v249 = vmul.f32 %v233, %v247
    %v250 = vmul.f32 %v234, %v248
    %v251 = vld [vmem:[%s5] sm:$0x1]
    %v253 = vlaneseq
    %v254 = vshrl.u32 %v253, 7
    %v255 = vsub.s32 0, %v254
    %v256 = vrot.slane %v251, %v255
    %v258 = vmul.f32 %v249, %v256
    %v259 = vmul.f32 %v250, %v256
    %v260 = vld [vmem:[%s6] sm:$0x1]
    %v262 = vlaneseq
    %v263 = vshrl.u32 %v262, 7
    %v264 = vsub.s32 0, %v263
    %v265 = vrot.slane %v260, %v264
    %v267 = vadd.f32 %v258, %v265
    %v268 = vadd.f32 %v259, %v265
    %269 = vst.msk [vmem:[#allocation2] sm:$0xff] %vm40, %v267
    %270 = vst.msk [vmem:[#allocation2 + $0x8] sm:$0xff] %vm40, %v268
    // Predicated region
    $region30: #{_lambda_.7} parent=1 // pred_check
      _
    $region31: #{_lambda_.7} parent=1 // pred_check_branch
      %272 = sbr.rel (0) target = $region33
    $region32: #{_lambda_.7} parent=1 // pred_region
      %s274 = ssub.s32 256, 256
      %275 = vsyncadd [#allocation3], %s274
      %s276 = sshll.u32 [#allocation2], 4
      %s277 = int_to_ptr.vmem [resolvable:$true] %s276
      %282 = dma.vmem_to_hbm [thread:$0]  %s277, 256, %s7, [#allocation3], 128, 128, 8
    $region33: #{_lambda_.7} parent=1 // pred_fallthru
      _
    // Predicated region
    $region34: #{_lambda_.7} parent=1 // pred_check
      _
    $region35: #{_lambda_.7} parent=1 // pred_check_branch
      %284 = sbr.rel (0) target = $region37
    $region36: #{_lambda_.7} parent=1 // pred_region
      %285 = dma.done [#allocation3], 256
    $region37: #{_lambda_.7} parent=1 // pred_fallthru
      _
    %286 = vsyncpa [#allocation3], 1

// kernel: _lambda_.4
$region0: #{_lambda_.4}
  #allocation0 [shape = 'u32[]', space=smem, size = 0x4, offset = 0x4, fixed_abs, tag = 'smem constant byte address 0x4 - core index']
  #allocation1 [shape = 'u32[144,128]{1,0:T(1,128)}', space=vmem, size = 0x12000, scoped, tag = 'internal scratch']
  %s0 = inlined_call_operand.vmem [shape: f32[2,8,32], index: 0, kind: input, shape index: {}]
  %s1 = inlined_call_operand.vmem [shape: f32[8,32], index: 1, kind: input, shape index: {}]
  %s2 = inlined_call_operand.vmem [shape: f32[32,96], index: 2, kind: input, shape index: {}]
  %s3 = inlined_call_operand.vmem [shape: f32[1,96], index: 3, kind: input, shape index: {}]
  %s4 = inlined_call_operand.vmem [shape: f32[32,32], index: 4, kind: input, shape index: {}]
  %s5 = inlined_call_operand.vmem [shape: f32[1,32], index: 5, kind: input, shape index: {}, may-alias: {5,7}]
  %s6 = inlined_call_operand.vmem [shape: f32[1,32], index: 6, kind: input, shape index: {}]
  %s7 = inlined_call_operand.vmem [shape: f32[1,32], index: 7, kind: input, shape index: {}, may-alias: {5,7}]
  %s8 = inlined_call_operand.vmem [shape: f32[2,1,8], index: 8, kind: input, shape index: {}]
  %s9 = inlined_call_operand.vmem [shape: f32[2,8,32], index: 9, kind: output, shape index: {}]
  %s10 = sld [smem:[#allocation0]]
  $region69: #{_lambda_.4} parent=0
    _
  %s12 = ssub.s32 1, %s10
  %s13 = scalar_select 0, %s12, %s10
  loop: start=0, step=1, limit=4
  $region2: #{_lambda_.4} parent=0 // loop_pre_header
    _
  $region3: #{_lambda_.4} parent=0 // loop_header
    %s15 = sphi 0, %s19
    %p16 = scmp.ge.s32.totalorder %s15, 4
    %s25 = sphi 0, %s27
    %s28 = sphi 0, %s25
    %s29 = sphi 0, %s28
    %s45 = sphi 0, %s29
    %s49 = sphi 0, %s49
    %s51 = sphi 0, %s49
    %s52 = sphi 0, %s51
    %s66 = sphi 0, %s52
    %s70 = sphi 0, %s70
    %s72 = sphi 0, %s70
    %s73 = sphi 0, %s72
    %s87 = sphi 0, %s73
    %s91 = sphi 0, %s91
    %s93 = sphi 0, %s91
    %s94 = sphi 0, %s93
    %s108 = sphi 0, %s94
    %s112 = sphi 0, %s112
    %s114 = sphi 0, %s112
    %s115 = sphi 0, %s114
    %s129 = sphi 0, %s115
    %s133 = sphi 0, %s133
    %s135 = sphi 0, %s133
    %s136 = sphi 0, %s135
    %s150 = sphi 0, %s136
    %s154 = sphi 0, %s154
    %s156 = sphi 0, %s154
    %s157 = sphi 0, %s156
    %s171 = sphi 0, %s157
    %s175 = sphi 0, %s175
    %s177 = sphi 0, %s175
    %s178 = sphi 0, %s177
    %s192 = sphi 0, %s178
    %s198 = sphi 0, %s200
    %s201 = sphi 0, %s198
    %s202 = sphi 0, %s201
    %s218 = sphi 0, %s202
    %s224 = sphi 0, %s226
    %s227 = sphi 0, %s224
    %s228 = sphi 0, %s227
    %s244 = sphi 0, %s228
  $region4: #{_lambda_.4} parent=0 // loop_header_branch
    %18 = sbr.rel (%p16) target = $region8
  $region5: #{_lambda_.4} parent=0 // loop_body
    %s20 = ssub.s32 %s15, 1
    %s21 = ssub.s32 %s15, 2
    %s22 = sadd.s32 %s15, 1
    %s23 = ssub.s32 %s15, %s22
    %p24 = scmp.eq.s32.totalorder %s23, 0
    %s26 = sadd.s32 %s25, 1
    %s27 = scalar_select %p24, %s25, %s26
    %p30 = pneg %p24
    %p31 = scmp.eq.s32.totalorder %s15, 1
    %p32 = por %p30, %p31
    %p33 = scmp.ne.s32.totalorder %s25, %s28
    %p34 = scmp.eq.s32.totalorder %s15, 0
    %p35 = por %p33, %p34
    %p36 = scmp.ne.s32.totalorder %s25, %s28
    %p37 = scmp.eq.s32.totalorder %s20, 1
    %p38 = por %p36, %p37
    %p39 = scmp.ne.s32.totalorder %s28, %s29
    %p40 = scmp.eq.s32.totalorder %s20, 0
    %p41 = por %p39, %p40
    %p42 = scmp.ne.s32.totalorder %s28, %s29
    %p43 = scmp.eq.s32.totalorder %s21, 1
    %p44 = por %p42, %p43
    %p46 = scmp.ne.s32.totalorder %s29, %s45
    %p47 = scmp.eq.s32.totalorder %s21, 0
    %p48 = por %p46, %p47
    %s50 = sadd.s32 %s49, 1
    %p53 = scmp.eq.s32.totalorder %s15, 1
    %p54 = scmp.ne.s32.totalorder %s49, %s51
    %p55 = scmp.eq.s32.totalorder %s15, 0
    %p56 = por %p54, %p55
    %p57 = scmp.ne.s32.totalorder %s49, %s51
    %p58 = scmp.eq.s32.totalorder %s20, 1
    %p59 = por %p57, %p58
    %p60 = scmp.ne.s32.totalorder %s51, %s52
    %p61 = scmp.eq.s32.totalorder %s20, 0
    %p62 = por %p60, %p61
    %p63 = scmp.ne.s32.totalorder %s51, %s52
    %p64 = scmp.eq.s32.totalorder %s21, 1
    %p65 = por %p63, %p64
    %p67 = scmp.ne.s32.totalorder %s52, %s66
    %p68 = scmp.eq.s32.totalorder %s21, 0
    %p69 = por %p67, %p68
    %s71 = sadd.s32 %s70, 1
    %p74 = scmp.eq.s32.totalorder %s15, 1
    %p75 = scmp.ne.s32.totalorder %s70, %s72
    %p76 = scmp.eq.s32.totalorder %s15, 0
    %p77 = por %p75, %p76
    %p78 = scmp.ne.s32.totalorder %s70, %s72
    %p79 = scmp.eq.s32.totalorder %s20, 1
    %p80 = por %p78, %p79
    %p81 = scmp.ne.s32.totalorder %s72, %s73
    %p82 = scmp.eq.s32.totalorder %s20, 0
    %p83 = por %p81, %p82
    %p84 = scmp.ne.s32.totalorder %s72, %s73
    %p85 = scmp.eq.s32.totalorder %s21, 1
    %p86 = por %p84, %p85
    %p88 = scmp.ne.s32.totalorder %s73, %s87
    %p89 = scmp.eq.s32.totalorder %s21, 0
    %p90 = por %p88, %p89
    %s92 = sadd.s32 %s91, 1
    %p95 = scmp.eq.s32.totalorder %s15, 1
    %p96 = scmp.ne.s32.totalorder %s91, %s93
    %p97 = scmp.eq.s32.totalorder %s15, 0
    %p98 = por %p96, %p97
    %p99 = scmp.ne.s32.totalorder %s91, %s93
    %p100 = scmp.eq.s32.totalorder %s20, 1
    %p101 = por %p99, %p100
    %p102 = scmp.ne.s32.totalorder %s93, %s94
    %p103 = scmp.eq.s32.totalorder %s20, 0
    %p104 = por %p102, %p103
    %p105 = scmp.ne.s32.totalorder %s93, %s94
    %p106 = scmp.eq.s32.totalorder %s21, 1
    %p107 = por %p105, %p106
    %p109 = scmp.ne.s32.totalorder %s94, %s108
    %p110 = scmp.eq.s32.totalorder %s21, 0
    %p111 = por %p109, %p110
    %s113 = sadd.s32 %s112, 1
    %p116 = scmp.eq.s32.totalorder %s15, 1
    %p117 = scmp.ne.s32.totalorder %s112, %s114
    %p118 = scmp.eq.s32.totalorder %s15, 0
    %p119 = por %p117, %p118
    %p120 = scmp.ne.s32.totalorder %s112, %s114
    %p121 = scmp.eq.s32.totalorder %s20, 1
    %p122 = por %p120, %p121
    %p123 = scmp.ne.s32.totalorder %s114, %s115
    %p124 = scmp.eq.s32.totalorder %s20, 0
    %p125 = por %p123, %p124
    %p126 = scmp.ne.s32.totalorder %s114, %s115
    %p127 = scmp.eq.s32.totalorder %s21, 1
    %p128 = por %p126, %p127
    %p130 = scmp.ne.s32.totalorder %s115, %s129
    %p131 = scmp.eq.s32.totalorder %s21, 0
    %p132 = por %p130, %p131
    %s134 = sadd.s32 %s133, 1
    %p137 = scmp.eq.s32.totalorder %s15, 1
    %p138 = scmp.ne.s32.totalorder %s133, %s135
    %p139 = scmp.eq.s32.totalorder %s15, 0
    %p140 = por %p138, %p139
    %p141 = scmp.ne.s32.totalorder %s133, %s135
    %p142 = scmp.eq.s32.totalorder %s20, 1
    %p143 = por %p141, %p142
    %p144 = scmp.ne.s32.totalorder %s135, %s136
    %p145 = scmp.eq.s32.totalorder %s20, 0
    %p146 = por %p144, %p145
    %p147 = scmp.ne.s32.totalorder %s135, %s136
    %p148 = scmp.eq.s32.totalorder %s21, 1
    %p149 = por %p147, %p148
    %p151 = scmp.ne.s32.totalorder %s136, %s150
    %p152 = scmp.eq.s32.totalorder %s21, 0
    %p153 = por %p151, %p152
    %s155 = sadd.s32 %s154, 1
    %p158 = scmp.eq.s32.totalorder %s15, 1
    %p159 = scmp.ne.s32.totalorder %s154, %s156
    %p160 = scmp.eq.s32.totalorder %s15, 0
    %p161 = por %p159, %p160
    %p162 = scmp.ne.s32.totalorder %s154, %s156
    %p163 = scmp.eq.s32.totalorder %s20, 1
    %p164 = por %p162, %p163
    %p165 = scmp.ne.s32.totalorder %s156, %s157
    %p166 = scmp.eq.s32.totalorder %s20, 0
    %p167 = por %p165, %p166
    %p168 = scmp.ne.s32.totalorder %s156, %s157
    %p169 = scmp.eq.s32.totalorder %s21, 1
    %p170 = por %p168, %p169
    %p172 = scmp.ne.s32.totalorder %s157, %s171
    %p173 = scmp.eq.s32.totalorder %s21, 0
    %p174 = por %p172, %p173
    %s176 = sadd.s32 %s175, 1
    %p179 = scmp.eq.s32.totalorder %s15, 1
    %p180 = scmp.ne.s32.totalorder %s175, %s177
    %p181 = scmp.eq.s32.totalorder %s15, 0
    %p182 = por %p180, %p181
    %p183 = scmp.ne.s32.totalorder %s175, %s177
    %p184 = scmp.eq.s32.totalorder %s20, 1
    %p185 = por %p183, %p184
    %p186 = scmp.ne.s32.totalorder %s177, %s178
    %p187 = scmp.eq.s32.totalorder %s20, 0
    %p188 = por %p186, %p187
    %p189 = scmp.ne.s32.totalorder %s177, %s178
    %p190 = scmp.eq.s32.totalorder %s21, 1
    %p191 = por %p189, %p190
    %p193 = scmp.ne.s32.totalorder %s178, %s192
    %p194 = scmp.eq.s32.totalorder %s21, 0
    %p195 = por %p193, %p194
    %s196 = ssub.s32 %s15, %s22
    %p197 = scmp.eq.s32.totalorder %s196, 0
    %s199 = sadd.s32 %s198, 1
    %s200 = scalar_select %p197, %s198, %s199
    %p203 = pneg %p197
    %p204 = scmp.eq.s32.totalorder %s15, 1
    %p205 = por %p203, %p204
    %p206 = scmp.ne.s32.totalorder %s198, %s201
    %p207 = scmp.eq.s32.totalorder %s15, 0
    %p208 = por %p206, %p207
    %p209 = scmp.ne.s32.totalorder %s198, %s201
    %p210 = scmp.eq.s32.totalorder %s20, 1
    %p211 = por %p209, %p210
    %p212 = scmp.ne.s32.totalorder %s201, %s202
    %p213 = scmp.eq.s32.totalorder %s20, 0
    %p214 = por %p212, %p213
    %p215 = scmp.ne.s32.totalorder %s201, %s202
    %p216 = scmp.eq.s32.totalorder %s21, 1
    %p217 = por %p215, %p216
    %p219 = scmp.ne.s32.totalorder %s202, %s218
    %p220 = scmp.eq.s32.totalorder %s21, 0
    %p221 = por %p219, %p220
    %s222 = ssub.s32 %s15, %s22
    %p223 = scmp.eq.s32.totalorder %s222, 0
    %s225 = sadd.s32 %s224, 1
    %s226 = scalar_select %p223, %s224, %s225
    %p229 = pneg %p223
    %p230 = scmp.eq.s32.totalorder %s15, 1
    %p231 = por %p229, %p230
    %p232 = scmp.ne.s32.totalorder %s224, %s227
    %p233 = scmp.eq.s32.totalorder %s15, 0
    %p234 = por %p232, %p233
    %p235 = scmp.ne.s32.totalorder %s224, %s227
    %p236 = scmp.eq.s32.totalorder %s20, 1
    %p237 = por %p235, %p236
    %p238 = scmp.ne.s32.totalorder %s227, %s228
    %p239 = scmp.eq.s32.totalorder %s20, 0
    %p240 = por %p238, %p239
    %p241 = scmp.ne.s32.totalorder %s227, %s228
    %p242 = scmp.eq.s32.totalorder %s21, 1
    %p243 = por %p241, %p242
    %p245 = scmp.ne.s32.totalorder %s228, %s244
    %p246 = scmp.eq.s32.totalorder %s21, 0
    %p247 = por %p245, %p246
    %p248 = scmp.le.s32.totalorder 1, %s15
    %p249 = scmp.lt.s32.totalorder %s15, 3
    %p250 = pnand %p248, %p249
    %p251 = pneg %p250
    // Predicated region
    $region9: #{_lambda_.4} parent=5 // pred_check
      _
    $region10: #{_lambda_.4} parent=5 // pred_check_branch
      %253 = sbr.rel (%p250) target = $region12
    $region11: #{_lambda_.4} parent=5 // pred_region
      %s254 = ssub.s32 %s15, 1
      // Predicated region
      $region13: #{_lambda_.4} parent=11 // pred_check
        %p255 = pneg %p62
      $region14: #{_lambda_.4} parent=11 // pred_check_branch
        %257 = sbr.rel (%p255) target = $region16
      $region15: #{_lambda_.4} parent=11 // pred_region
        _
      $region16: #{_lambda_.4} parent=11 // pred_fallthru
        _
      // Predicated region
      $region17: #{_lambda_.4} parent=11 // pred_check
        %p258 = pneg %p83
      $region18: #{_lambda_.4} parent=11 // pred_check_branch
        %260 = sbr.rel (%p258) target = $region20
      $region19: #{_lambda_.4} parent=11 // pred_region
        _
      $region20: #{_lambda_.4} parent=11 // pred_fallthru
        _
      // Predicated region
      $region21: #{_lambda_.4} parent=11 // pred_check
        %p261 = pneg %p104
      $region22: #{_lambda_.4} parent=11 // pred_check_branch
        %263 = sbr.rel (%p261) target = $region24
      $region23: #{_lambda_.4} parent=11 // pred_region
        _
      $region24: #{_lambda_.4} parent=11 // pred_fallthru
        _
      // Predicated region
      $region25: #{_lambda_.4} parent=11 // pred_check
        %p264 = pneg %p125
      $region26: #{_lambda_.4} parent=11 // pred_check_branch
        %266 = sbr.rel (%p264) target = $region28
      $region27: #{_lambda_.4} parent=11 // pred_region
        _
      $region28: #{_lambda_.4} parent=11 // pred_fallthru
        _
      // Predicated region
      $region29: #{_lambda_.4} parent=11 // pred_check
        %p267 = pneg %p146
      $region30: #{_lambda_.4} parent=11 // pred_check_branch
        %269 = sbr.rel (%p267) target = $region32
      $region31: #{_lambda_.4} parent=11 // pred_region
        _
      $region32: #{_lambda_.4} parent=11 // pred_fallthru
        _
      // Predicated region
      $region33: #{_lambda_.4} parent=11 // pred_check
        %p270 = pneg %p167
      $region34: #{_lambda_.4} parent=11 // pred_check_branch
        %272 = sbr.rel (%p270) target = $region36
      $region35: #{_lambda_.4} parent=11 // pred_region
        _
      $region36: #{_lambda_.4} parent=11 // pred_fallthru
        _
      // Predicated region
      $region37: #{_lambda_.4} parent=11 // pred_check
        %p273 = pneg %p188
      $region38: #{_lambda_.4} parent=11 // pred_check_branch
        %275 = sbr.rel (%p273) target = $region40
      $region39: #{_lambda_.4} parent=11 // pred_region
        _
      $region40: #{_lambda_.4} parent=11 // pred_fallthru
        _
    $region12: #{_lambda_.4} parent=5 // pred_fallthru
      _
    %p276 = scmp.lt.s32.totalorder %s15, 2
    // Predicated region
    $region41: #{_lambda_.4} parent=5 // pred_check
      %p277 = pneg %p276
    $region42: #{_lambda_.4} parent=5 // pred_check_branch
      %279 = sbr.rel (%p277) target = $region44
    $region43: #{_lambda_.4} parent=5 // pred_region
      // Predicated region
      $region45: #{_lambda_.4} parent=43 // pred_check
        %p280 = pneg %p35
      $region46: #{_lambda_.4} parent=43 // pred_check_branch
        %282 = sbr.rel (%p280) target = $region48
      $region47: #{_lambda_.4} parent=43 // pred_region
        %p283 = scmp.lt.s32.totalorder %s15, 1
        %s284 = scalar_select %p283, %s15, 1
        %s285 = smul.addr %s284, 8
        %s286 = scalar_lea.vmem %s0, %s285
      $region48: #{_lambda_.4} parent=43 // pred_fallthru
        _
      // Predicated region
      $region49: #{_lambda_.4} parent=43 // pred_check
        %p287 = pneg %p208
      $region50: #{_lambda_.4} parent=43 // pred_check_branch
        %289 = sbr.rel (%p287) target = $region52
      $region51: #{_lambda_.4} parent=43 // pred_region
        %p290 = scmp.lt.s32.totalorder %s15, 1
        %s291 = scalar_select %p290, %s15, 1
        %s292 = scalar_lea.vmem %s8, %s291
      $region52: #{_lambda_.4} parent=43 // pred_fallthru
        _
    $region44: #{_lambda_.4} parent=5 // pred_fallthru
      _
    %p293 = scmp.le.s32.totalorder 1, %s15
    %p294 = scmp.lt.s32.totalorder %s15, 3
    %p295 = pnand %p293, %p294
    %p296 = pneg %p295
    // Predicated region
    $region53: #{_lambda_.4} parent=5 // pred_check
      _
    $region54: #{_lambda_.4} parent=5 // pred_check_branch
      %298 = sbr.rel (%p295) target = $region56
    $region55: #{_lambda_.4} parent=5 // pred_region
      %s299 = ssub.s32 %s15, 1
      %p300 = scmp.lt.s32.totalorder %s20, 1
      %s301 = scalar_select %p300, %s20, 1
      %s302 = smul.addr %s301, 8
      %s303 = scalar_lea.vmem %s0, %s302
      %p304 = pneg %p41
      %p305 = pneg %p38
      %p306 = pneg %p62
      %p307 = pneg %p59
      %p308 = pneg %p83
      %p309 = pneg %p80
      %p310 = pneg %p104
      %p311 = pneg %p101
      %p312 = pneg %p125
      %p313 = pneg %p122
      %p314 = pneg %p146
      %p315 = pneg %p143
      %p316 = pneg %p167
      %p317 = pneg %p164
      %p318 = pneg %p188
      %p319 = pneg %p185
      %p320 = scmp.lt.s32.totalorder %s20, 1
      %s321 = scalar_select %p320, %s20, 1
      %s322 = scalar_lea.vmem %s8, %s321
      %p323 = pneg %p214
      %p324 = pneg %p211
      %p325 = pneg %p240
      %p326 = pneg %p237
      %p327 = scmp.lt.s32.totalorder %s20, 1
      %s328 = scalar_select %p327, %s20, 1
      %s329 = smul.addr %s328, 8
      %s330 = scalar_lea.vmem %s9, %s329
      %p331 = scmp.lt.s32.totalorder %s20, 1
      %s332 = scalar_select %p331, %s20, 1
      %s333 = smul.addr %s332, 8
      %s334 = scalar_lea.vmem %s0, %s333
      %p335 = scmp.lt.s32.totalorder %s20, 1
      %s336 = scalar_select %p335, %s20, 1
      %s337 = scalar_lea.vmem %s8, %s336
      %p338 = scmp.lt.s32.totalorder %s20, 1
      %s339 = scalar_select %p338, %s20, 1
      %s340 = smul.addr %s339, 8
      %s341 = scalar_lea.vmem %s9, %s340
      %v342 = vld [vmem:[%s334] sm:$0xff]
      %v343 = vld [vmem:[%s1] sm:$0xff]
      %v344 = vadd.f32 %v342, %v343
      %v345 = vld [vmem:[%s2] sm:$0xff]
      %v346 = vld [vmem:[%s2 + $0x8] sm:$0xff]
      %v347 = vld [vmem:[%s2 + $0x10] sm:$0xff]
      %v348 = vld [vmem:[%s2 + $0x18] sm:$0xff]
      %v349 = vld [vmem:[%s3] sm:$0x1]
      %v351 = vlaneseq
      %v352 = vshrl.u32 %v351, 7
      %v353 = vsub.s32 0, %v352
      %v354 = vrot.slane %v349, %v353
      %vm356 = vcmask 261120
      %v358 = vsel %vm356, %v344, 0
      %360 = vmatprep.subr.mxu0 0.0
      %361 = vmatpush1.msra.mxu0 %v345
      %362 = vmatprep.subr.mxu0 0.0
      %363 = vmatpush1.msra.mxu0 %v346
      %364 = vmatprep.subr.mxu0 0.0
      %365 = vmatpush1.msra.mxu0 %v347
      %366 = vmatprep.subr.mxu0 0.0
      %367 = vmatpush1.msra.mxu0 %v348
      %368 = vmatprep.subr.mxu0 0.0
      %369 = vmatpush1.msra.mxu0 0.0
      %370 = vmatprep.subr.mxu0 0.0
      %371 = vmatpush1.msra.mxu0 0.0
      %372 = vmatprep.subr.mxu0 0.0
      %373 = vmatpush1.msra.mxu0 0.0
      %374 = vmatprep.subr.mxu0 0.0
      %375 = vmatpush1.msra.mxu0 0.0
      %376 = vmatprep.subr.mxu0 0.0
      %377 = vmatpush1.msra.mxu0 0.0
      %378 = vmatprep.subr.mxu0 0.0
      %379 = vmatpush1.msra.mxu0 0.0
      %380 = vmatprep.subr.mxu0 0.0
      %381 = vmatpush1.msra.mxu0 0.0
      %382 = vmatprep.subr.mxu0 0.0
      %383 = vmatpush1.msra.mxu0 0.0
      %384 = vmatprep.subr.mxu0 0.0
      %385 = vmatpush1.msra.mxu0 0.0
      %386 = vmatprep.subr.mxu0 0.0
      %387 = vmatpush1.msra.mxu0 0.0
      %388 = vmatprep.subr.mxu0 0.0
      %389 = vmatpush1.msra.mxu0 0.0
      %390 = vmatprep.subr.mxu0 0.0
      %391 = vmatpush1.msra.mxu0 0.0
      %392 = vmatprep.subr.mxu0 0.0
      %393 = vmatpush1.msra.mxu0 0.0
      %394 = vmatprep.subr.mxu0 0.0
      %395 = vmatpush1.msra.mxu0 0.0
      %396 = vmatprep.subr.mxu0 0.0
      %397 = vmatpush1.msra.mxu0 0.0
      %398 = vmatprep.subr.mxu0 0.0
      %399 = vmatpush1.msra.mxu0 0.0
      %400 = vmatprep.subr.mxu0 0.0
      %401 = vmatpush1.msra.mxu0 0.0
      %402 = vmatprep.subr.mxu0 0.0
      %403 = vmatpush1.msra.mxu0 0.0
      %404 = vmatprep.subr.mxu0 0.0
      %405 = vmatpush1.msra.mxu0 0.0
      %406 = vmatprep.subr.mxu0 0.0
      %407 = vmatpush1.msra.mxu0 0.0
      %408 = vmatprep.subr.mxu0 0.0
      %409 = vmatpush1.msra.mxu0 0.0
      %410 = vmatprep.subr.mxu0 0.0
      %411 = vmatpush1.msra.mxu0 0.0
      %412 = vmatprep.subr.mxu0 0.0
      %413 = vmatpush1.msra.mxu0 0.0
      %414 = vmatprep.subr.mxu0 0.0
      %415 = vmatpush1.msra.mxu0 0.0
      %416 = vmatprep.subr.mxu0 0.0
      %417 = vmatpush1.msra.mxu0 0.0
      %418 = vmatprep.subr.mxu0 0.0
      %419 = vmatpush1.msra.mxu0 0.0
      %420 = vmatprep.subr.mxu0 0.0
      %421 = vmatpush1.msra.mxu0 0.0
      %422 = vmatprep.subr.mxu0 0.0
      %423 = vmatpush1.msra.mxu0 0.0
      %424 = vmatprep.mubr.f32.mxu0 0.0
      %425 = vmatmul.mubr.f32.gmra.mrb[0].mxu0 %v358
      %v426 = vpop.f32.mrb[0].mxu0
      %v427 = vadd.f32 %v354, %v426
      %v428 = vpop.f32.mrb[0].mxu0
      %429 = vdwg.mxu0
      %v430 = vld [vmem:[%s337] sm:$0x1]
      %432 = vrot.lane.b32.xlu0 %v427, 96
      %v433 = vpop.permute.xlu0 %432
      %vm434 = vcmask 31744
      %v435 = vsel %vm434, %v427, 0
      %v437 = vsel %vm434, %v433, 0
      %439 = vmatprep.subr.mxu0 0.0
      %440 = vmatpush1.xpose.msra.mxu0 %v437
      %441 = vmatprep.subr.mxu0 0.0
      %442 = vmatpush1.xpose.msra.mxu0 0.0
      %443 = vmatprep.subr.mxu0 0.0
      %444 = vmatpush1.xpose.msra.mxu0 0.0
      %445 = vmatprep.subr.mxu0 0.0
      %446 = vmatpush1.xpose.msra.mxu0 0.0
      %447 = vmatprep.subr.mxu0 0.0
      %448 = vmatpush1.xpose.msra.mxu0 0.0
      %449 = vmatprep.subr.mxu0 0.0
      %450 = vmatpush1.xpose.msra.mxu0 0.0
      %451 = vmatprep.subr.mxu0 0.0
      %452 = vmatpush1.xpose.msra.mxu0 0.0
      %453 = vmatprep.subr.mxu0 0.0
      %454 = vmatpush1.xpose.msra.mxu0 0.0
      %455 = vmatprep.subr.mxu0 0.0
      %456 = vmatpush1.xpose.msra.mxu0 0.0
      %457 = vmatprep.subr.mxu0 0.0
      %458 = vmatpush1.xpose.msra.mxu0 0.0
      %459 = vmatprep.subr.mxu0 0.0
      %460 = vmatpush1.xpose.msra.mxu0 0.0
      %461 = vmatprep.subr.mxu0 0.0
      %462 = vmatpush1.xpose.msra.mxu0 0.0
      %463 = vmatprep.subr.mxu0 0.0
      %464 = vmatpush1.xpose.msra.mxu0 0.0
      %465 = vmatprep.subr.mxu0 0.0
      %466 = vmatpush1.xpose.msra.mxu0 0.0
      %467 = vmatprep.subr.mxu0 0.0
      %468 = vmatpush1.xpose.msra.mxu0 0.0
      %469 = vmatprep.subr.mxu0 0.0
      %470 = vmatpush1.xpose.msra.mxu0 0.0
      %471 = vmatprep.subr.mxu0 0.0
      %472 = vmatpush1.xpose.msra.mxu0 0.0
      %473 = vmatprep.subr.mxu0 0.0
      %474 = vmatpush1.xpose.msra.mxu0 0.0
      %475 = vmatprep.subr.mxu0 0.0
      %476 = vmatpush1.xpose.msra.mxu0 0.0
      %477 = vmatprep.subr.mxu0 0.0
      %478 = vmatpush1.xpose.msra.mxu0 0.0
      %479 = vmatprep.subr.mxu0 0.0
      %480 = vmatpush1.xpose.msra.mxu0 0.0
      %481 = vmatprep.subr.mxu0 0.0
      %482 = vmatpush1.xpose.msra.mxu0 0.0
      %483 = vmatprep.subr.mxu0 0.0
      %484 = vmatpush1.xpose.msra.mxu0 0.0
      %485 = vmatprep.subr.mxu0 0.0
      %486 = vmatpush1.xpose.msra.mxu0 0.0
      %487 = vmatprep.subr.mxu0 0.0
      %488 = vmatpush1.xpose.msra.mxu0 0.0
      %489 = vmatprep.subr.mxu0 0.0
      %490 = vmatpush1.xpose.msra.mxu0 0.0
      %491 = vmatprep.subr.mxu0 0.0
      %492 = vmatpush1.xpose.msra.mxu0 0.0
      %493 = vmatprep.subr.mxu0 0.0
      %494 = vmatpush1.xpose.msra.mxu0 0.0
      %495 = vmatprep.subr.mxu0 0.0
      %496 = vmatpush1.xpose.msra.mxu0 0.0
      %497 = vmatprep.subr.mxu0 0.0
      %498 = vmatpush1.xpose.msra.mxu0 0.0
      %499 = vmatprep.subr.mxu0 0.0
      %500 = vmatpush1.xpose.msra.mxu0 0.0
      %501 = vmatprep.subr.mxu0 0.0
      %502 = vmatpush1.xpose.msra.mxu0 0.0
      %503 = vmatprep.mubr.f32.mxu0 0.0
      %504 = vmatmul.mubr.f32.gmra.mrb[0].mxu0 %v435
      %v505 = vpop.f32.mrb[0].mxu0
      %v506 = vadd.f32 0.0, %v505
      %v507 = vpop.f32.mrb[0].mxu0
      %508 = vdwg.mxu0
      %v509 = vmul.f32 %v506, 0.5
      %v511 = vlaneseq
      %v512 = vshrl.u32 %v511, 7
      %v513 = vsub.s32 0, %v512
      %v514 = vrot.slane %v430, %v513
      %v516 = vadd.f32 %v509, %v514
      %vm517 = vcmask 64512
      %v518 = vsel %vm517, %v516, -inf
      %519 = vmax.xlane.f32.xlu0 %v518
      %v520 = vpop.xlane.xlu0 %519
      %v521 = vsub.f32 %v516, %v520
      %v522 = vmul.f32 %v521, 1.442695
      %v523 = vpow.pop %v522
      %v524 = vsel %vm517, %v523, 0.0
      %525 = vadd.xlane.f32.xlu0 %v524
      %v526 = vpop.xlane.xlu0 %525
      %v527 = vrcp.pop %v526
      %v528 = vmul.f32 %v523, %v527
      %529 = vrot.lane.b32.xlu0 %v427, 64
      %v530 = vpop.permute.xlu0 %529
      %v533 = vsel %vm517, %v528, 0
      %535 = vmatprep.subr.mxu0 0.0
      %536 = vmatpush1.msra.mxu0 %v530
      %537 = vmatprep.subr.mxu0 0.0
      %538 = vmatpush1.msra.mxu0 0.0
      %539 = vmatprep.subr.mxu0 0.0
      %540 = vmatpush1.msra.mxu0 0.0
      %541 = vmatprep.subr.mxu0 0.0
      %542 = vmatpush1.msra.mxu0 0.0
      %543 = vmatprep.subr.mxu0 0.0
      %544 = vmatpush1.msra.mxu0 0.0
      %545 = vmatprep.subr.mxu0 0.0
      %546 = vmatpush1.msra.mxu0 0.0
      %547 = vmatprep.subr.mxu0 0.0
      %548 = vmatpush1.msra.mxu0 0.0
      %549 = vmatprep.subr.mxu0 0.0
      %550 = vmatpush1.msra.mxu0 0.0
      %551 = vmatprep.subr.mxu0 0.0
      %552 = vmatpush1.msra.mxu0 0.0
      %553 = vmatprep.subr.mxu0 0.0
      %554 = vmatpush1.msra.mxu0 0.0
      %555 = vmatprep.subr.mxu0 0.0
      %556 = vmatpush1.msra.mxu0 0.0
      %557 = vmatprep.subr.mxu0 0.0
      %558 = vmatpush1.msra.mxu0 0.0
      %559 = vmatprep.subr.mxu0 0.0
      %560 = vmatpush1.msra.mxu0 0.0
      %561 = vmatprep.subr.mxu0 0.0
      %562 = vmatpush1.msra.mxu0 0.0
      %563 = vmatprep.subr.mxu0 0.0
      %564 = vmatpush1.msra.mxu0 0.0
      %565 = vmatprep.subr.mxu0 0.0
      %566 = vmatpush1.msra.mxu0 0.0
      %567 = vmatprep.subr.mxu0 0.0
      %568 = vmatpush1.msra.mxu0 0.0
      %569 = vmatprep.subr.mxu0 0.0
      %570 = vmatpush1.msra.mxu0 0.0
      %571 = vmatprep.subr.mxu0 0.0
      %572 = vmatpush1.msra.mxu0 0.0
      %573 = vmatprep.subr.mxu0 0.0
      %574 = vmatpush1.msra.mxu0 0.0
      %575 = vmatprep.subr.mxu0 0.0
      %576 = vmatpush1.msra.mxu0 0.0
      %577 = vmatprep.subr.mxu0 0.0
      %578 = vmatpush1.msra.mxu0 0.0
      %579 = vmatprep.subr.mxu0 0.0
      %580 = vmatpush1.msra.mxu0 0.0
      %581 = vmatprep.subr.mxu0 0.0
      %582 = vmatpush1.msra.mxu0 0.0
      %583 = vmatprep.subr.mxu0 0.0
      %584 = vmatpush1.msra.mxu0 0.0
      %585 = vmatprep.subr.mxu0 0.0
      %586 = vmatpush1.msra.mxu0 0.0
      %587 = vmatprep.subr.mxu0 0.0
      %588 = vmatpush1.msra.mxu0 0.0
      %589 = vmatprep.subr.mxu0 0.0
      %590 = vmatpush1.msra.mxu0 0.0
      %591 = vmatprep.subr.mxu0 0.0
      %592 = vmatpush1.msra.mxu0 0.0
      %593 = vmatprep.subr.mxu0 0.0
      %594 = vmatpush1.msra.mxu0 0.0
      %595 = vmatprep.subr.mxu0 0.0
      %596 = vmatpush1.msra.mxu0 0.0
      %597 = vmatprep.subr.mxu0 0.0
      %598 = vmatpush1.msra.mxu0 0.0
      %599 = vmatprep.mubr.f32.mxu0 0.0
      %600 = vmatmul.mubr.f32.gmra.mrb[0].mxu0 %v533
      %v601 = vpop.f32.mrb[0].mxu0
      %v602 = vadd.f32 0.0, %v601
      %v603 = vpop.f32.mrb[0].mxu0
      %604 = vdwg.mxu0
      %605 = vrot.lane.b32.xlu0 %v427, 124
      %v606 = vpop.permute.xlu0 %605
      %607 = vrot.lane.b32.xlu0 %v427, 92
      %v608 = vpop.permute.xlu0 %607
      %v609 = vsel %vm434, %v606, 0
      %v611 = vsel %vm434, %v608, 0
      %613 = vmatprep.subr.mxu0 0.0
      %614 = vmatpush1.xpose.msra.mxu0 %v611
      %615 = vmatprep.subr.mxu0 0.0
      %616 = vmatpush1.xpose.msra.mxu0 0.0
      %617 = vmatprep.subr.mxu0 0.0
      %618 = vmatpush1.xpose.msra.mxu0 0.0
      %619 = vmatprep.subr.mxu0 0.0
      %620 = vmatpush1.xpose.msra.mxu0 0.0
      %621 = vmatprep.subr.mxu0 0.0
      %622 = vmatpush1.xpose.msra.mxu0 0.0
      %623 = vmatprep.subr.mxu0 0.0
      %624 = vmatpush1.xpose.msra.mxu0 0.0
      %625 = vmatprep.subr.mxu0 0.0
      %626 = vmatpush1.xpose.msra.mxu0 0.0
      %627 = vmatprep.subr.mxu0 0.0
      %628 = vmatpush1.xpose.msra.mxu0 0.0
      %629 = vmatprep.subr.mxu0 0.0
      %630 = vmatpush1.xpose.msra.mxu0 0.0
      %631 = vmatprep.subr.mxu0 0.0
      %632 = vmatpush1.xpose.msra.mxu0 0.0
      %633 = vmatprep.subr.mxu0 0.0
      %634 = vmatpush1.xpose.msra.mxu0 0.0
      %635 = vmatprep.subr.mxu0 0.0
      %636 = vmatpush1.xpose.msra.mxu0 0.0
      %637 = vmatprep.subr.mxu0 0.0
      %638 = vmatpush1.xpose.msra.mxu0 0.0
      %639 = vmatprep.subr.mxu0 0.0
      %640 = vmatpush1.xpose.msra.mxu0 0.0
      %641 = vmatprep.subr.mxu0 0.0
      %642 = vmatpush1.xpose.msra.mxu0 0.0
      %643 = vmatprep.subr.mxu0 0.0
      %644 = vmatpush1.xpose.msra.mxu0 0.0
      %645 = vmatprep.subr.mxu0 0.0
      %646 = vmatpush1.xpose.msra.mxu0 0.0
      %647 = vmatprep.subr.mxu0 0.0
      %648 = vmatpush1.xpose.msra.mxu0 0.0
      %649 = vmatprep.subr.mxu0 0.0
      %650 = vmatpush1.xpose.msra.mxu0 0.0
      %651 = vmatprep.subr.mxu0 0.0
      %652 = vmatpush1.xpose.msra.mxu0 0.0
      %653 = vmatprep.subr.mxu0 0.0
      %654 = vmatpush1.xpose.msra.mxu0 0.0
      %655 = vmatprep.subr.mxu0 0.0
      %656 = vmatpush1.xpose.msra.mxu0 0.0
      %657 = vmatprep.subr.mxu0 0.0
      %658 = vmatpush1.xpose.msra.mxu0 0.0
      %659 = vmatprep.subr.mxu0 0.0
      %660 = vmatpush1.xpose.msra.mxu0 0.0
      %661 = vmatprep.subr.mxu0 0.0
      %662 = vmatpush1.xpose.msra.mxu0 0.0
      %663 = vmatprep.subr.mxu0 0.0
      %664 = vmatpush1.xpose.msra.mxu0 0.0
      %665 = vmatprep.subr.mxu0 0.0
      %666 = vmatpush1.xpose.msra.mxu0 0.0
      %667 = vmatprep.subr.mxu0 0.0
      %668 = vmatpush1.xpose.msra.mxu0 0.0
      %669 = vmatprep.subr.mxu0 0.0
      %670 = vmatpush1.xpose.msra.mxu0 0.0
      %671 = vmatprep.subr.mxu0 0.0
      %672 = vmatpush1.xpose.msra.mxu0 0.0
      %673 = vmatprep.subr.mxu0 0.0
      %674 = vmatpush1.xpose.msra.mxu0 0.0
      %675 = vmatprep.subr.mxu0 0.0
      %676 = vmatpush1.xpose.msra.mxu0 0.0
      %677 = vmatprep.mubr.f32.mxu0 0.0
      %678 = vmatmul.mubr.f32.gmra.mrb[0].mxu0 %v609
      %v679 = vpop.f32.mrb[0].mxu0
      %v680 = vadd.f32 0.0, %v679
      %v681 = vpop.f32.mrb[0].mxu0
      %682 = vdwg.mxu0
      %v683 = vmul.f32 %v680, 0.5
      %v684 = vadd.f32 %v683, %v514
      %v685 = vsel %vm517, %v684, -inf
      %686 = vmax.xlane.f32.xlu0 %v685
      %v687 = vpop.xlane.xlu0 %686
      %v688 = vsub.f32 %v684, %v687
      %v689 = vmul.f32 %v688, 1.442695
      %v690 = vpow.pop %v689
      %v691 = vsel %vm517, %v690, 0.0
      %692 = vadd.xlane.f32.xlu0 %v691
      %v693 = vpop.xlane.xlu0 %692
      %v694 = vrcp.pop %v693
      %v695 = vmul.f32 %v690, %v694
      %696 = vrot.lane.b32.xlu0 %v427, 60
      %v697 = vpop.permute.xlu0 %696
      %v700 = vsel %vm517, %v695, 0
      %702 = vmatprep.subr.mxu0 0.0
      %703 = vmatpush1.msra.mxu0 %v697
      %704 = vmatprep.subr.mxu0 0.0
      %705 = vmatpush1.msra.mxu0 0.0
      %706 = vmatprep.subr.mxu0 0.0
      %707 = vmatpush1.msra.mxu0 0.0
      %708 = vmatprep.subr.mxu0 0.0
      %709 = vmatpush1.msra.mxu0 0.0
      %710 = vmatprep.subr.mxu0 0.0
      %711 = vmatpush1.msra.mxu0 0.0
      %712 = vmatprep.subr.mxu0 0.0
      %713 = vmatpush1.msra.mxu0 0.0
      %714 = vmatprep.subr.mxu0 0.0
      %715 = vmatpush1.msra.mxu0 0.0
      %716 = vmatprep.subr.mxu0 0.0
      %717 = vmatpush1.msra.mxu0 0.0
      %718 = vmatprep.subr.mxu0 0.0
      %719 = vmatpush1.msra.mxu0 0.0
      %720 = vmatprep.subr.mxu0 0.0
      %721 = vmatpush1.msra.mxu0 0.0
      %722 = vmatprep.subr.mxu0 0.0
      %723 = vmatpush1.msra.mxu0 0.0
      %724 = vmatprep.subr.mxu0 0.0
      %725 = vmatpush1.msra.mxu0 0.0
      %726 = vmatprep.subr.mxu0 0.0
      %727 = vmatpush1.msra.mxu0 0.0
      %728 = vmatprep.subr.mxu0 0.0
      %729 = vmatpush1.msra.mxu0 0.0
      %730 = vmatprep.subr.mxu0 0.0
      %731 = vmatpush1.msra.mxu0 0.0
      %732 = vmatprep.subr.mxu0 0.0
      %733 = vmatpush1.msra.mxu0 0.0
      %734 = vmatprep.subr.mxu0 0.0
      %735 = vmatpush1.msra.mxu0 0.0
      %736 = vmatprep.subr.mxu0 0.0
      %737 = vmatpush1.msra.mxu0 0.0
      %738 = vmatprep.subr.mxu0 0.0
      %739 = vmatpush1.msra.mxu0 0.0
      %740 = vmatprep.subr.mxu0 0.0
      %741 = vmatpush1.msra.mxu0 0.0
      %742 = vmatprep.subr.mxu0 0.0
      %743 = vmatpush1.msra.mxu0 0.0
      %744 = vmatprep.subr.mxu0 0.0
      %745 = vmatpush1.msra.mxu0 0.0
      %746 = vmatprep.subr.mxu0 0.0
      %747 = vmatpush1.msra.mxu0 0.0
      %748 = vmatprep.subr.mxu0 0.0
      %749 = vmatpush1.msra.mxu0 0.0
      %750 = vmatprep.subr.mxu0 0.0
      %751 = vmatpush1.msra.mxu0 0.0
      %752 = vmatprep.subr.mxu0 0.0
      %753 = vmatpush1.msra.mxu0 0.0
      %754 = vmatprep.subr.mxu0 0.0
      %755 = vmatpush1.msra.mxu0 0.0
      %756 = vmatprep.subr.mxu0 0.0
      %757 = vmatpush1.msra.mxu0 0.0
      %758 = vmatprep.subr.mxu0 0.0
      %759 = vmatpush1.msra.mxu0 0.0
      %760 = vmatprep.subr.mxu0 0.0
      %761 = vmatpush1.msra.mxu0 0.0
      %762 = vmatprep.subr.mxu0 0.0
      %763 = vmatpush1.msra.mxu0 0.0
      %764 = vmatprep.subr.mxu0 0.0
      %765 = vmatpush1.msra.mxu0 0.0
      %766 = vmatprep.mubr.f32.mxu0 0.0
      %767 = vmatmul.mubr.f32.gmra.mrb[0].mxu0 %v700
      %v768 = vpop.f32.mrb[0].mxu0
      %v769 = vadd.f32 0.0, %v768
      %v770 = vpop.f32.mrb[0].mxu0
      %771 = vdwg.mxu0
      %772 = vrot.lane.b32.xlu0 %v427, 120
      %v773 = vpop.permute.xlu0 %772
      %774 = vrot.lane.b32.xlu0 %v427, 88
      %v775 = vpop.permute.xlu0 %774
      %v776 = vsel %vm434, %v773, 0
      %v778 = vsel %vm434, %v775, 0
      %780 = vmatprep.subr.mxu0 0.0
      %781 = vmatpush1.xpose.msra.mxu0 %v778
      %782 = vmatprep.subr.mxu0 0.0
      %783 = vmatpush1.xpose.msra.mxu0 0.0
      %784 = vmatprep.subr.mxu0 0.0
      %785 = vmatpush1.xpose.msra.mxu0 0.0
      %786 = vmatprep.subr.mxu0 0.0
      %787 = vmatpush1.xpose.msra.mxu0 0.0
      %788 = vmatprep.subr.mxu0 0.0
      %789 = vmatpush1.xpose.msra.mxu0 0.0
      %790 = vmatprep.subr.mxu0 0.0
      %791 = vmatpush1.xpose.msra.mxu0 0.0
      %792 = vmatprep.subr.mxu0 0.0
      %793 = vmatpush1.xpose.msra.mxu0 0.0
      %794 = vmatprep.subr.mxu0 0.0
      %795 = vmatpush1.xpose.msra.mxu0 0.0
      %796 = vmatprep.subr.mxu0 0.0
      %797 = vmatpush1.xpose.msra.mxu0 0.0
      %798 = vmatprep.subr.mxu0 0.0
      %799 = vmatpush1.xpose.msra.mxu0 0.0
      %800 = vmatprep.subr.mxu0 0.0
      %801 = vmatpush1.xpose.msra.mxu0 0.0
      %802 = vmatprep.subr.mxu0 0.0
      %803 = vmatpush1.xpose.msra.mxu0 0.0
      %804 = vmatprep.subr.mxu0 0.0
      %805 = vmatpush1.xpose.msra.mxu0 0.0
      %806 = vmatprep.subr.mxu0 0.0
      %807 = vmatpush1.xpose.msra.mxu0 0.0
      %808 = vmatprep.subr.mxu0 0.0
      %809 = vmatpush1.xpose.msra.mxu0 0.0
      %810 = vmatprep.subr.mxu0 0.0
      %811 = vmatpush1.xpose.msra.mxu0 0.0
      %812 = vmatprep.subr.mxu0 0.0
      %813 = vmatpush1.xpose.msra.mxu0 0.0
      %814 = vmatprep.subr.mxu0 0.0
      %815 = vmatpush1.xpose.msra.mxu0 0.0
      %816 = vmatprep.subr.mxu0 0.0
      %817 = vmatpush1.xpose.msra.mxu0 0.0
      %818 = vmatprep.subr.mxu0 0.0
      %819 = vmatpush1.xpose.msra.mxu0 0.0
      %820 = vmatprep.subr.mxu0 0.0
      %821 = vmatpush1.xpose.msra.mxu0 0.0
      %822 = vmatprep.subr.mxu0 0.0
      %823 = vmatpush1.xpose.msra.mxu0 0.0
      %824 = vmatprep.subr.mxu0 0.0
      %825 = vmatpush1.xpose.msra.mxu0 0.0
      %826 = vmatprep.subr.mxu0 0.0
      %827 = vmatpush1.xpose.msra.mxu0 0.0
      %828 = vmatprep.subr.mxu0 0.0
      %829 = vmatpush1.xpose.msra.mxu0 0.0
      %830 = vmatprep.subr.mxu0 0.0
      %831 = vmatpush1.xpose.msra.mxu0 0.0
      %832 = vmatprep.subr.mxu0 0.0
      %833 = vmatpush1.xpose.msra.mxu0 0.0
      %834 = vmatprep.subr.mxu0 0.0
      %835 = vmatpush1.xpose.msra.mxu0 0.0
      %836 = vmatprep.subr.mxu0 0.0
      %837 = vmatpush1.xpose.msra.mxu0 0.0
      %838 = vmatprep.subr.mxu0 0.0
      %839 = vmatpush1.xpose.msra.mxu0 0.0
      %840 = vmatprep.subr.mxu0 0.0
      %841 = vmatpush1.xpose.msra.mxu0 0.0
      %842 = vmatprep.subr.mxu0 0.0
      %843 = vmatpush1.xpose.msra.mxu0 0.0
      %844 = vmatprep.mubr.f32.mxu0 0.0
      %845 = vmatmul.mubr.f32.gmra.mrb[0].mxu0 %v776
      %v846 = vpop.f32.mrb[0].mxu0
      %v847 = vadd.f32 0.0, %v846
      %v848 = vpop.f32.mrb[0].mxu0
      %849 = vdwg.mxu0
      %v850 = vmul.f32 %v847, 0.5
      %v851 = vadd.f32 %v850, %v514
      %v852 = vsel %vm517, %v851, -inf
      %853 = vmax.xlane.f32.xlu0 %v852
      %v854 = vpop.xlane.xlu0 %853
      %v855 = vsub.f32 %v851, %v854
      %v856 = vmul.f32 %v855, 1.442695
      %v857 = vpow.pop %v856
      %v858 = vsel %vm517, %v857, 0.0
      %859 = vadd.xlane.f32.xlu0 %v858
      %v860 = vpop.xlane.xlu0 %859
      %v861 = vrcp.pop %v860
      %v862 = vmul.f32 %v857, %v861
      %863 = vrot.lane.b32.xlu0 %v427, 56
      %v864 = vpop.permute.xlu0 %863
      %v867 = vsel %vm517, %v862, 0
      %869 = vmatprep.subr.mxu0 0.0
      %870 = vmatpush1.msra.mxu0 %v864
      %871 = vmatprep.subr.mxu0 0.0
      %872 = vmatpush1.msra.mxu0 0.0
      %873 = vmatprep.subr.mxu0 0.0
      %874 = vmatpush1.msra.mxu0 0.0
      %875 = vmatprep.subr.mxu0 0.0
      %876 = vmatpush1.msra.mxu0 0.0
      %877 = vmatprep.subr.mxu0 0.0
      %878 = vmatpush1.msra.mxu0 0.0
      %879 = vmatprep.subr.mxu0 0.0
      %880 = vmatpush1.msra.mxu0 0.0
      %881 = vmatprep.subr.mxu0 0.0
      %882 = vmatpush1.msra.mxu0 0.0
      %883 = vmatprep.subr.mxu0 0.0
      %884 = vmatpush1.msra.mxu0 0.0
      %885 = vmatprep.subr.mxu0 0.0
      %886 = vmatpush1.msra.mxu0 0.0
      %887 = vmatprep.subr.mxu0 0.0
      %888 = vmatpush1.msra.mxu0 0.0
      %889 = vmatprep.subr.mxu0 0.0
      %890 = vmatpush1.msra.mxu0 0.0
      %891 = vmatprep.subr.mxu0 0.0
      %892 = vmatpush1.msra.mxu0 0.0
      %893 = vmatprep.subr.mxu0 0.0
      %894 = vmatpush1.msra.mxu0 0.0
      %895 = vmatprep.subr.mxu0 0.0
      %896 = vmatpush1.msra.mxu0 0.0
      %897 = vmatprep.subr.mxu0 0.0
      %898 = vmatpush1.msra.mxu0 0.0
      %899 = vmatprep.subr.mxu0 0.0
      %900 = vmatpush1.msra.mxu0 0.0
      %901 = vmatprep.subr.mxu0 0.0
      %902 = vmatpush1.msra.mxu0 0.0
      %903 = vmatprep.subr.mxu0 0.0
      %904 = vmatpush1.msra.mxu0 0.0
      %905 = vmatprep.subr.mxu0 0.0
      %906 = vmatpush1.msra.mxu0 0.0
      %907 = vmatprep.subr.mxu0 0.0
      %908 = vmatpush1.msra.mxu0 0.0
      %909 = vmatprep.subr.mxu0 0.0
      %910 = vmatpush1.msra.mxu0 0.0
      %911 = vmatprep.subr.mxu0 0.0
      %912 = vmatpush1.msra.mxu0 0.0
      %913 = vmatprep.subr.mxu0 0.0
      %914 = vmatpush1.msra.mxu0 0.0
      %915 = vmatprep.subr.mxu0 0.0
      %916 = vmatpush1.msra.mxu0 0.0
      %917 = vmatprep.subr.mxu0 0.0
      %918 = vmatpush1.msra.mxu0 0.0
      %919 = vmatprep.subr.mxu0 0.0
      %920 = vmatpush1.msra.mxu0 0.0
      %921 = vmatprep.subr.mxu0 0.0
      %922 = vmatpush1.msra.mxu0 0.0
      %923 = vmatprep.subr.mxu0 0.0
      %924 = vmatpush1.msra.mxu0 0.0
      %925 = vmatprep.subr.mxu0 0.0
      %926 = vmatpush1.msra.mxu0 0.0
      %927 = vmatprep.subr.mxu0 0.0
      %928 = vmatpush1.msra.mxu0 0.0
      %929 = vmatprep.subr.mxu0 0.0
      %930 = vmatpush1.msra.mxu0 0.0
      %931 = vmatprep.subr.mxu0 0.0
      %932 = vmatpush1.msra.mxu0 0.0
      %933 = vmatprep.mubr.f32.mxu0 0.0
      %934 = vmatmul.mubr.f32.gmra.mrb[0].mxu0 %v867
      %v935 = vpop.f32.mrb[0].mxu0
      %v936 = vadd.f32 0.0, %v935
      %v937 = vpop.f32.mrb[0].mxu0
      %938 = vdwg.mxu0
      %939 = vrot.lane.b32.xlu0 %v427, 116
      %v940 = vpop.permute.xlu0 %939
      %941 = vrot.lane.b32.xlu0 %v427, 84
      %v942 = vpop.permute.xlu0 %941
      %v943 = vsel %vm434, %v940, 0
      %v945 = vsel %vm434, %v942, 0
      %947 = vmatprep.subr.mxu0 0.0
      %948 = vmatpush1.xpose.msra.mxu0 %v945
      %949 = vmatprep.subr.mxu0 0.0
      %950 = vmatpush1.xpose.msra.mxu0 0.0
      %951 = vmatprep.subr.mxu0 0.0
      %952 = vmatpush1.xpose.msra.mxu0 0.0
      %953 = vmatprep.subr.mxu0 0.0
      %954 = vmatpush1.xpose.msra.mxu0 0.0
      %955 = vmatprep.subr.mxu0 0.0
      %956 = vmatpush1.xpose.msra.mxu0 0.0
      %957 = vmatprep.subr.mxu0 0.0
      %958 = vmatpush1.xpose.msra.mxu0 0.0
      %959 = vmatprep.subr.mxu0 0.0
      %960 = vmatpush1.xpose.msra.mxu0 0.0
      %961 = vmatprep.subr.mxu0 0.0
      %962 = vmatpush1.xpose.msra.mxu0 0.0
      %963 = vmatprep.subr.mxu0 0.0
      %964 = vmatpush1.xpose.msra.mxu0 0.0
      %965 = vmatprep.subr.mxu0 0.0
      %966 = vmatpush1.xpose.msra.mxu0 0.0
      %967 = vmatprep.subr.mxu0 0.0
      %968 = vmatpush1.xpose.msra.mxu0 0.0
      %969 = vmatprep.subr.mxu0 0.0
      %970 = vmatpush1.xpose.msra.mxu0 0.0
      %971 = vmatprep.subr.mxu0 0.0
      %972 = vmatpush1.xpose.msra.mxu0 0.0
      %973 = vmatprep.subr.mxu0 0.0
      %974 = vmatpush1.xpose.msra.mxu0 0.0
      %975 = vmatprep.subr.mxu0 0.0
      %976 = vmatpush1.xpose.msra.mxu0 0.0
      %977 = vmatprep.subr.mxu0 0.0
      %978 = vmatpush1.xpose.msra.mxu0 0.0
      %979 = vmatprep.subr.mxu0 0.0
      %980 = vmatpush1.xpose.msra.mxu0 0.0
      %981 = vmatprep.subr.mxu0 0.0
      %982 = vmatpush1.xpose.msra.mxu0 0.0
      %983 = vmatprep.subr.mxu0 0.0
      %984 = vmatpush1.xpose.msra.mxu0 0.0
      %985 = vmatprep.subr.mxu0 0.0
      %986 = vmatpush1.xpose.msra.mxu0 0.0
      %987 = vmatprep.subr.mxu0 0.0
      %988 = vmatpush1.xpose.msra.mxu0 0.0
      %989 = vmatprep.subr.mxu0 0.0
      %990 = vmatpush1.xpose.msra.mxu0 0.0
      %991 = vmatprep.subr.mxu0 0.0
      %992 = vmatpush1.xpose.msra.mxu0 0.0
      %993 = vmatprep.subr.mxu0 0.0
      %994 = vmatpush1.xpose.msra.mxu0 0.0
      %995 = vmatprep.subr.mxu0 0.0
      %996 = vmatpush1.xpose.msra.mxu0 0.0
      %997 = vmatprep.subr.mxu0 0.0
      %998 = vmatpush1.xpose.msra.mxu0 0.0
      %999 = vmatprep.subr.mxu0 0.0
      %1000 = vmatpush1.xpose.msra.mxu0 0.0
      %1001 = vmatprep.subr.mxu0 0.0
      %1002 = vmatpush1.xpose.msra.mxu0 0.0
      %1003 = vmatprep.subr.mxu0 0.0
      %1004 = vmatpush1.xpose.msra.mxu0 0.0
      %1005 = vmatprep.subr.mxu0 0.0
      %1006 = vmatpush1.xpose.msra.mxu0 0.0
      %1007 = vmatprep.subr.mxu0 0.0
      %1008 = vmatpush1.xpose.msra.mxu0 0.0
      %1009 = vmatprep.subr.mxu0 0.0
      %1010 = vmatpush1.xpose.msra.mxu0 0.0
      %1011 = vmatprep.mubr.f32.mxu0 0.0
      %1012 = vmatmul.mubr.f32.gmra.mrb[0].mxu0 %v943
      %v1013 = vpop.f32.mrb[0].mxu0
      %v1014 = vadd.f32 0.0, %v1013
      %v1015 = vpop.f32.mrb[0].mxu0
      %1016 = vdwg.mxu0
      %v1017 = vmul.f32 %v1014, 0.5
      %v1018 = vadd.f32 %v1017, %v514
      %v1019 = vsel %vm517, %v1018, -inf
      %1020 = vmax.xlane.f32.xlu0 %v1019
      %v1021 = vpop.xlane.xlu0 %1020
      %v1022 = vsub.f32 %v1018, %v1021
      %v1023 = vmul.f32 %v1022, 1.442695
      %v1024 = vpow.pop %v1023
      %v1025 = vsel %vm517, %v1024, 0.0
      %1026 = vadd.xlane.f32.xlu0 %v1025
      %v1027 = vpop.xlane.xlu0 %1026
      %v1028 = vrcp.pop %v1027
      %v1029 = vmul.f32 %v1024, %v1028
      %1030 = vrot.lane.b32.xlu0 %v427, 52
      %v1031 = vpop.permute.xlu0 %1030
      %v1034 = vsel %vm517, %v1029, 0
      %1036 = vmatprep.subr.mxu0 0.0
      %1037 = vmatpush1.msra.mxu0 %v1031
      %1038 = vmatprep.subr.mxu0 0.0
      %1039 = vmatpush1.msra.mxu0 0.0
      %1040 = vmatprep.subr.mxu0 0.0
      %1041 = vmatpush1.msra.mxu0 0.0
      %1042 = vmatprep.subr.mxu0 0.0
      %1043 = vmatpush1.msra.mxu0 0.0
      %1044 = vmatprep.subr.mxu0 0.0
      %1045 = vmatpush1.msra.mxu0 0.0
      %1046 = vmatprep.subr.mxu0 0.0
      %1047 = vmatpush1.msra.mxu0 0.0
      %1048 = vmatprep.subr.mxu0 0.0
      %1049 = vmatpush1.msra.mxu0 0.0
      %1050 = vmatprep.subr.mxu0 0.0
      %1051 = vmatpush1.msra.mxu0 0.0
      %1052 = vmatprep.subr.mxu0 0.0
      %1053 = vmatpush1.msra.mxu0 0.0
      %1054 = vmatprep.subr.mxu0 0.0
      %1055 = vmatpush1.msra.mxu0 0.0
      %1056 = vmatprep.subr.mxu0 0.0
      %1057 = vmatpush1.msra.mxu0 0.0
      %1058 = vmatprep.subr.mxu0 0.0
      %1059 = vmatpush1.msra.mxu0 0.0
      %1060 = vmatprep.subr.mxu0 0.0
      %1061 = vmatpush1.msra.mxu0 0.0
      %1062 = vmatprep.subr.mxu0 0.0
      %1063 = vmatpush1.msra.mxu0 0.0
      %1064 = vmatprep.subr.mxu0 0.0
      %1065 = vmatpush1.msra.mxu0 0.0
      %1066 = vmatprep.subr.mxu0 0.0
      %1067 = vmatpush1.msra.mxu0 0.0
      %1068 = vmatprep.subr.mxu0 0.0
      %1069 = vmatpush1.msra.mxu0 0.0
      %1070 = vmatprep.subr.mxu0 0.0
      %1071 = vmatpush1.msra.mxu0 0.0
      %1072 = vmatprep.subr.mxu0 0.0
      %1073 = vmatpush1.msra.mxu0 0.0
      %1074 = vmatprep.subr.mxu0 0.0
      %1075 = vmatpush1.msra.mxu0 0.0
      %1076 = vmatprep.subr.mxu0 0.0
      %1077 = vmatpush1.msra.mxu0 0.0
      %1078 = vmatprep.subr.mxu0 0.0
      %1079 = vmatpush1.msra.mxu0 0.0
      %1080 = vmatprep.subr.mxu0 0.0
      %1081 = vmatpush1.msra.mxu0 0.0
      %1082 = vmatprep.subr.mxu0 0.0
      %1083 = vmatpush1.msra.mxu0 0.0
      %1084 = vmatprep.subr.mxu0 0.0
      %1085 = vmatpush1.msra.mxu0 0.0
      %1086 = vmatprep.subr.mxu0 0.0
      %1087 = vmatpush1.msra.mxu0 0.0
      %1088 = vmatprep.subr.mxu0 0.0
      %1089 = vmatpush1.msra.mxu0 0.0
      %1090 = vmatprep.subr.mxu0 0.0
      %1091 = vmatpush1.msra.mxu0 0.0
      %1092 = vmatprep.subr.mxu0 0.0
      %1093 = vmatpush1.msra.mxu0 0.0
      %1094 = vmatprep.subr.mxu0 0.0
      %1095 = vmatpush1.msra.mxu0 0.0
      %1096 = vmatprep.subr.mxu0 0.0
      %1097 = vmatpush1.msra.mxu0 0.0
      %1098 = vmatprep.subr.mxu0 0.0
      %1099 = vmatpush1.msra.mxu0 0.0
      %1100 = vmatprep.mubr.f32.mxu0 0.0
      %1101 = vmatmul.mubr.f32.gmra.mrb[0].mxu0 %v1034
      %v1102 = vpop.f32.mrb[0].mxu0
      %v1103 = vadd.f32 0.0, %v1102
      %v1104 = vpop.f32.mrb[0].mxu0
      %1105 = vdwg.mxu0
      %1106 = vrot.lane.b32.xlu0 %v427, 112
      %v1107 = vpop.permute.xlu0 %1106
      %1108 = vrot.lane.b32.xlu0 %v427, 80
      %v1109 = vpop.permute.xlu0 %1108
      %v1110 = vsel %vm434, %v1107, 0
      %v1112 = vsel %vm434, %v1109, 0
      %1114 = vmatprep.subr.mxu0 0.0
      %1115 = vmatpush1.xpose.msra.mxu0 %v1112
      %1116 = vmatprep.subr.mxu0 0.0
      %1117 = vmatpush1.xpose.msra.mxu0 0.0
      %1118 = vmatprep.subr.mxu0 0.0
      %1119 = vmatpush1.xpose.msra.mxu0 0.0
      %1120 = vmatprep.subr.mxu0 0.0
      %1121 = vmatpush1.xpose.msra.mxu0 0.0
      %1122 = vmatprep.subr.mxu0 0.0
      %1123 = vmatpush1.xpose.msra.mxu0 0.0
      %1124 = vmatprep.subr.mxu0 0.0
      %1125 = vmatpush1.xpose.msra.mxu0 0.0
      %1126 = vmatprep.subr.mxu0 0.0
      %1127 = vmatpush1.xpose.msra.mxu0 0.0
      %1128 = vmatprep.subr.mxu0 0.0
      %1129 = vmatpush1.xpose.msra.mxu0 0.0
      %1130 = vmatprep.subr.mxu0 0.0
      %1131 = vmatpush1.xpose.msra.mxu0 0.0
      %1132 = vmatprep.subr.mxu0 0.0
      %1133 = vmatpush1.xpose.msra.mxu0 0.0
      %1134 = vmatprep.subr.mxu0 0.0
      %1135 = vmatpush1.xpose.msra.mxu0 0.0
      %1136 = vmatprep.subr.mxu0 0.0
      %1137 = vmatpush1.xpose.msra.mxu0 0.0
      %1138 = vmatprep.subr.mxu0 0.0
      %1139 = vmatpush1.xpose.msra.mxu0 0.0
      %1140 = vmatprep.subr.mxu0 0.0
      %1141 = vmatpush1.xpose.msra.mxu0 0.0
      %1142 = vmatprep.subr.mxu0 0.0
      %1143 = vmatpush1.xpose.msra.mxu0 0.0
      %1144 = vmatprep.subr.mxu0 0.0
      %1145 = vmatpush1.xpose.msra.mxu0 0.0
      %1146 = vmatprep.subr.mxu0 0.0
      %1147 = vmatpush1.xpose.msra.mxu0 0.0
      %1148 = vmatprep.subr.mxu0 0.0
      %1149 = vmatpush1.xpose.msra.mxu0 0.0
      %1150 = vmatprep.subr.mxu0 0.0
      %1151 = vmatpush1.xpose.msra.mxu0 0.0
      %1152 = vmatprep.subr.mxu0 0.0
      %1153 = vmatpush1.xpose.msra.mxu0 0.0
      %1154 = vmatprep.subr.mxu0 0.0
      %1155 = vmatpush1.xpose.msra.mxu0 0.0
      %1156 = vmatprep.subr.mxu0 0.0
      %1157 = vmatpush1.xpose.msra.mxu0 0.0
      %1158 = vmatprep.subr.mxu0 0.0
      %1159 = vmatpush1.xpose.msra.mxu0 0.0
      %1160 = vmatprep.subr.mxu0 0.0
      %1161 = vmatpush1.xpose.msra.mxu0 0.0
      %1162 = vmatprep.subr.mxu0 0.0
      %1163 = vmatpush1.xpose.msra.mxu0 0.0
      %1164 = vmatprep.subr.mxu0 0.0
      %1165 = vmatpush1.xpose.msra.mxu0 0.0
      %1166 = vmatprep.subr.mxu0 0.0
      %1167 = vmatpush1.xpose.msra.mxu0 0.0
      %1168 = vmatprep.subr.mxu0 0.0
      %1169 = vmatpush1.xpose.msra.mxu0 0.0
      %1170 = vmatprep.subr.mxu0 0.0
      %1171 = vmatpush1.xpose.msra.mxu0 0.0
      %1172 = vmatprep.subr.mxu0 0.0
      %1173 = vmatpush1.xpose.msra.mxu0 0.0
      %1174 = vmatprep.subr.mxu0 0.0
      %1175 = vmatpush1.xpose.msra.mxu0 0.0
      %1176 = vmatprep.subr.mxu0 0.0
      %1177 = vmatpush1.xpose.msra.mxu0 0.0
      %1178 = vmatprep.mubr.f32.mxu0 0.0
      %1179 = vmatmul.mubr.f32.gmra.mrb[0].mxu0 %v1110
      %v1180 = vpop.f32.mrb[0].mxu0
      %v1181 = vadd.f32 0.0, %v1180
      %v1182 = vpop.f32.mrb[0].mxu0
      %1183 = vdwg.mxu0
      %v1184 = vmul.f32 %v1181, 0.5
      %v1185 = vadd.f32 %v1184, %v514
      %v1186 = vsel %vm517, %v1185, -inf
      %1187 = vmax.xlane.f32.xlu0 %v1186
      %v1188 = vpop.xlane.xlu0 %1187
      %v1189 = vsub.f32 %v1185, %v1188
      %v1190 = vmul.f32 %v1189, 1.442695
      %v1191 = vpow.pop %v1190
      %v1192 = vsel %vm517, %v1191, 0.0
      %1193 = vadd.xlane.f32.xlu0 %v1192
      %v1194 = vpop.xlane.xlu0 %1193
      %v1195 = vrcp.pop %v1194
      %v1196 = vmul.f32 %v1191, %v1195
      %1197 = vrot.lane.b32.xlu0 %v427, 48
      %v1198 = vpop.permute.xlu0 %1197
      %v1201 = vsel %vm517, %v1196, 0
      %1203 = vmatprep.subr.mxu0 0.0
      %1204 = vmatpush1.msra.mxu0 %v1198
      %1205 = vmatprep.subr.mxu0 0.0
      %1206 = vmatpush1.msra.mxu0 0.0
      %1207 = vmatprep.subr.mxu0 0.0
      %1208 = vmatpush1.msra.mxu0 0.0
      %1209 = vmatprep.subr.mxu0 0.0
      %1210 = vmatpush1.msra.mxu0 0.0
      %1211 = vmatprep.subr.mxu0 0.0
      %1212 = vmatpush1.msra.mxu0 0.0
      %1213 = vmatprep.subr.mxu0 0.0
      %1214 = vmatpush1.msra.mxu0 0.0
      %1215 = vmatprep.subr.mxu0 0.0
      %1216 = vmatpush1.msra.mxu0 0.0
      %1217 = vmatprep.subr.mxu0 0.0
      %1218 = vmatpush1.msra.mxu0 0.0
      %1219 = vmatprep.subr.mxu0 0.0
      %1220 = vmatpush1.msra.mxu0 0.0
      %1221 = vmatprep.subr.mxu0 0.0
      %1222 = vmatpush1.msra.mxu0 0.0
      %1223 = vmatprep.subr.mxu0 0.0
      %1224 = vmatpush1.msra.mxu0 0.0
      %1225 = vmatprep.subr.mxu0 0.0
      %1226 = vmatpush1.msra.mxu0 0.0
      %1227 = vmatprep.subr.mxu0 0.0
      %1228 = vmatpush1.msra.mxu0 0.0
      %1229 = vmatprep.subr.mxu0 0.0
      %1230 = vmatpush1.msra.mxu0 0.0
      %1231 = vmatprep.subr.mxu0 0.0
      %1232 = vmatpush1.msra.mxu0 0.0
      %1233 = vmatprep.subr.mxu0 0.0
      %1234 = vmatpush1.msra.mxu0 0.0
      %1235 = vmatprep.subr.mxu0 0.0
      %1236 = vmatpush1.msra.mxu0 0.0
      %1237 = vmatprep.subr.mxu0 0.0
      %1238 = vmatpush1.msra.mxu0 0.0
      %1239 = vmatprep.subr.mxu0 0.0
      %1240 = vmatpush1.msra.mxu0 0.0
      %1241 = vmatprep.subr.mxu0 0.0
      %1242 = vmatpush1.msra.mxu0 0.0
      %1243 = vmatprep.subr.mxu0 0.0
      %1244 = vmatpush1.msra.mxu0 0.0
      %1245 = vmatprep.subr.mxu0 0.0
      %1246 = vmatpush1.msra.mxu0 0.0
      %1247 = vmatprep.subr.mxu0 0.0
      %1248 = vmatpush1.msra.mxu0 0.0
      %1249 = vmatprep.subr.mxu0 0.0
      %1250 = vmatpush1.msra.mxu0 0.0
      %1251 = vmatprep.subr.mxu0 0.0
      %1252 = vmatpush1.msra.mxu0 0.0
      %1253 = vmatprep.subr.mxu0 0.0
      %1254 = vmatpush1.msra.mxu0 0.0
      %1255 = vmatprep.subr.mxu0 0.0
      %1256 = vmatpush1.msra.mxu0 0.0
      %1257 = vmatprep.subr.mxu0 0.0
      %1258 = vmatpush1.msra.mxu0 0.0
      %1259 = vmatprep.subr.mxu0 0.0
      %1260 = vmatpush1.msra.mxu0 0.0
      %1261 = vmatprep.subr.mxu0 0.0
      %1262 = vmatpush1.msra.mxu0 0.0
      %1263 = vmatprep.subr.mxu0 0.0
      %1264 = vmatpush1.msra.mxu0 0.0
      %1265 = vmatprep.subr.mxu0 0.0
      %1266 = vmatpush1.msra.mxu0 0.0
      %1267 = vmatprep.mubr.f32.mxu0 0.0
      %1268 = vmatmul.mubr.f32.gmra.mrb[0].mxu0 %v1201
      %v1269 = vpop.f32.mrb[0].mxu0
      %v1270 = vadd.f32 0.0, %v1269
      %v1271 = vpop.f32.mrb[0].mxu0
      %1272 = vdwg.mxu0
      %1273 = vrot.lane.b32.xlu0 %v427, 108
      %v1274 = vpop.permute.xlu0 %1273
      %1275 = vrot.lane.b32.xlu0 %v427, 76
      %v1276 = vpop.permute.xlu0 %1275
      %v1277 = vsel %vm434, %v1274, 0
      %v1279 = vsel %vm434, %v1276, 0
      %1281 = vmatprep.subr.mxu0 0.0
      %1282 = vmatpush1.xpose.msra.mxu0 %v1279
      %1283 = vmatprep.subr.mxu0 0.0
      %1284 = vmatpush1.xpose.msra.mxu0 0.0
      %1285 = vmatprep.subr.mxu0 0.0
      %1286 = vmatpush1.xpose.msra.mxu0 0.0
      %1287 = vmatprep.subr.mxu0 0.0
      %1288 = vmatpush1.xpose.msra.mxu0 0.0
      %1289 = vmatprep.subr.mxu0 0.0
      %1290 = vmatpush1.xpose.msra.mxu0 0.0
      %1291 = vmatprep.subr.mxu0 0.0
      %1292 = vmatpush1.xpose.msra.mxu0 0.0
      %1293 = vmatprep.subr.mxu0 0.0
      %1294 = vmatpush1.xpose.msra.mxu0 0.0
      %1295 = vmatprep.subr.mxu0 0.0
      %1296 = vmatpush1.xpose.msra.mxu0 0.0
      %1297 = vmatprep.subr.mxu0 0.0
      %1298 = vmatpush1.xpose.msra.mxu0 0.0
      %1299 = vmatprep.subr.mxu0 0.0
      %1300 = vmatpush1.xpose.msra.mxu0 0.0
      %1301 = vmatprep.subr.mxu0 0.0
      %1302 = vmatpush1.xpose.msra.mxu0 0.0
      %1303 = vmatprep.subr.mxu0 0.0
      %1304 = vmatpush1.xpose.msra.mxu0 0.0
      %1305 = vmatprep.subr.mxu0 0.0
      %1306 = vmatpush1.xpose.msra.mxu0 0.0
      %1307 = vmatprep.subr.mxu0 0.0
      %1308 = vmatpush1.xpose.msra.mxu0 0.0
      %1309 = vmatprep.subr.mxu0 0.0
      %1310 = vmatpush1.xpose.msra.mxu0 0.0
      %1311 = vmatprep.subr.mxu0 0.0
      %1312 = vmatpush1.xpose.msra.mxu0 0.0
      %1313 = vmatprep.subr.mxu0 0.0
      %1314 = vmatpush1.xpose.msra.mxu0 0.0
      %1315 = vmatprep.subr.mxu0 0.0
      %1316 = vmatpush1.xpose.msra.mxu0 0.0
      %1317 = vmatprep.subr.mxu0 0.0
      %1318 = vmatpush1.xpose.msra.mxu0 0.0
      %1319 = vmatprep.subr.mxu0 0.0
      %1320 = vmatpush1.xpose.msra.mxu0 0.0
      %1321 = vmatprep.subr.mxu0 0.0
      %1322 = vmatpush1.xpose.msra.mxu0 0.0
      %1323 = vmatprep.subr.mxu0 0.0
      %1324 = vmatpush1.xpose.msra.mxu0 0.0
      %1325 = vmatprep.subr.mxu0 0.0
      %1326 = vmatpush1.xpose.msra.mxu0 0.0
      %1327 = vmatprep.subr.mxu0 0.0
      %1328 = vmatpush1.xpose.msra.mxu0 0.0
      %1329 = vmatprep.subr.mxu0 0.0
      %1330 = vmatpush1.xpose.msra.mxu0 0.0
      %1331 = vmatprep.subr.mxu0 0.0
      %1332 = vmatpush1.xpose.msra.mxu0 0.0
      %1333 = vmatprep.subr.mxu0 0.0
      %1334 = vmatpush1.xpose.msra.mxu0 0.0
      %1335 = vmatprep.subr.mxu0 0.0
      %1336 = vmatpush1.xpose.msra.mxu0 0.0
      %1337 = vmatprep.subr.mxu0 0.0
      %1338 = vmatpush1.xpose.msra.mxu0 0.0
      %1339 = vmatprep.subr.mxu0 0.0
      %1340 = vmatpush1.xpose.msra.mxu0 0.0
      %1341 = vmatprep.subr.mxu0 0.0
      %1342 = vmatpush1.xpose.msra.mxu0 0.0
      %1343 = vmatprep.subr.mxu0 0.0
      %1344 = vmatpush1.xpose.msra.mxu0 0.0
      %1345 = vmatprep.mubr.f32.mxu0 0.0
      %1346 = vmatmul.mubr.f32.gmra.mrb[0].mxu0 %v1277
      %v1347 = vpop.f32.mrb[0].mxu0
      %v1348 = vadd.f32 0.0, %v1347
      %v1349 = vpop.f32.mrb[0].mxu0
      %1350 = vdwg.mxu0
      %v1351 = vmul.f32 %v1348, 0.5
      %v1352 = vadd.f32 %v1351, %v514
      %v1353 = vsel %vm517, %v1352, -inf
      %1354 = vmax.xlane.f32.xlu0 %v1353
      %v1355 = vpop.xlane.xlu0 %1354
      %v1356 = vsub.f32 %v1352, %v1355
      %v1357 = vmul.f32 %v1356, 1.442695
      %v1358 = vpow.pop %v1357
      %v1359 = vsel %vm517, %v1358, 0.0
      %1360 = vadd.xlane.f32.xlu0 %v1359
      %v1361 = vpop.xlane.xlu0 %1360
      %v1362 = vrcp.pop %v1361
      %v1363 = vmul.f32 %v1358, %v1362
      %1364 = vrot.lane.b32.xlu0 %v427, 44
      %v1365 = vpop.permute.xlu0 %1364
      %v1368 = vsel %vm517, %v1363, 0
      %1370 = vmatprep.subr.mxu0 0.0
      %1371 = vmatpush1.msra.mxu0 %v1365
      %1372 = vmatprep.subr.mxu0 0.0
      %1373 = vmatpush1.msra.mxu0 0.0
      %1374 = vmatprep.subr.mxu0 0.0
      %1375 = vmatpush1.msra.mxu0 0.0
      %1376 = vmatprep.subr.mxu0 0.0
      %1377 = vmatpush1.msra.mxu0 0.0
      %1378 = vmatprep.subr.mxu0 0.0
      %1379 = vmatpush1.msra.mxu0 0.0
      %1380 = vmatprep.subr.mxu0 0.0
      %1381 = vmatpush1.msra.mxu0 0.0
      %1382 = vmatprep.subr.mxu0 0.0
      %1383 = vmatpush1.msra.mxu0 0.0
      %1384 = vmatprep.subr.mxu0 0.0
      %1385 = vmatpush1.msra.mxu0 0.0
      %1386 = vmatprep.subr.mxu0 0.0
      %1387 = vmatpush1.msra.mxu0 0.0
      %1388 = vmatprep.subr.mxu0 0.0
      %1389 = vmatpush1.msra.mxu0 0.0
      %1390 = vmatprep.subr.mxu0 0.0
      %1391 = vmatpush1.msra.mxu0 0.0
      %1392 = vmatprep.subr.mxu0 0.0
      %1393 = vmatpush1.msra.mxu0 0.0
      %1394 = vmatprep.subr.mxu0 0.0
      %1395 = vmatpush1.msra.mxu0 0.0
      %1396 = vmatprep.subr.mxu0 0.0
      %1397 = vmatpush1.msra.mxu0 0.0
      %1398 = vmatprep.subr.mxu0 0.0
      %1399 = vmatpush1.msra.mxu0 0.0
      %1400 = vmatprep.subr.mxu0 0.0
      %1401 = vmatpush1.msra.mxu0 0.0
      %1402 = vmatprep.subr.mxu0 0.0
      %1403 = vmatpush1.msra.mxu0 0.0
      %1404 = vmatprep.subr.mxu0 0.0
      %1405 = vmatpush1.msra.mxu0 0.0
      %1406 = vmatprep.subr.mxu0 0.0
      %1407 = vmatpush1.msra.mxu0 0.0
      %1408 = vmatprep.subr.mxu0 0.0
      %1409 = vmatpush1.msra.mxu0 0.0
      %1410 = vmatprep.subr.mxu0 0.0
      %1411 = vmatpush1.msra.mxu0 0.0
      %1412 = vmatprep.subr.mxu0 0.0
      %1413 = vmatpush1.msra.mxu0 0.0
      %1414 = vmatprep.subr.mxu0 0.0
      %1415 = vmatpush1.msra.mxu0 0.0
      %1416 = vmatprep.subr.mxu0 0.0
      %1417 = vmatpush1.msra.mxu0 0.0
      %1418 = vmatprep.subr.mxu0 0.0
      %1419 = vmatpush1.msra.mxu0 0.0
      %1420 = vmatprep.subr.mxu0 0.0
      %1421 = vmatpush1.msra.mxu0 0.0
      %1422 = vmatprep.subr.mxu0 0.0
      %1423 = vmatpush1.msra.mxu0 0.0
      %1424 = vmatprep.subr.mxu0 0.0
      %1425 = vmatpush1.msra.mxu0 0.0
      %1426 = vmatprep.subr.mxu0 0.0
      %1427 = vmatpush1.msra.mxu0 0.0
      %1428 = vmatprep.subr.mxu0 0.0
      %1429 = vmatpush1.msra.mxu0 0.0
      %1430 = vmatprep.subr.mxu0 0.0
      %1431 = vmatpush1.msra.mxu0 0.0
      %1432 = vmatprep.subr.mxu0 0.0
      %1433 = vmatpush1.msra.mxu0 0.0
      %1434 = vmatprep.mubr.f32.mxu0 0.0
      %1435 = vmatmul.mubr.f32.gmra.mrb[0].mxu0 %v1368
      %v1436 = vpop.f32.mrb[0].mxu0
      %v1437 = vadd.f32 0.0, %v1436
      %v1438 = vpop.f32.mrb[0].mxu0
      %1439 = vdwg.mxu0
      %1440 = vrot.lane.b32.xlu0 %v427, 104
      %v1441 = vpop.permute.xlu0 %1440
      %1442 = vrot.lane.b32.xlu0 %v427, 72
      %v1443 = vpop.permute.xlu0 %1442
      %v1444 = vsel %vm434, %v1441, 0
      %v1446 = vsel %vm434, %v1443, 0
      %1448 = vmatprep.subr.mxu0 0.0
      %1449 = vmatpush1.xpose.msra.mxu0 %v1446
      %1450 = vmatprep.subr.mxu0 0.0
      %1451 = vmatpush1.xpose.msra.mxu0 0.0
      %1452 = vmatprep.subr.mxu0 0.0
      %1453 = vmatpush1.xpose.msra.mxu0 0.0
      %1454 = vmatprep.subr.mxu0 0.0
      %1455 = vmatpush1.xpose.msra.mxu0 0.0
      %1456 = vmatprep.subr.mxu0 0.0
      %1457 = vmatpush1.xpose.msra.mxu0 0.0
      %1458 = vmatprep.subr.mxu0 0.0
      %1459 = vmatpush1.xpose.msra.mxu0 0.0
      %1460 = vmatprep.subr.mxu0 0.0
      %1461 = vmatpush1.xpose.msra.mxu0 0.0
      %1462 = vmatprep.subr.mxu0 0.0
      %1463 = vmatpush1.xpose.msra.mxu0 0.0
      %1464 = vmatprep.subr.mxu0 0.0
      %1465 = vmatpush1.xpose.msra.mxu0 0.0
      %1466 = vmatprep.subr.mxu0 0.0
      %1467 = vmatpush1.xpose.msra.mxu0 0.0
      %1468 = vmatprep.subr.mxu0 0.0
      %1469 = vmatpush1.xpose.msra.mxu0 0.0
      %1470 = vmatprep.subr.mxu0 0.0
      %1471 = vmatpush1.xpose.msra.mxu0 0.0
      %1472 = vmatprep.subr.mxu0 0.0
      %1473 = vmatpush1.xpose.msra.mxu0 0.0
      %1474 = vmatprep.subr.mxu0 0.0
      %1475 = vmatpush1.xpose.msra.mxu0 0.0
      %1476 = vmatprep.subr.mxu0 0.0
      %1477 = vmatpush1.xpose.msra.mxu0 0.0
      %1478 = vmatprep.subr.mxu0 0.0
      %1479 = vmatpush1.xpose.msra.mxu0 0.0
      %1480 = vmatprep.subr.mxu0 0.0
      %1481 = vmatpush1.xpose.msra.mxu0 0.0
      %1482 = vmatprep.subr.mxu0 0.0
      %1483 = vmatpush1.xpose.msra.mxu0 0.0
      %1484 = vmatprep.subr.mxu0 0.0
      %1485 = vmatpush1.xpose.msra.mxu0 0.0
      %1486 = vmatprep.subr.mxu0 0.0
      %1487 = vmatpush1.xpose.msra.mxu0 0.0
      %1488 = vmatprep.subr.mxu0 0.0
      %1489 = vmatpush1.xpose.msra.mxu0 0.0
      %1490 = vmatprep.subr.mxu0 0.0
      %1491 = vmatpush1.xpose.msra.mxu0 0.0
      %1492 = vmatprep.subr.mxu0 0.0
      %1493 = vmatpush1.xpose.msra.mxu0 0.0
      %1494 = vmatprep.subr.mxu0 0.0
      %1495 = vmatpush1.xpose.msra.mxu0 0.0
      %1496 = vmatprep.subr.mxu0 0.0
      %1497 = vmatpush1.xpose.msra.mxu0 0.0
      %1498 = vmatprep.subr.mxu0 0.0
      %1499 = vmatpush1.xpose.msra.mxu0 0.0
      %1500 = vmatprep.subr.mxu0 0.0
      %1501 = vmatpush1.xpose.msra.mxu0 0.0
      %1502 = vmatprep.subr.mxu0 0.0
      %1503 = vmatpush1.xpose.msra.mxu0 0.0
      %1504 = vmatprep.subr.mxu0 0.0
      %1505 = vmatpush1.xpose.msra.mxu0 0.0
      %1506 = vmatprep.subr.mxu0 0.0
      %1507 = vmatpush1.xpose.msra.mxu0 0.0
      %1508 = vmatprep.subr.mxu0 0.0
      %1509 = vmatpush1.xpose.msra.mxu0 0.0
      %1510 = vmatprep.subr.mxu0 0.0
      %1511 = vmatpush1.xpose.msra.mxu0 0.0
      %1512 = vmatprep.mubr.f32.mxu0 0.0
      %1513 = vmatmul.mubr.f32.gmra.mrb[0].mxu0 %v1444
      %v1514 = vpop.f32.mrb[0].mxu0
      %v1515 = vadd.f32 0.0, %v1514
      %v1516 = vpop.f32.mrb[0].mxu0
      %1517 = vdwg.mxu0
      %v1518 = vmul.f32 %v1515, 0.5
      %v1519 = vadd.f32 %v1518, %v514
      %v1520 = vsel %vm517, %v1519, -inf
      %1521 = vmax.xlane.f32.xlu0 %v1520
      %v1522 = vpop.xlane.xlu0 %1521
      %v1523 = vsub.f32 %v1519, %v1522
      %v1524 = vmul.f32 %v1523, 1.442695
      %v1525 = vpow.pop %v1524
      %v1526 = vsel %vm517, %v1525, 0.0
      %1527 = vadd.xlane.f32.xlu0 %v1526
      %v1528 = vpop.xlane.xlu0 %1527
      %v1529 = vrcp.pop %v1528
      %v1530 = vmul.f32 %v1525, %v1529
      %1531 = vrot.lane.b32.xlu0 %v427, 40
      %v1532 = vpop.permute.xlu0 %1531
      %v1535 = vsel %vm517, %v1530, 0
      %1537 = vmatprep.subr.mxu0 0.0
      %1538 = vmatpush1.msra.mxu0 %v1532
      %1539 = vmatprep.subr.mxu0 0.0
      %1540 = vmatpush1.msra.mxu0 0.0
      %1541 = vmatprep.subr.mxu0 0.0
      %1542 = vmatpush1.msra.mxu0 0.0
      %1543 = vmatprep.subr.mxu0 0.0
      %1544 = vmatpush1.msra.mxu0 0.0
      %1545 = vmatprep.subr.mxu0 0.0
      %1546 = vmatpush1.msra.mxu0 0.0
      %1547 = vmatprep.subr.mxu0 0.0
      %1548 = vmatpush1.msra.mxu0 0.0
      %1549 = vmatprep.subr.mxu0 0.0
      %1550 = vmatpush1.msra.mxu0 0.0
      %1551 = vmatprep.subr.mxu0 0.0
      %1552 = vmatpush1.msra.mxu0 0.0
      %1553 = vmatprep.subr.mxu0 0.0
      %1554 = vmatpush1.msra.mxu0 0.0
      %1555 = vmatprep.subr.mxu0 0.0
      %1556 = vmatpush1.msra.mxu0 0.0
      %1557 = vmatprep.subr.mxu0 0.0
      %1558 = vmatpush1.msra.mxu0 0.0
      %1559 = vmatprep.subr.mxu0 0.0
      %1560 = vmatpush1.msra.mxu0 0.0
      %1561 = vmatprep.subr.mxu0 0.0
      %1562 = vmatpush1.msra.mxu0 0.0
      %1563 = vmatprep.subr.mxu0 0.0
      %1564 = vmatpush1.msra.mxu0 0.0
      %1565 = vmatprep.subr.mxu0 0.0
      %1566 = vmatpush1.msra.mxu0 0.0
      %1567 = vmatprep.subr.mxu0 0.0
      %1568 = vmatpush1.msra.mxu0 0.0
      %1569 = vmatprep.subr.mxu0 0.0
      %1570 = vmatpush1.msra.mxu0 0.0
      %1571 = vmatprep.subr.mxu0 0.0
      %1572 = vmatpush1.msra.mxu0 0.0
      %1573 = vmatprep.subr.mxu0 0.0
      %1574 = vmatpush1.msra.mxu0 0.0
      %1575 = vmatprep.subr.mxu0 0.0
      %1576 = vmatpush1.msra.mxu0 0.0
      %1577 = vmatprep.subr.mxu0 0.0
      %1578 = vmatpush1.msra.mxu0 0.0
      %1579 = vmatprep.subr.mxu0 0.0
      %1580 = vmatpush1.msra.mxu0 0.0
      %1581 = vmatprep.subr.mxu0 0.0
      %1582 = vmatpush1.msra.mxu0 0.0
      %1583 = vmatprep.subr.mxu0 0.0
      %1584 = vmatpush1.msra.mxu0 0.0
      %1585 = vmatprep.subr.mxu0 0.0
      %1586 = vmatpush1.msra.mxu0 0.0
      %1587 = vmatprep.subr.mxu0 0.0
      %1588 = vmatpush1.msra.mxu0 0.0
      %1589 = vmatprep.subr.mxu0 0.0
      %1590 = vmatpush1.msra.mxu0 0.0
      %1591 = vmatprep.subr.mxu0 0.0
      %1592 = vmatpush1.msra.mxu0 0.0
      %1593 = vmatprep.subr.mxu0 0.0
      %1594 = vmatpush1.msra.mxu0 0.0
      %1595 = vmatprep.subr.mxu0 0.0
      %1596 = vmatpush1.msra.mxu0 0.0
      %1597 = vmatprep.subr.mxu0 0.0
      %1598 = vmatpush1.msra.mxu0 0.0
      %1599 = vmatprep.subr.mxu0 0.0
      %1600 = vmatpush1.msra.mxu0 0.0
      %1601 = vmatprep.mubr.f32.mxu0 0.0
      %1602 = vmatmul.mubr.f32.gmra.mrb[0].mxu0 %v1535
      %v1603 = vpop.f32.mrb[0].mxu0
      %v1604 = vadd.f32 0.0, %v1603
      %v1605 = vpop.f32.mrb[0].mxu0
      %1606 = vdwg.mxu0
      %1607 = vrot.lane.b32.xlu0 %v427, 100
      %v1608 = vpop.permute.xlu0 %1607
      %1609 = vrot.lane.b32.xlu0 %v427, 68
      %v1610 = vpop.permute.xlu0 %1609
      %v1611 = vsel %vm434, %v1608, 0
      %v1613 = vsel %vm434, %v1610, 0
      %1615 = vmatprep.subr.mxu0 0.0
      %1616 = vmatpush1.xpose.msra.mxu0 %v1613
      %1617 = vmatprep.subr.mxu0 0.0
      %1618 = vmatpush1.xpose.msra.mxu0 0.0
      %1619 = vmatprep.subr.mxu0 0.0
      %1620 = vmatpush1.xpose.msra.mxu0 0.0
      %1621 = vmatprep.subr.mxu0 0.0
      %1622 = vmatpush1.xpose.msra.mxu0 0.0
      %1623 = vmatprep.subr.mxu0 0.0
      %1624 = vmatpush1.xpose.msra.mxu0 0.0
      %1625 = vmatprep.subr.mxu0 0.0
      %1626 = vmatpush1.xpose.msra.mxu0 0.0
      %1627 = vmatprep.subr.mxu0 0.0
      %1628 = vmatpush1.xpose.msra.mxu0 0.0
      %1629 = vmatprep.subr.mxu0 0.0
      %1630 = vmatpush1.xpose.msra.mxu0 0.0
      %1631 = vmatprep.subr.mxu0 0.0
      %1632 = vmatpush1.xpose.msra.mxu0 0.0
      %1633 = vmatprep.subr.mxu0 0.0
      %1634 = vmatpush1.xpose.msra.mxu0 0.0
      %1635 = vmatprep.subr.mxu0 0.0
      %1636 = vmatpush1.xpose.msra.mxu0 0.0
      %1637 = vmatprep.subr.mxu0 0.0
      %1638 = vmatpush1.xpose.msra.mxu0 0.0
      %1639 = vmatprep.subr.mxu0 0.0
      %1640 = vmatpush1.xpose.msra.mxu0 0.0
      %1641 = vmatprep.subr.mxu0 0.0
      %1642 = vmatpush1.xpose.msra.mxu0 0.0
      %1643 = vmatprep.subr.mxu0 0.0
      %1644 = vmatpush1.xpose.msra.mxu0 0.0
      %1645 = vmatprep.subr.mxu0 0.0
      %1646 = vmatpush1.xpose.msra.mxu0 0.0
      %1647 = vmatprep.subr.mxu0 0.0
      %1648 = vmatpush1.xpose.msra.mxu0 0.0
      %1649 = vmatprep.subr.mxu0 0.0
      %1650 = vmatpush1.xpose.msra.mxu0 0.0
      %1651 = vmatprep.subr.mxu0 0.0
      %1652 = vmatpush1.xpose.msra.mxu0 0.0
      %1653 = vmatprep.subr.mxu0 0.0
      %1654 = vmatpush1.xpose.msra.mxu0 0.0
      %1655 = vmatprep.subr.mxu0 0.0
      %1656 = vmatpush1.xpose.msra.mxu0 0.0
      %1657 = vmatprep.subr.mxu0 0.0
      %1658 = vmatpush1.xpose.msra.mxu0 0.0
      %1659 = vmatprep.subr.mxu0 0.0
      %1660 = vmatpush1.xpose.msra.mxu0 0.0
      %1661 = vmatprep.subr.mxu0 0.0
      %1662 = vmatpush1.xpose.msra.mxu0 0.0
      %1663 = vmatprep.subr.mxu0 0.0
      %1664 = vmatpush1.xpose.msra.mxu0 0.0
      %1665 = vmatprep.subr.mxu0 0.0
      %1666 = vmatpush1.xpose.msra.mxu0 0.0
      %1667 = vmatprep.subr.mxu0 0.0
      %1668 = vmatpush1.xpose.msra.mxu0 0.0
      %1669 = vmatprep.subr.mxu0 0.0
      %1670 = vmatpush1.xpose.msra.mxu0 0.0
      %1671 = vmatprep.subr.mxu0 0.0
      %1672 = vmatpush1.xpose.msra.mxu0 0.0
      %1673 = vmatprep.subr.mxu0 0.0
      %1674 = vmatpush1.xpose.msra.mxu0 0.0
      %1675 = vmatprep.subr.mxu0 0.0
      %1676 = vmatpush1.xpose.msra.mxu0 0.0
      %1677 = vmatprep.subr.mxu0 0.0
      %1678 = vmatpush1.xpose.msra.mxu0 0.0
      %1679 = vmatprep.mubr.f32.mxu0 0.0
      %1680 = vmatmul.mubr.f32.gmra.mrb[0].mxu0 %v1611
      %v1681 = vpop.f32.mrb[0].mxu0
      %v1682 = vadd.f32 0.0, %v1681
      %v1683 = vpop.f32.mrb[0].mxu0
      %1684 = vdwg.mxu0
      %v1685 = vmul.f32 %v1682, 0.5
      %v1686 = vadd.f32 %v1685, %v514
      %v1687 = vsel %vm517, %v1686, -inf
      %1688 = vmax.xlane.f32.xlu0 %v1687
      %v1689 = vpop.xlane.xlu0 %1688
      %v1690 = vsub.f32 %v1686, %v1689
      %v1691 = vmul.f32 %v1690, 1.442695
      %v1692 = vpow.pop %v1691
      %v1693 = vsel %vm517, %v1692, 0.0
      %1694 = vadd.xlane.f32.xlu0 %v1693
      %v1695 = vpop.xlane.xlu0 %1694
      %v1696 = vrcp.pop %v1695
      %v1697 = vmul.f32 %v1692, %v1696
      %1698 = vrot.lane.b32.xlu0 %v427, 36
      %v1699 = vpop.permute.xlu0 %1698
      %v1702 = vsel %vm517, %v1697, 0
      %1704 = vmatprep.subr.mxu0 0.0
      %1705 = vmatpush1.msra.mxu0 %v1699
      %1706 = vmatprep.subr.mxu0 0.0
      %1707 = vmatpush1.msra.mxu0 0.0
      %1708 = vmatprep.subr.mxu0 0.0
      %1709 = vmatpush1.msra.mxu0 0.0
      %1710 = vmatprep.subr.mxu0 0.0
      %1711 = vmatpush1.msra.mxu0 0.0
      %1712 = vmatprep.subr.mxu0 0.0
      %1713 = vmatpush1.msra.mxu0 0.0
      %1714 = vmatprep.subr.mxu0 0.0
      %1715 = vmatpush1.msra.mxu0 0.0
      %1716 = vmatprep.subr.mxu0 0.0
      %1717 = vmatpush1.msra.mxu0 0.0
      %1718 = vmatprep.subr.mxu0 0.0
      %1719 = vmatpush1.msra.mxu0 0.0
      %1720 = vmatprep.subr.mxu0 0.0
      %1721 = vmatpush1.msra.mxu0 0.0
      %1722 = vmatprep.subr.mxu0 0.0
      %1723 = vmatpush1.msra.mxu0 0.0
      %1724 = vmatprep.subr.mxu0 0.0
      %1725 = vmatpush1.msra.mxu0 0.0
      %1726 = vmatprep.subr.mxu0 0.0
      %1727 = vmatpush1.msra.mxu0 0.0
      %1728 = vmatprep.subr.mxu0 0.0
      %1729 = vmatpush1.msra.mxu0 0.0
      %1730 = vmatprep.subr.mxu0 0.0
      %1731 = vmatpush1.msra.mxu0 0.0
      %1732 = vmatprep.subr.mxu0 0.0
      %1733 = vmatpush1.msra.mxu0 0.0
      %1734 = vmatprep.subr.mxu0 0.0
      %1735 = vmatpush1.msra.mxu0 0.0
      %1736 = vmatprep.subr.mxu0 0.0
      %1737 = vmatpush1.msra.mxu0 0.0
      %1738 = vmatprep.subr.mxu0 0.0
      %1739 = vmatpush1.msra.mxu0 0.0
      %1740 = vmatprep.subr.mxu0 0.0
      %1741 = vmatpush1.msra.mxu0 0.0
      %1742 = vmatprep.subr.mxu0 0.0
      %1743 = vmatpush1.msra.mxu0 0.0
      %1744 = vmatprep.subr.mxu0 0.0
      %1745 = vmatpush1.msra.mxu0 0.0
      %1746 = vmatprep.subr.mxu0 0.0
      %1747 = vmatpush1.msra.mxu0 0.0
      %1748 = vmatprep.subr.mxu0 0.0
      %1749 = vmatpush1.msra.mxu0 0.0
      %1750 = vmatprep.subr.mxu0 0.0
      %1751 = vmatpush1.msra.mxu0 0.0
      %1752 = vmatprep.subr.mxu0 0.0
      %1753 = vmatpush1.msra.mxu0 0.0
      %1754 = vmatprep.subr.mxu0 0.0
      %1755 = vmatpush1.msra.mxu0 0.0
      %1756 = vmatprep.subr.mxu0 0.0
      %1757 = vmatpush1.msra.mxu0 0.0
      %1758 = vmatprep.subr.mxu0 0.0
      %1759 = vmatpush1.msra.mxu0 0.0
      %1760 = vmatprep.subr.mxu0 0.0
      %1761 = vmatpush1.msra.mxu0 0.0
      %1762 = vmatprep.subr.mxu0 0.0
      %1763 = vmatpush1.msra.mxu0 0.0
      %1764 = vmatprep.subr.mxu0 0.0
      %1765 = vmatpush1.msra.mxu0 0.0
      %1766 = vmatprep.subr.mxu0 0.0
      %1767 = vmatpush1.msra.mxu0 0.0
      %1768 = vmatprep.mubr.f32.mxu0 0.0
      %1769 = vmatmul.mubr.f32.gmra.mrb[0].mxu0 %v1702
      %v1770 = vpop.f32.mrb[0].mxu0
      %v1771 = vadd.f32 0.0, %v1770
      %v1772 = vpop.f32.mrb[0].mxu0
      %1773 = vdwg.mxu0
      %1775 = vrot.lane.b32.xlu0 %v769, 4
      %v1776 = vpop.permute.xlu0 %1775
      %1779 = vrot.lane.b32.xlu0 %v936, 8
      %v1780 = vpop.permute.xlu0 %1779
      %1783 = vrot.lane.b32.xlu0 %v1103, 12
      %v1784 = vpop.permute.xlu0 %1783
      %1787 = vrot.lane.b32.xlu0 %v1270, 16
      %v1788 = vpop.permute.xlu0 %1787
      %1791 = vrot.lane.b32.xlu0 %v1437, 20
      %v1792 = vpop.permute.xlu0 %1791
      %1795 = vrot.lane.b32.xlu0 %v1604, 24
      %v1796 = vpop.permute.xlu0 %1795
      %1799 = vrot.lane.b32.xlu0 %v1771, 28
      %v1800 = vpop.permute.xlu0 %1799
      %v1802 = vsel %vm434, %v602, %v1776
      %v1803 = vsel %vm517, %v1802, %v1780
      %vm1804 = vcmask 97280
      %v1805 = vsel %vm1804, %v1803, %v1784
      %vm1806 = vcmask 130048
      %v1807 = vsel %vm1806, %v1805, %v1788
      %vm1808 = vcmask 162816
      %v1809 = vsel %vm1808, %v1807, %v1792
      %vm1810 = vcmask 195584
      %v1811 = vsel %vm1810, %v1809, %v1796
      %vm1812 = vcmask 228352
      %v1813 = vsel %vm1812, %v1811, %v1800
      %v1814 = vld [vmem:[%s4] sm:$0xff]
      %v1815 = vld [vmem:[%s4 + $0x8] sm:$0xff]
      %v1816 = vld [vmem:[%s4 + $0x10] sm:$0xff]
      %v1817 = vld [vmem:[%s4 + $0x18] sm:$0xff]
      %v1818 = vld [vmem:[%s5] sm:$0x1]
      %v1820 = vlaneseq
      %v1821 = vshrl.u32 %v1820, 7
      %v1822 = vsub.s32 0, %v1821
      %v1823 = vrot.slane %v1818, %v1822
      %v1826 = vsel %vm356, %v1813, 0
      %1828 = vmatprep.subr.mxu0 0.0
      %1829 = vmatpush1.msra.mxu0 %v1814
      %1830 = vmatprep.subr.mxu0 0.0
      %1831 = vmatpush1.msra.mxu0 %v1815
      %1832 = vmatprep.subr.mxu0 0.0
      %1833 = vmatpush1.msra.mxu0 %v1816
      %1834 = vmatprep.subr.mxu0 0.0
      %1835 = vmatpush1.msra.mxu0 %v1817
      %1836 = vmatprep.subr.mxu0 0.0
      %1837 = vmatpush1.msra.mxu0 0.0
      %1838 = vmatprep.subr.mxu0 0.0
      %1839 = vmatpush1.msra.mxu0 0.0
      %1840 = vmatprep.subr.mxu0 0.0
      %1841 = vmatpush1.msra.mxu0 0.0
      %1842 = vmatprep.subr.mxu0 0.0
      %1843 = vmatpush1.msra.mxu0 0.0
      %1844 = vmatprep.subr.mxu0 0.0
      %1845 = vmatpush1.msra.mxu0 0.0
      %1846 = vmatprep.subr.mxu0 0.0
      %1847 = vmatpush1.msra.mxu0 0.0
      %1848 = vmatprep.subr.mxu0 0.0
      %1849 = vmatpush1.msra.mxu0 0.0
      %1850 = vmatprep.subr.mxu0 0.0
      %1851 = vmatpush1.msra.mxu0 0.0
      %1852 = vmatprep.subr.mxu0 0.0
      %1853 = vmatpush1.msra.mxu0 0.0
      %1854 = vmatprep.subr.mxu0 0.0
      %1855 = vmatpush1.msra.mxu0 0.0
      %1856 = vmatprep.subr.mxu0 0.0
      %1857 = vmatpush1.msra.mxu0 0.0
      %1858 = vmatprep.subr.mxu0 0.0
      %1859 = vmatpush1.msra.mxu0 0.0
      %1860 = vmatprep.subr.mxu0 0.0
      %1861 = vmatpush1.msra.mxu0 0.0
      %1862 = vmatprep.subr.mxu0 0.0
      %1863 = vmatpush1.msra.mxu0 0.0
      %1864 = vmatprep.subr.mxu0 0.0
      %1865 = vmatpush1.msra.mxu0 0.0
      %1866 = vmatprep.subr.mxu0 0.0
      %1867 = vmatpush1.msra.mxu0 0.0
      %1868 = vmatprep.subr.mxu0 0.0
      %1869 = vmatpush1.msra.mxu0 0.0
      %1870 = vmatprep.subr.mxu0 0.0
      %1871 = vmatpush1.msra.mxu0 0.0
      %1872 = vmatprep.subr.mxu0 0.0
      %1873 = vmatpush1.msra.mxu0 0.0
      %1874 = vmatprep.subr.mxu0 0.0
      %1875 = vmatpush1.msra.mxu0 0.0
      %1876 = vmatprep.subr.mxu0 0.0
      %1877 = vmatpush1.msra.mxu0 0.0
      %1878 = vmatprep.subr.mxu0 0.0
      %1879 = vmatpush1.msra.mxu0 0.0
      %1880 = vmatprep.subr.mxu0 0.0
      %1881 = vmatpush1.msra.mxu0 0.0
      %1882 = vmatprep.subr.mxu0 0.0
      %1883 = vmatpush1.msra.mxu0 0.0
      %1884 = vmatprep.subr.mxu0 0.0
      %1885 = vmatpush1.msra.mxu0 0.0
      %1886 = vmatprep.subr.mxu0 0.0
      %1887 = vmatpush1.msra.mxu0 0.0
      %1888 = vmatprep.subr.mxu0 0.0
      %1889 = vmatpush1.msra.mxu0 0.0
      %1890 = vmatprep.subr.mxu0 0.0
      %1891 = vmatpush1.msra.mxu0 0.0
      %1892 = vmatprep.mubr.f32.mxu0 0.0
      %1893 = vmatmul.mubr.f32.gmra.mrb[0].mxu0 %v1826
      %v1894 = vpop.f32.mrb[0].mxu0
      %v1895 = vadd.f32 %v1823, %v1894
      %v1896 = vpop.f32.mrb[0].mxu0
      %1897 = vdwg.mxu0
      %v1898 = vadd.f32 %v1895, %v344
      %v1899 = vsel %vm356, %v1898, 0.0
      %1900 = vadd.xlane.f32.xlu0 %v1899
      %v1901 = vpop.xlane.xlu0 %1900
      %v1902 = vrcp.pop 32.0
      %v1903 = vmul.f32 %v1901, %v1902
      %v1904 = vsub.f32 %v1898, %v1903
      %v1905 = vmul.f32 %v1904, %v1904
      %v1906 = vsel %vm356, %v1905, 0.0
      %1907 = vadd.xlane.f32.xlu0 %v1906
      %v1908 = vpop.xlane.xlu0 %1907
      %v1909 = vmul.f32 %v1908, %v1902
      %v1910 = vadd.f32 %v1909, 1e-05
      %v1911 = vrsqrt.pop %v1910
      %v1912 = vmul.f32 %v1904, %v1911
      %v1913 = vld [vmem:[%s6] sm:$0x1]
      %v1915 = vlaneseq
      %v1916 = vshrl.u32 %v1915, 7
      %v1917 = vsub.s32 0, %v1916
      %v1918 = vrot.slane %v1913, %v1917
      %v1920 = vmul.f32 %v1912, %v1918
      %v1921 = vld [vmem:[%s7] sm:$0x1]
      %v1923 = vlaneseq
      %v1924 = vshrl.u32 %v1923, 7
      %v1925 = vsub.s32 0, %v1924
      %v1926 = vrot.slane %v1921, %v1925
      %v1928 = vadd.f32 %v1920, %v1926
      %1929 = vst.msk [vmem:[%s341] sm:$0xff] %vm356, %v1928
      %p1930 = scmp.lt.s32.totalorder %s20, 1
      %s1931 = scalar_select %p1930, %s20, 1
      %s1932 = smul.addr %s1931, 8
      %s1933 = scalar_lea.vmem %s9, %s1932
      // Predicated region
      $region57: #{_lambda_.4} parent=55 // pred_check
        %p1934 = pneg %p237
      $region58: #{_lambda_.4} parent=55 // pred_check_branch
        %1936 = sbr.rel (%p1934) target = $region60
      $region59: #{_lambda_.4} parent=55 // pred_region
        _
      $region60: #{_lambda_.4} parent=55 // pred_fallthru
        _
    $region56: #{_lambda_.4} parent=5 // pred_fallthru
      _
    %p1937 = scmp.le.s32.totalorder 2, %s15
    // Predicated region
    $region61: #{_lambda_.4} parent=5 // pred_check
      %p1938 = pneg %p1937
    $region62: #{_lambda_.4} parent=5 // pred_check_branch
      %1940 = sbr.rel (%p1938) target = $region64
    $region63: #{_lambda_.4} parent=5 // pred_region
      %s1941 = ssub.s32 %s15, 2
      // Predicated region
      $region65: #{_lambda_.4} parent=63 // pred_check
        %p1942 = pneg %p243
      $region66: #{_lambda_.4} parent=63 // pred_check_branch
        %1944 = sbr.rel (%p1942) target = $region68
      $region67: #{_lambda_.4} parent=63 // pred_region
        %p1945 = scmp.lt.s32.totalorder %s21, 1
        %s1946 = scalar_select %p1945, %s21, 1
        %s1947 = smul.addr %s1946, 8
        %s1948 = scalar_lea.vmem %s9, %s1947
      $region68: #{_lambda_.4} parent=63 // pred_fallthru
        _
    $region64: #{_lambda_.4} parent=5 // pred_fallthru
      _
  $region6: #{_lambda_.4} parent=0 // loop_footer
    %s19 = sadd.s32 1, %s15
  $region7: #{_lambda_.4} parent=0 // loop_footer_branch
    %14 = sbr.rel target = $region3
  $region8: #{_lambda_.4} parent=0 // loop_exit
    _

// kernel: _lambda_.6
$region0: #{_lambda_.6}
  #allocation0 [shape = 'u32[]', space=smem, size = 0x4, offset = 0x4, fixed_abs, tag = 'smem constant byte address 0x4 - core index']
  #allocation1 [shape = 'u32[144,128]{1,0:T(1,128)}', space=vmem, size = 0x12000, scoped, tag = 'internal scratch']
  %s0 = inlined_call_operand.vmem [shape: f32[2,8,32], index: 0, kind: input, shape index: {}]
  %s1 = inlined_call_operand.vmem [shape: f32[32,96], index: 1, kind: input, shape index: {}]
  %s2 = inlined_call_operand.vmem [shape: f32[1,96], index: 2, kind: input, shape index: {}]
  %s3 = inlined_call_operand.vmem [shape: f32[32,32], index: 3, kind: input, shape index: {}]
  %s4 = inlined_call_operand.vmem [shape: f32[1,32], index: 4, kind: input, shape index: {}, may-alias: {4,6}]
  %s5 = inlined_call_operand.vmem [shape: f32[1,32], index: 5, kind: input, shape index: {}]
  %s6 = inlined_call_operand.vmem [shape: f32[1,32], index: 6, kind: input, shape index: {}, may-alias: {4,6}]
  %s7 = inlined_call_operand.vmem [shape: f32[2,1,8], index: 7, kind: input, shape index: {}]
  %s8 = inlined_call_operand.vmem [shape: f32[2,8,32], index: 8, kind: output, shape index: {}]
  %s9 = sld [smem:[#allocation0]]
  $region65: #{_lambda_.6} parent=0
    _
  %s11 = ssub.s32 1, %s9
  %s12 = scalar_select 0, %s11, %s9
  loop: start=0, step=1, limit=4
  $region2: #{_lambda_.6} parent=0 // loop_pre_header
    _
  $region3: #{_lambda_.6} parent=0 // loop_header
    %s14 = sphi 0, %s18
    %p15 = scmp.ge.s32.totalorder %s14, 4
    %s24 = sphi 0, %s26
    %s27 = sphi 0, %s24
    %s28 = sphi 0, %s27
    %s44 = sphi 0, %s28
    %s48 = sphi 0, %s48
    %s50 = sphi 0, %s48
    %s51 = sphi 0, %s50
    %s65 = sphi 0, %s51
    %s69 = sphi 0, %s69
    %s71 = sphi 0, %s69
    %s72 = sphi 0, %s71
    %s86 = sphi 0, %s72
    %s90 = sphi 0, %s90
    %s92 = sphi 0, %s90
    %s93 = sphi 0, %s92
    %s107 = sphi 0, %s93
    %s111 = sphi 0, %s111
    %s113 = sphi 0, %s111
    %s114 = sphi 0, %s113
    %s128 = sphi 0, %s114
    %s132 = sphi 0, %s132
    %s134 = sphi 0, %s132
    %s135 = sphi 0, %s134
    %s149 = sphi 0, %s135
    %s153 = sphi 0, %s153
    %s155 = sphi 0, %s153
    %s156 = sphi 0, %s155
    %s170 = sphi 0, %s156
    %s176 = sphi 0, %s178
    %s179 = sphi 0, %s176
    %s180 = sphi 0, %s179
    %s196 = sphi 0, %s180
    %s202 = sphi 0, %s204
    %s205 = sphi 0, %s202
    %s206 = sphi 0, %s205
    %s222 = sphi 0, %s206
  $region4: #{_lambda_.6} parent=0 // loop_header_branch
    %17 = sbr.rel (%p15) target = $region8
  $region5: #{_lambda_.6} parent=0 // loop_body
    %s19 = ssub.s32 %s14, 1
    %s20 = ssub.s32 %s14, 2
    %s21 = sadd.s32 %s14, 1
    %s22 = ssub.s32 %s14, %s21
    %p23 = scmp.eq.s32.totalorder %s22, 0
    %s25 = sadd.s32 %s24, 1
    %s26 = scalar_select %p23, %s24, %s25
    %p29 = pneg %p23
    %p30 = scmp.eq.s32.totalorder %s14, 1
    %p31 = por %p29, %p30
    %p32 = scmp.ne.s32.totalorder %s24, %s27
    %p33 = scmp.eq.s32.totalorder %s14, 0
    %p34 = por %p32, %p33
    %p35 = scmp.ne.s32.totalorder %s24, %s27
    %p36 = scmp.eq.s32.totalorder %s19, 1
    %p37 = por %p35, %p36
    %p38 = scmp.ne.s32.totalorder %s27, %s28
    %p39 = scmp.eq.s32.totalorder %s19, 0
    %p40 = por %p38, %p39
    %p41 = scmp.ne.s32.totalorder %s27, %s28
    %p42 = scmp.eq.s32.totalorder %s20, 1
    %p43 = por %p41, %p42
    %p45 = scmp.ne.s32.totalorder %s28, %s44
    %p46 = scmp.eq.s32.totalorder %s20, 0
    %p47 = por %p45, %p46
    %s49 = sadd.s32 %s48, 1
    %p52 = scmp.eq.s32.totalorder %s14, 1
    %p53 = scmp.ne.s32.totalorder %s48, %s50
    %p54 = scmp.eq.s32.totalorder %s14, 0
    %p55 = por %p53, %p54
    %p56 = scmp.ne.s32.totalorder %s48, %s50
    %p57 = scmp.eq.s32.totalorder %s19, 1
    %p58 = por %p56, %p57
    %p59 = scmp.ne.s32.totalorder %s50, %s51
    %p60 = scmp.eq.s32.totalorder %s19, 0
    %p61 = por %p59, %p60
    %p62 = scmp.ne.s32.totalorder %s50, %s51
    %p63 = scmp.eq.s32.totalorder %s20, 1
    %p64 = por %p62, %p63
    %p66 = scmp.ne.s32.totalorder %s51, %s65
    %p67 = scmp.eq.s32.totalorder %s20, 0
    %p68 = por %p66, %p67
    %s70 = sadd.s32 %s69, 1
    %p73 = scmp.eq.s32.totalorder %s14, 1
    %p74 = scmp.ne.s32.totalorder %s69, %s71
    %p75 = scmp.eq.s32.totalorder %s14, 0
    %p76 = por %p74, %p75
    %p77 = scmp.ne.s32.totalorder %s69, %s71
    %p78 = scmp.eq.s32.totalorder %s19, 1
    %p79 = por %p77, %p78
    %p80 = scmp.ne.s32.totalorder %s71, %s72
    %p81 = scmp.eq.s32.totalorder %s19, 0
    %p82 = por %p80, %p81
    %p83 = scmp.ne.s32.totalorder %s71, %s72
    %p84 = scmp.eq.s32.totalorder %s20, 1
    %p85 = por %p83, %p84
    %p87 = scmp.ne.s32.totalorder %s72, %s86
    %p88 = scmp.eq.s32.totalorder %s20, 0
    %p89 = por %p87, %p88
    %s91 = sadd.s32 %s90, 1
    %p94 = scmp.eq.s32.totalorder %s14, 1
    %p95 = scmp.ne.s32.totalorder %s90, %s92
    %p96 = scmp.eq.s32.totalorder %s14, 0
    %p97 = por %p95, %p96
    %p98 = scmp.ne.s32.totalorder %s90, %s92
    %p99 = scmp.eq.s32.totalorder %s19, 1
    %p100 = por %p98, %p99
    %p101 = scmp.ne.s32.totalorder %s92, %s93
    %p102 = scmp.eq.s32.totalorder %s19, 0
    %p103 = por %p101, %p102
    %p104 = scmp.ne.s32.totalorder %s92, %s93
    %p105 = scmp.eq.s32.totalorder %s20, 1
    %p106 = por %p104, %p105
    %p108 = scmp.ne.s32.totalorder %s93, %s107
    %p109 = scmp.eq.s32.totalorder %s20, 0
    %p110 = por %p108, %p109
    %s112 = sadd.s32 %s111, 1
    %p115 = scmp.eq.s32.totalorder %s14, 1
    %p116 = scmp.ne.s32.totalorder %s111, %s113
    %p117 = scmp.eq.s32.totalorder %s14, 0
    %p118 = por %p116, %p117
    %p119 = scmp.ne.s32.totalorder %s111, %s113
    %p120 = scmp.eq.s32.totalorder %s19, 1
    %p121 = por %p119, %p120
    %p122 = scmp.ne.s32.totalorder %s113, %s114
    %p123 = scmp.eq.s32.totalorder %s19, 0
    %p124 = por %p122, %p123
    %p125 = scmp.ne.s32.totalorder %s113, %s114
    %p126 = scmp.eq.s32.totalorder %s20, 1
    %p127 = por %p125, %p126
    %p129 = scmp.ne.s32.totalorder %s114, %s128
    %p130 = scmp.eq.s32.totalorder %s20, 0
    %p131 = por %p129, %p130
    %s133 = sadd.s32 %s132, 1
    %p136 = scmp.eq.s32.totalorder %s14, 1
    %p137 = scmp.ne.s32.totalorder %s132, %s134
    %p138 = scmp.eq.s32.totalorder %s14, 0
    %p139 = por %p137, %p138
    %p140 = scmp.ne.s32.totalorder %s132, %s134
    %p141 = scmp.eq.s32.totalorder %s19, 1
    %p142 = por %p140, %p141
    %p143 = scmp.ne.s32.totalorder %s134, %s135
    %p144 = scmp.eq.s32.totalorder %s19, 0
    %p145 = por %p143, %p144
    %p146 = scmp.ne.s32.totalorder %s134, %s135
    %p147 = scmp.eq.s32.totalorder %s20, 1
    %p148 = por %p146, %p147
    %p150 = scmp.ne.s32.totalorder %s135, %s149
    %p151 = scmp.eq.s32.totalorder %s20, 0
    %p152 = por %p150, %p151
    %s154 = sadd.s32 %s153, 1
    %p157 = scmp.eq.s32.totalorder %s14, 1
    %p158 = scmp.ne.s32.totalorder %s153, %s155
    %p159 = scmp.eq.s32.totalorder %s14, 0
    %p160 = por %p158, %p159
    %p161 = scmp.ne.s32.totalorder %s153, %s155
    %p162 = scmp.eq.s32.totalorder %s19, 1
    %p163 = por %p161, %p162
    %p164 = scmp.ne.s32.totalorder %s155, %s156
    %p165 = scmp.eq.s32.totalorder %s19, 0
    %p166 = por %p164, %p165
    %p167 = scmp.ne.s32.totalorder %s155, %s156
    %p168 = scmp.eq.s32.totalorder %s20, 1
    %p169 = por %p167, %p168
    %p171 = scmp.ne.s32.totalorder %s156, %s170
    %p172 = scmp.eq.s32.totalorder %s20, 0
    %p173 = por %p171, %p172
    %s174 = ssub.s32 %s14, %s21
    %p175 = scmp.eq.s32.totalorder %s174, 0
    %s177 = sadd.s32 %s176, 1
    %s178 = scalar_select %p175, %s176, %s177
    %p181 = pneg %p175
    %p182 = scmp.eq.s32.totalorder %s14, 1
    %p183 = por %p181, %p182
    %p184 = scmp.ne.s32.totalorder %s176, %s179
    %p185 = scmp.eq.s32.totalorder %s14, 0
    %p186 = por %p184, %p185
    %p187 = scmp.ne.s32.totalorder %s176, %s179
    %p188 = scmp.eq.s32.totalorder %s19, 1
    %p189 = por %p187, %p188
    %p190 = scmp.ne.s32.totalorder %s179, %s180
    %p191 = scmp.eq.s32.totalorder %s19, 0
    %p192 = por %p190, %p191
    %p193 = scmp.ne.s32.totalorder %s179, %s180
    %p194 = scmp.eq.s32.totalorder %s20, 1
    %p195 = por %p193, %p194
    %p197 = scmp.ne.s32.totalorder %s180, %s196
    %p198 = scmp.eq.s32.totalorder %s20, 0
    %p199 = por %p197, %p198
    %s200 = ssub.s32 %s14, %s21
    %p201 = scmp.eq.s32.totalorder %s200, 0
    %s203 = sadd.s32 %s202, 1
    %s204 = scalar_select %p201, %s202, %s203
    %p207 = pneg %p201
    %p208 = scmp.eq.s32.totalorder %s14, 1
    %p209 = por %p207, %p208
    %p210 = scmp.ne.s32.totalorder %s202, %s205
    %p211 = scmp.eq.s32.totalorder %s14, 0
    %p212 = por %p210, %p211
    %p213 = scmp.ne.s32.totalorder %s202, %s205
    %p214 = scmp.eq.s32.totalorder %s19, 1
    %p215 = por %p213, %p214
    %p216 = scmp.ne.s32.totalorder %s205, %s206
    %p217 = scmp.eq.s32.totalorder %s19, 0
    %p218 = por %p216, %p217
    %p219 = scmp.ne.s32.totalorder %s205, %s206
    %p220 = scmp.eq.s32.totalorder %s20, 1
    %p221 = por %p219, %p220
    %p223 = scmp.ne.s32.totalorder %s206, %s222
    %p224 = scmp.eq.s32.totalorder %s20, 0
    %p225 = por %p223, %p224
    %p226 = scmp.le.s32.totalorder 1, %s14
    %p227 = scmp.lt.s32.totalorder %s14, 3
    %p228 = pnand %p226, %p227
    %p229 = pneg %p228
    // Predicated region
    $region9: #{_lambda_.6} parent=5 // pred_check
      _
    $region10: #{_lambda_.6} parent=5 // pred_check_branch
      %231 = sbr.rel (%p228) target = $region12
    $region11: #{_lambda_.6} parent=5 // pred_region
      %s232 = ssub.s32 %s14, 1
      // Predicated region
      $region13: #{_lambda_.6} parent=11 // pred_check
        %p233 = pneg %p61
      $region14: #{_lambda_.6} parent=11 // pred_check_branch
        %235 = sbr.rel (%p233) target = $region16
      $region15: #{_lambda_.6} parent=11 // pred_region
        _
      $region16: #{_lambda_.6} parent=11 // pred_fallthru
        _
      // Predicated region
      $region17: #{_lambda_.6} parent=11 // pred_check
        %p236 = pneg %p82
      $region18: #{_lambda_.6} parent=11 // pred_check_branch
        %238 = sbr.rel (%p236) target = $region20
      $region19: #{_lambda_.6} parent=11 // pred_region
        _
      $region20: #{_lambda_.6} parent=11 // pred_fallthru
        _
      // Predicated region
      $region21: #{_lambda_.6} parent=11 // pred_check
        %p239 = pneg %p103
      $region22: #{_lambda_.6} parent=11 // pred_check_branch
        %241 = sbr.rel (%p239) target = $region24
      $region23: #{_lambda_.6} parent=11 // pred_region
        _
      $region24: #{_lambda_.6} parent=11 // pred_fallthru
        _
      // Predicated region
      $region25: #{_lambda_.6} parent=11 // pred_check
        %p242 = pneg %p124
      $region26: #{_lambda_.6} parent=11 // pred_check_branch
        %244 = sbr.rel (%p242) target = $region28
      $region27: #{_lambda_.6} parent=11 // pred_region
        _
      $region28: #{_lambda_.6} parent=11 // pred_fallthru
        _
      // Predicated region
      $region29: #{_lambda_.6} parent=11 // pred_check
        %p245 = pneg %p145
      $region30: #{_lambda_.6} parent=11 // pred_check_branch
        %247 = sbr.rel (%p245) target = $region32
      $region31: #{_lambda_.6} parent=11 // pred_region
        _
      $region32: #{_lambda_.6} parent=11 // pred_fallthru
        _
      // Predicated region
      $region33: #{_lambda_.6} parent=11 // pred_check
        %p248 = pneg %p166
      $region34: #{_lambda_.6} parent=11 // pred_check_branch
        %250 = sbr.rel (%p248) target = $region36
      $region35: #{_lambda_.6} parent=11 // pred_region
        _
      $region36: #{_lambda_.6} parent=11 // pred_fallthru
        _
    $region12: #{_lambda_.6} parent=5 // pred_fallthru
      _
    %p251 = scmp.lt.s32.totalorder %s14, 2
    // Predicated region
    $region37: #{_lambda_.6} parent=5 // pred_check
      %p252 = pneg %p251
    $region38: #{_lambda_.6} parent=5 // pred_check_branch
      %254 = sbr.rel (%p252) target = $region40
    $region39: #{_lambda_.6} parent=5 // pred_region
      // Predicated region
      $region41: #{_lambda_.6} parent=39 // pred_check
        %p255 = pneg %p34
      $region42: #{_lambda_.6} parent=39 // pred_check_branch
        %257 = sbr.rel (%p255) target = $region44
      $region43: #{_lambda_.6} parent=39 // pred_region
        %p258 = scmp.lt.s32.totalorder %s14, 1
        %s259 = scalar_select %p258, %s14, 1
        %s260 = smul.addr %s259, 8
        %s261 = scalar_lea.vmem %s0, %s260
      $region44: #{_lambda_.6} parent=39 // pred_fallthru
        _
      // Predicated region
      $region45: #{_lambda_.6} parent=39 // pred_check
        %p262 = pneg %p186
      $region46: #{_lambda_.6} parent=39 // pred_check_branch
        %264 = sbr.rel (%p262) target = $region48
      $region47: #{_lambda_.6} parent=39 // pred_region
        %p265 = scmp.lt.s32.totalorder %s14, 1
        %s266 = scalar_select %p265, %s14, 1
        %s267 = scalar_lea.vmem %s7, %s266
      $region48: #{_lambda_.6} parent=39 // pred_fallthru
        _
    $region40: #{_lambda_.6} parent=5 // pred_fallthru
      _
    %p268 = scmp.le.s32.totalorder 1, %s14
    %p269 = scmp.lt.s32.totalorder %s14, 3
    %p270 = pnand %p268, %p269
    %p271 = pneg %p270
    // Predicated region
    $region49: #{_lambda_.6} parent=5 // pred_check
      _
    $region50: #{_lambda_.6} parent=5 // pred_check_branch
      %273 = sbr.rel (%p270) target = $region52
    $region51: #{_lambda_.6} parent=5 // pred_region
      %s274 = ssub.s32 %s14, 1
      %p275 = scmp.lt.s32.totalorder %s19, 1
      %s276 = scalar_select %p275, %s19, 1
      %s277 = smul.addr %s276, 8
      %s278 = scalar_lea.vmem %s0, %s277
      %p279 = pneg %p40
      %p280 = pneg %p37
      %p281 = pneg %p61
      %p282 = pneg %p58
      %p283 = pneg %p82
      %p284 = pneg %p79
      %p285 = pneg %p103
      %p286 = pneg %p100
      %p287 = pneg %p124
      %p288 = pneg %p121
      %p289 = pneg %p145
      %p290 = pneg %p142
      %p291 = pneg %p166
      %p292 = pneg %p163
      %p293 = scmp.lt.s32.totalorder %s19, 1
      %s294 = scalar_select %p293, %s19, 1
      %s295 = scalar_lea.vmem %s7, %s294
      %p296 = pneg %p192
      %p297 = pneg %p189
      %p298 = pneg %p218
      %p299 = pneg %p215
      %p300 = scmp.lt.s32.totalorder %s19, 1
      %s301 = scalar_select %p300, %s19, 1
      %s302 = smul.addr %s301, 8
      %s303 = scalar_lea.vmem %s8, %s302
      %p304 = scmp.lt.s32.totalorder %s19, 1
      %s305 = scalar_select %p304, %s19, 1
      %s306 = smul.addr %s305, 8
      %s307 = scalar_lea.vmem %s0, %s306
      %p308 = scmp.lt.s32.totalorder %s19, 1
      %s309 = scalar_select %p308, %s19, 1
      %s310 = scalar_lea.vmem %s7, %s309
      %p311 = scmp.lt.s32.totalorder %s19, 1
      %s312 = scalar_select %p311, %s19, 1
      %s313 = smul.addr %s312, 8
      %s314 = scalar_lea.vmem %s8, %s313
      %v315 = vld [vmem:[%s307] sm:$0xff]
      %v316 = vld [vmem:[%s1] sm:$0xff]
      %v317 = vld [vmem:[%s1 + $0x8] sm:$0xff]
      %v318 = vld [vmem:[%s1 + $0x10] sm:$0xff]
      %v319 = vld [vmem:[%s1 + $0x18] sm:$0xff]
      %v320 = vld [vmem:[%s2] sm:$0x1]
      %v322 = vlaneseq
      %v323 = vshrl.u32 %v322, 7
      %v324 = vsub.s32 0, %v323
      %v325 = vrot.slane %v320, %v324
      %vm327 = vcmask 261120
      %v329 = vsel %vm327, %v315, 0
      %331 = vmatprep.subr.mxu0 0.0
      %332 = vmatpush1.msra.mxu0 %v316
      %333 = vmatprep.subr.mxu0 0.0
      %334 = vmatpush1.msra.mxu0 %v317
      %335 = vmatprep.subr.mxu0 0.0
      %336 = vmatpush1.msra.mxu0 %v318
      %337 = vmatprep.subr.mxu0 0.0
      %338 = vmatpush1.msra.mxu0 %v319
      %339 = vmatprep.subr.mxu0 0.0
      %340 = vmatpush1.msra.mxu0 0.0
      %341 = vmatprep.subr.mxu0 0.0
      %342 = vmatpush1.msra.mxu0 0.0
      %343 = vmatprep.subr.mxu0 0.0
      %344 = vmatpush1.msra.mxu0 0.0
      %345 = vmatprep.subr.mxu0 0.0
      %346 = vmatpush1.msra.mxu0 0.0
      %347 = vmatprep.subr.mxu0 0.0
      %348 = vmatpush1.msra.mxu0 0.0
      %349 = vmatprep.subr.mxu0 0.0
      %350 = vmatpush1.msra.mxu0 0.0
      %351 = vmatprep.subr.mxu0 0.0
      %352 = vmatpush1.msra.mxu0 0.0
      %353 = vmatprep.subr.mxu0 0.0
      %354 = vmatpush1.msra.mxu0 0.0
      %355 = vmatprep.subr.mxu0 0.0
      %356 = vmatpush1.msra.mxu0 0.0
      %357 = vmatprep.subr.mxu0 0.0
      %358 = vmatpush1.msra.mxu0 0.0
      %359 = vmatprep.subr.mxu0 0.0
      %360 = vmatpush1.msra.mxu0 0.0
      %361 = vmatprep.subr.mxu0 0.0
      %362 = vmatpush1.msra.mxu0 0.0
      %363 = vmatprep.subr.mxu0 0.0
      %364 = vmatpush1.msra.mxu0 0.0
      %365 = vmatprep.subr.mxu0 0.0
      %366 = vmatpush1.msra.mxu0 0.0
      %367 = vmatprep.subr.mxu0 0.0
      %368 = vmatpush1.msra.mxu0 0.0
      %369 = vmatprep.subr.mxu0 0.0
      %370 = vmatpush1.msra.mxu0 0.0
      %371 = vmatprep.subr.mxu0 0.0
      %372 = vmatpush1.msra.mxu0 0.0
      %373 = vmatprep.subr.mxu0 0.0
      %374 = vmatpush1.msra.mxu0 0.0
      %375 = vmatprep.subr.mxu0 0.0
      %376 = vmatpush1.msra.mxu0 0.0
      %377 = vmatprep.subr.mxu0 0.0
      %378 = vmatpush1.msra.mxu0 0.0
      %379 = vmatprep.subr.mxu0 0.0
      %380 = vmatpush1.msra.mxu0 0.0
      %381 = vmatprep.subr.mxu0 0.0
      %382 = vmatpush1.msra.mxu0 0.0
      %383 = vmatprep.subr.mxu0 0.0
      %384 = vmatpush1.msra.mxu0 0.0
      %385 = vmatprep.subr.mxu0 0.0
      %386 = vmatpush1.msra.mxu0 0.0
      %387 = vmatprep.subr.mxu0 0.0
      %388 = vmatpush1.msra.mxu0 0.0
      %389 = vmatprep.subr.mxu0 0.0
      %390 = vmatpush1.msra.mxu0 0.0
      %391 = vmatprep.subr.mxu0 0.0
      %392 = vmatpush1.msra.mxu0 0.0
      %393 = vmatprep.subr.mxu0 0.0
      %394 = vmatpush1.msra.mxu0 0.0
      %395 = vmatprep.mubr.f32.mxu0 0.0
      %396 = vmatmul.mubr.f32.gmra.mrb[0].mxu0 %v329
      %v397 = vpop.f32.mrb[0].mxu0
      %v398 = vadd.f32 %v325, %v397
      %v399 = vpop.f32.mrb[0].mxu0
      %400 = vdwg.mxu0
      %v401 = vld [vmem:[%s310] sm:$0x1]
      %403 = vrot.lane.b32.xlu0 %v398, 96
      %v404 = vpop.permute.xlu0 %403
      %vm405 = vcmask 31744
      %v406 = vsel %vm405, %v398, 0
      %v408 = vsel %vm405, %v404, 0
      %410 = vmatprep.subr.mxu0 0.0
      %411 = vmatpush1.xpose.msra.mxu0 %v408
      %412 = vmatprep.subr.mxu0 0.0
      %413 = vmatpush1.xpose.msra.mxu0 0.0
      %414 = vmatprep.subr.mxu0 0.0
      %415 = vmatpush1.xpose.msra.mxu0 0.0
      %416 = vmatprep.subr.mxu0 0.0
      %417 = vmatpush1.xpose.msra.mxu0 0.0
      %418 = vmatprep.subr.mxu0 0.0
      %419 = vmatpush1.xpose.msra.mxu0 0.0
      %420 = vmatprep.subr.mxu0 0.0
      %421 = vmatpush1.xpose.msra.mxu0 0.0
      %422 = vmatprep.subr.mxu0 0.0
      %423 = vmatpush1.xpose.msra.mxu0 0.0
      %424 = vmatprep.subr.mxu0 0.0
      %425 = vmatpush1.xpose.msra.mxu0 0.0
      %426 = vmatprep.subr.mxu0 0.0
      %427 = vmatpush1.xpose.msra.mxu0 0.0
      %428 = vmatprep.subr.mxu0 0.0
      %429 = vmatpush1.xpose.msra.mxu0 0.0
      %430 = vmatprep.subr.mxu0 0.0
      %431 = vmatpush1.xpose.msra.mxu0 0.0
      %432 = vmatprep.subr.mxu0 0.0
      %433 = vmatpush1.xpose.msra.mxu0 0.0
      %434 = vmatprep.subr.mxu0 0.0
      %435 = vmatpush1.xpose.msra.mxu0 0.0
      %436 = vmatprep.subr.mxu0 0.0
      %437 = vmatpush1.xpose.msra.mxu0 0.0
      %438 = vmatprep.subr.mxu0 0.0
      %439 = vmatpush1.xpose.msra.mxu0 0.0
      %440 = vmatprep.subr.mxu0 0.0
      %441 = vmatpush1.xpose.msra.mxu0 0.0
      %442 = vmatprep.subr.mxu0 0.0
      %443 = vmatpush1.xpose.msra.mxu0 0.0
      %444 = vmatprep.subr.mxu0 0.0
      %445 = vmatpush1.xpose.msra.mxu0 0.0
      %446 = vmatprep.subr.mxu0 0.0
      %447 = vmatpush1.xpose.msra.mxu0 0.0
      %448 = vmatprep.subr.mxu0 0.0
      %449 = vmatpush1.xpose.msra.mxu0 0.0
      %450 = vmatprep.subr.mxu0 0.0
      %451 = vmatpush1.xpose.msra.mxu0 0.0
      %452 = vmatprep.subr.mxu0 0.0
      %453 = vmatpush1.xpose.msra.mxu0 0.0
      %454 = vmatprep.subr.mxu0 0.0
      %455 = vmatpush1.xpose.msra.mxu0 0.0
      %456 = vmatprep.subr.mxu0 0.0
      %457 = vmatpush1.xpose.msra.mxu0 0.0
      %458 = vmatprep.subr.mxu0 0.0
      %459 = vmatpush1.xpose.msra.mxu0 0.0
      %460 = vmatprep.subr.mxu0 0.0
      %461 = vmatpush1.xpose.msra.mxu0 0.0
      %462 = vmatprep.subr.mxu0 0.0
      %463 = vmatpush1.xpose.msra.mxu0 0.0
      %464 = vmatprep.subr.mxu0 0.0
      %465 = vmatpush1.xpose.msra.mxu0 0.0
      %466 = vmatprep.subr.mxu0 0.0
      %467 = vmatpush1.xpose.msra.mxu0 0.0
      %468 = vmatprep.subr.mxu0 0.0
      %469 = vmatpush1.xpose.msra.mxu0 0.0
      %470 = vmatprep.subr.mxu0 0.0
      %471 = vmatpush1.xpose.msra.mxu0 0.0
      %472 = vmatprep.subr.mxu0 0.0
      %473 = vmatpush1.xpose.msra.mxu0 0.0
      %474 = vmatprep.mubr.f32.mxu0 0.0
      %475 = vmatmul.mubr.f32.gmra.mrb[0].mxu0 %v406
      %v476 = vpop.f32.mrb[0].mxu0
      %v477 = vadd.f32 0.0, %v476
      %v478 = vpop.f32.mrb[0].mxu0
      %479 = vdwg.mxu0
      %v480 = vmul.f32 %v477, 0.5
      %v482 = vlaneseq
      %v483 = vshrl.u32 %v482, 7
      %v484 = vsub.s32 0, %v483
      %v485 = vrot.slane %v401, %v484
      %v487 = vadd.f32 %v480, %v485
      %vm488 = vcmask 64512
      %v489 = vsel %vm488, %v487, -inf
      %490 = vmax.xlane.f32.xlu0 %v489
      %v491 = vpop.xlane.xlu0 %490
      %v492 = vsub.f32 %v487, %v491
      %v493 = vmul.f32 %v492, 1.442695
      %v494 = vpow.pop %v493
      %v495 = vsel %vm488, %v494, 0.0
      %496 = vadd.xlane.f32.xlu0 %v495
      %v497 = vpop.xlane.xlu0 %496
      %v498 = vrcp.pop %v497
      %v499 = vmul.f32 %v494, %v498
      %500 = vrot.lane.b32.xlu0 %v398, 64
      %v501 = vpop.permute.xlu0 %500
      %v504 = vsel %vm488, %v499, 0
      %506 = vmatprep.subr.mxu0 0.0
      %507 = vmatpush1.msra.mxu0 %v501
      %508 = vmatprep.subr.mxu0 0.0
      %509 = vmatpush1.msra.mxu0 0.0
      %510 = vmatprep.subr.mxu0 0.0
      %511 = vmatpush1.msra.mxu0 0.0
      %512 = vmatprep.subr.mxu0 0.0
      %513 = vmatpush1.msra.mxu0 0.0
      %514 = vmatprep.subr.mxu0 0.0
      %515 = vmatpush1.msra.mxu0 0.0
      %516 = vmatprep.subr.mxu0 0.0
      %517 = vmatpush1.msra.mxu0 0.0
      %518 = vmatprep.subr.mxu0 0.0
      %519 = vmatpush1.msra.mxu0 0.0
      %520 = vmatprep.subr.mxu0 0.0
      %521 = vmatpush1.msra.mxu0 0.0
      %522 = vmatprep.subr.mxu0 0.0
      %523 = vmatpush1.msra.mxu0 0.0
      %524 = vmatprep.subr.mxu0 0.0
      %525 = vmatpush1.msra.mxu0 0.0
      %526 = vmatprep.subr.mxu0 0.0
      %527 = vmatpush1.msra.mxu0 0.0
      %528 = vmatprep.subr.mxu0 0.0
      %529 = vmatpush1.msra.mxu0 0.0
      %530 = vmatprep.subr.mxu0 0.0
      %531 = vmatpush1.msra.mxu0 0.0
      %532 = vmatprep.subr.mxu0 0.0
      %533 = vmatpush1.msra.mxu0 0.0
      %534 = vmatprep.subr.mxu0 0.0
      %535 = vmatpush1.msra.mxu0 0.0
      %536 = vmatprep.subr.mxu0 0.0
      %537 = vmatpush1.msra.mxu0 0.0
      %538 = vmatprep.subr.mxu0 0.0
      %539 = vmatpush1.msra.mxu0 0.0
      %540 = vmatprep.subr.mxu0 0.0
      %541 = vmatpush1.msra.mxu0 0.0
      %542 = vmatprep.subr.mxu0 0.0
      %543 = vmatpush1.msra.mxu0 0.0
      %544 = vmatprep.subr.mxu0 0.0
      %545 = vmatpush1.msra.mxu0 0.0
      %546 = vmatprep.subr.mxu0 0.0
      %547 = vmatpush1.msra.mxu0 0.0
      %548 = vmatprep.subr.mxu0 0.0
      %549 = vmatpush1.msra.mxu0 0.0
      %550 = vmatprep.subr.mxu0 0.0
      %551 = vmatpush1.msra.mxu0 0.0
      %552 = vmatprep.subr.mxu0 0.0
      %553 = vmatpush1.msra.mxu0 0.0
      %554 = vmatprep.subr.mxu0 0.0
      %555 = vmatpush1.msra.mxu0 0.0
      %556 = vmatprep.subr.mxu0 0.0
      %557 = vmatpush1.msra.mxu0 0.0
      %558 = vmatprep.subr.mxu0 0.0
      %559 = vmatpush1.msra.mxu0 0.0
      %560 = vmatprep.subr.mxu0 0.0
      %561 = vmatpush1.msra.mxu0 0.0
      %562 = vmatprep.subr.mxu0 0.0
      %563 = vmatpush1.msra.mxu0 0.0
      %564 = vmatprep.subr.mxu0 0.0
      %565 = vmatpush1.msra.mxu0 0.0
      %566 = vmatprep.subr.mxu0 0.0
      %567 = vmatpush1.msra.mxu0 0.0
      %568 = vmatprep.subr.mxu0 0.0
      %569 = vmatpush1.msra.mxu0 0.0
      %570 = vmatprep.mubr.f32.mxu0 0.0
      %571 = vmatmul.mubr.f32.gmra.mrb[0].mxu0 %v504
      %v572 = vpop.f32.mrb[0].mxu0
      %v573 = vadd.f32 0.0, %v572
      %v574 = vpop.f32.mrb[0].mxu0
      %575 = vdwg.mxu0
      %576 = vrot.lane.b32.xlu0 %v398, 124
      %v577 = vpop.permute.xlu0 %576
      %578 = vrot.lane.b32.xlu0 %v398, 92
      %v579 = vpop.permute.xlu0 %578
      %v580 = vsel %vm405, %v577, 0
      %v582 = vsel %vm405, %v579, 0
      %584 = vmatprep.subr.mxu0 0.0
      %585 = vmatpush1.xpose.msra.mxu0 %v582
      %586 = vmatprep.subr.mxu0 0.0
      %587 = vmatpush1.xpose.msra.mxu0 0.0
      %588 = vmatprep.subr.mxu0 0.0
      %589 = vmatpush1.xpose.msra.mxu0 0.0
      %590 = vmatprep.subr.mxu0 0.0
      %591 = vmatpush1.xpose.msra.mxu0 0.0
      %592 = vmatprep.subr.mxu0 0.0
      %593 = vmatpush1.xpose.msra.mxu0 0.0
      %594 = vmatprep.subr.mxu0 0.0
      %595 = vmatpush1.xpose.msra.mxu0 0.0
      %596 = vmatprep.subr.mxu0 0.0
      %597 = vmatpush1.xpose.msra.mxu0 0.0
      %598 = vmatprep.subr.mxu0 0.0
      %599 = vmatpush1.xpose.msra.mxu0 0.0
      %600 = vmatprep.subr.mxu0 0.0
      %601 = vmatpush1.xpose.msra.mxu0 0.0
      %602 = vmatprep.subr.mxu0 0.0
      %603 = vmatpush1.xpose.msra.mxu0 0.0
      %604 = vmatprep.subr.mxu0 0.0
      %605 = vmatpush1.xpose.msra.mxu0 0.0
      %606 = vmatprep.subr.mxu0 0.0
      %607 = vmatpush1.xpose.msra.mxu0 0.0
      %608 = vmatprep.subr.mxu0 0.0
      %609 = vmatpush1.xpose.msra.mxu0 0.0
      %610 = vmatprep.subr.mxu0 0.0
      %611 = vmatpush1.xpose.msra.mxu0 0.0
      %612 = vmatprep.subr.mxu0 0.0
      %613 = vmatpush1.xpose.msra.mxu0 0.0
      %614 = vmatprep.subr.mxu0 0.0
      %615 = vmatpush1.xpose.msra.mxu0 0.0
      %616 = vmatprep.subr.mxu0 0.0
      %617 = vmatpush1.xpose.msra.mxu0 0.0
      %618 = vmatprep.subr.mxu0 0.0
      %619 = vmatpush1.xpose.msra.mxu0 0.0
      %620 = vmatprep.subr.mxu0 0.0
      %621 = vmatpush1.xpose.msra.mxu0 0.0
      %622 = vmatprep.subr.mxu0 0.0
      %623 = vmatpush1.xpose.msra.mxu0 0.0
      %624 = vmatprep.subr.mxu0 0.0
      %625 = vmatpush1.xpose.msra.mxu0 0.0
      %626 = vmatprep.subr.mxu0 0.0
      %627 = vmatpush1.xpose.msra.mxu0 0.0
      %628 = vmatprep.subr.mxu0 0.0
      %629 = vmatpush1.xpose.msra.mxu0 0.0
      %630 = vmatprep.subr.mxu0 0.0
      %631 = vmatpush1.xpose.msra.mxu0 0.0
      %632 = vmatprep.subr.mxu0 0.0
      %633 = vmatpush1.xpose.msra.mxu0 0.0
      %634 = vmatprep.subr.mxu0 0.0
      %635 = vmatpush1.xpose.msra.mxu0 0.0
      %636 = vmatprep.subr.mxu0 0.0
      %637 = vmatpush1.xpose.msra.mxu0 0.0
      %638 = vmatprep.subr.mxu0 0.0
      %639 = vmatpush1.xpose.msra.mxu0 0.0
      %640 = vmatprep.subr.mxu0 0.0
      %641 = vmatpush1.xpose.msra.mxu0 0.0
      %642 = vmatprep.subr.mxu0 0.0
      %643 = vmatpush1.xpose.msra.mxu0 0.0
      %644 = vmatprep.subr.mxu0 0.0
      %645 = vmatpush1.xpose.msra.mxu0 0.0
      %646 = vmatprep.subr.mxu0 0.0
      %647 = vmatpush1.xpose.msra.mxu0 0.0
      %648 = vmatprep.mubr.f32.mxu0 0.0
      %649 = vmatmul.mubr.f32.gmra.mrb[0].mxu0 %v580
      %v650 = vpop.f32.mrb[0].mxu0
      %v651 = vadd.f32 0.0, %v650
      %v652 = vpop.f32.mrb[0].mxu0
      %653 = vdwg.mxu0
      %v654 = vmul.f32 %v651, 0.5
      %v655 = vadd.f32 %v654, %v485
      %v656 = vsel %vm488, %v655, -inf
      %657 = vmax.xlane.f32.xlu0 %v656
      %v658 = vpop.xlane.xlu0 %657
      %v659 = vsub.f32 %v655, %v658
      %v660 = vmul.f32 %v659, 1.442695
      %v661 = vpow.pop %v660
      %v662 = vsel %vm488, %v661, 0.0
      %663 = vadd.xlane.f32.xlu0 %v662
      %v664 = vpop.xlane.xlu0 %663
      %v665 = vrcp.pop %v664
      %v666 = vmul.f32 %v661, %v665
      %667 = vrot.lane.b32.xlu0 %v398, 60
      %v668 = vpop.permute.xlu0 %667
      %v671 = vsel %vm488, %v666, 0
      %673 = vmatprep.subr.mxu0 0.0
      %674 = vmatpush1.msra.mxu0 %v668
      %675 = vmatprep.subr.mxu0 0.0
      %676 = vmatpush1.msra.mxu0 0.0
      %677 = vmatprep.subr.mxu0 0.0
      %678 = vmatpush1.msra.mxu0 0.0
      %679 = vmatprep.subr.mxu0 0.0
      %680 = vmatpush1.msra.mxu0 0.0
      %681 = vmatprep.subr.mxu0 0.0
      %682 = vmatpush1.msra.mxu0 0.0
      %683 = vmatprep.subr.mxu0 0.0
      %684 = vmatpush1.msra.mxu0 0.0
      %685 = vmatprep.subr.mxu0 0.0
      %686 = vmatpush1.msra.mxu0 0.0
      %687 = vmatprep.subr.mxu0 0.0
      %688 = vmatpush1.msra.mxu0 0.0
      %689 = vmatprep.subr.mxu0 0.0
      %690 = vmatpush1.msra.mxu0 0.0
      %691 = vmatprep.subr.mxu0 0.0
      %692 = vmatpush1.msra.mxu0 0.0
      %693 = vmatprep.subr.mxu0 0.0
      %694 = vmatpush1.msra.mxu0 0.0
      %695 = vmatprep.subr.mxu0 0.0
      %696 = vmatpush1.msra.mxu0 0.0
      %697 = vmatprep.subr.mxu0 0.0
      %698 = vmatpush1.msra.mxu0 0.0
      %699 = vmatprep.subr.mxu0 0.0
      %700 = vmatpush1.msra.mxu0 0.0
      %701 = vmatprep.subr.mxu0 0.0
      %702 = vmatpush1.msra.mxu0 0.0
      %703 = vmatprep.subr.mxu0 0.0
      %704 = vmatpush1.msra.mxu0 0.0
      %705 = vmatprep.subr.mxu0 0.0
      %706 = vmatpush1.msra.mxu0 0.0
      %707 = vmatprep.subr.mxu0 0.0
      %708 = vmatpush1.msra.mxu0 0.0
      %709 = vmatprep.subr.mxu0 0.0
      %710 = vmatpush1.msra.mxu0 0.0
      %711 = vmatprep.subr.mxu0 0.0
      %712 = vmatpush1.msra.mxu0 0.0
      %713 = vmatprep.subr.mxu0 0.0
      %714 = vmatpush1.msra.mxu0 0.0
      %715 = vmatprep.subr.mxu0 0.0
      %716 = vmatpush1.msra.mxu0 0.0
      %717 = vmatprep.subr.mxu0 0.0
      %718 = vmatpush1.msra.mxu0 0.0
      %719 = vmatprep.subr.mxu0 0.0
      %720 = vmatpush1.msra.mxu0 0.0
      %721 = vmatprep.subr.mxu0 0.0
      %722 = vmatpush1.msra.mxu0 0.0
      %723 = vmatprep.subr.mxu0 0.0
      %724 = vmatpush1.msra.mxu0 0.0
      %725 = vmatprep.subr.mxu0 0.0
      %726 = vmatpush1.msra.mxu0 0.0
      %727 = vmatprep.subr.mxu0 0.0
      %728 = vmatpush1.msra.mxu0 0.0
      %729 = vmatprep.subr.mxu0 0.0
      %730 = vmatpush1.msra.mxu0 0.0
      %731 = vmatprep.subr.mxu0 0.0
      %732 = vmatpush1.msra.mxu0 0.0
      %733 = vmatprep.subr.mxu0 0.0
      %734 = vmatpush1.msra.mxu0 0.0
      %735 = vmatprep.subr.mxu0 0.0
      %736 = vmatpush1.msra.mxu0 0.0
      %737 = vmatprep.mubr.f32.mxu0 0.0
      %738 = vmatmul.mubr.f32.gmra.mrb[0].mxu0 %v671
      %v739 = vpop.f32.mrb[0].mxu0
      %v740 = vadd.f32 0.0, %v739
      %v741 = vpop.f32.mrb[0].mxu0
      %742 = vdwg.mxu0
      %743 = vrot.lane.b32.xlu0 %v398, 120
      %v744 = vpop.permute.xlu0 %743
      %745 = vrot.lane.b32.xlu0 %v398, 88
      %v746 = vpop.permute.xlu0 %745
      %v747 = vsel %vm405, %v744, 0
      %v749 = vsel %vm405, %v746, 0
      %751 = vmatprep.subr.mxu0 0.0
      %752 = vmatpush1.xpose.msra.mxu0 %v749
      %753 = vmatprep.subr.mxu0 0.0
      %754 = vmatpush1.xpose.msra.mxu0 0.0
      %755 = vmatprep.subr.mxu0 0.0
      %756 = vmatpush1.xpose.msra.mxu0 0.0
      %757 = vmatprep.subr.mxu0 0.0
      %758 = vmatpush1.xpose.msra.mxu0 0.0
      %759 = vmatprep.subr.mxu0 0.0
      %760 = vmatpush1.xpose.msra.mxu0 0.0
      %761 = vmatprep.subr.mxu0 0.0
      %762 = vmatpush1.xpose.msra.mxu0 0.0
      %763 = vmatprep.subr.mxu0 0.0
      %764 = vmatpush1.xpose.msra.mxu0 0.0
      %765 = vmatprep.subr.mxu0 0.0
      %766 = vmatpush1.xpose.msra.mxu0 0.0
      %767 = vmatprep.subr.mxu0 0.0
      %768 = vmatpush1.xpose.msra.mxu0 0.0
      %769 = vmatprep.subr.mxu0 0.0
      %770 = vmatpush1.xpose.msra.mxu0 0.0
      %771 = vmatprep.subr.mxu0 0.0
      %772 = vmatpush1.xpose.msra.mxu0 0.0
      %773 = vmatprep.subr.mxu0 0.0
      %774 = vmatpush1.xpose.msra.mxu0 0.0
      %775 = vmatprep.subr.mxu0 0.0
      %776 = vmatpush1.xpose.msra.mxu0 0.0
      %777 = vmatprep.subr.mxu0 0.0
      %778 = vmatpush1.xpose.msra.mxu0 0.0
      %779 = vmatprep.subr.mxu0 0.0
      %780 = vmatpush1.xpose.msra.mxu0 0.0
      %781 = vmatprep.subr.mxu0 0.0
      %782 = vmatpush1.xpose.msra.mxu0 0.0
      %783 = vmatprep.subr.mxu0 0.0
      %784 = vmatpush1.xpose.msra.mxu0 0.0
      %785 = vmatprep.subr.mxu0 0.0
      %786 = vmatpush1.xpose.msra.mxu0 0.0
      %787 = vmatprep.subr.mxu0 0.0
      %788 = vmatpush1.xpose.msra.mxu0 0.0
      %789 = vmatprep.subr.mxu0 0.0
      %790 = vmatpush1.xpose.msra.mxu0 0.0
      %791 = vmatprep.subr.mxu0 0.0
      %792 = vmatpush1.xpose.msra.mxu0 0.0
      %793 = vmatprep.subr.mxu0 0.0
      %794 = vmatpush1.xpose.msra.mxu0 0.0
      %795 = vmatprep.subr.mxu0 0.0
      %796 = vmatpush1.xpose.msra.mxu0 0.0
      %797 = vmatprep.subr.mxu0 0.0
      %798 = vmatpush1.xpose.msra.mxu0 0.0
      %799 = vmatprep.subr.mxu0 0.0
      %800 = vmatpush1.xpose.msra.mxu0 0.0
      %801 = vmatprep.subr.mxu0 0.0
      %802 = vmatpush1.xpose.msra.mxu0 0.0
      %803 = vmatprep.subr.mxu0 0.0
      %804 = vmatpush1.xpose.msra.mxu0 0.0
      %805 = vmatprep.subr.mxu0 0.0
      %806 = vmatpush1.xpose.msra.mxu0 0.0
      %807 = vmatprep.subr.mxu0 0.0
      %808 = vmatpush1.xpose.msra.mxu0 0.0
      %809 = vmatprep.subr.mxu0 0.0
      %810 = vmatpush1.xpose.msra.mxu0 0.0
      %811 = vmatprep.subr.mxu0 0.0
      %812 = vmatpush1.xpose.msra.mxu0 0.0
      %813 = vmatprep.subr.mxu0 0.0
      %814 = vmatpush1.xpose.msra.mxu0 0.0
      %815 = vmatprep.mubr.f32.mxu0 0.0
      %816 = vmatmul.mubr.f32.gmra.mrb[0].mxu0 %v747
      %v817 = vpop.f32.mrb[0].mxu0
      %v818 = vadd.f32 0.0, %v817
      %v819 = vpop.f32.mrb[0].mxu0
      %820 = vdwg.mxu0
      %v821 = vmul.f32 %v818, 0.5
      %v822 = vadd.f32 %v821, %v485
      %v823 = vsel %vm488, %v822, -inf
      %824 = vmax.xlane.f32.xlu0 %v823
      %v825 = vpop.xlane.xlu0 %824
      %v826 = vsub.f32 %v822, %v825
      %v827 = vmul.f32 %v826, 1.442695
      %v828 = vpow.pop %v827
      %v829 = vsel %vm488, %v828, 0.0
      %830 = vadd.xlane.f32.xlu0 %v829
      %v831 = vpop.xlane.xlu0 %830
      %v832 = vrcp.pop %v831
      %v833 = vmul.f32 %v828, %v832
      %834 = vrot.lane.b32.xlu0 %v398, 56
      %v835 = vpop.permute.xlu0 %834
      %v838 = vsel %vm488, %v833, 0
      %840 = vmatprep.subr.mxu0 0.0
      %841 = vmatpush1.msra.mxu0 %v835
      %842 = vmatprep.subr.mxu0 0.0
      %843 = vmatpush1.msra.mxu0 0.0
      %844 = vmatprep.subr.mxu0 0.0
      %845 = vmatpush1.msra.mxu0 0.0
      %846 = vmatprep.subr.mxu0 0.0
      %847 = vmatpush1.msra.mxu0 0.0
      %848 = vmatprep.subr.mxu0 0.0
      %849 = vmatpush1.msra.mxu0 0.0
      %850 = vmatprep.subr.mxu0 0.0
      %851 = vmatpush1.msra.mxu0 0.0
      %852 = vmatprep.subr.mxu0 0.0
      %853 = vmatpush1.msra.mxu0 0.0
      %854 = vmatprep.subr.mxu0 0.0
      %855 = vmatpush1.msra.mxu0 0.0
      %856 = vmatprep.subr.mxu0 0.0
      %857 = vmatpush1.msra.mxu0 0.0
      %858 = vmatprep.subr.mxu0 0.0
      %859 = vmatpush1.msra.mxu0 0.0
      %860 = vmatprep.subr.mxu0 0.0
      %861 = vmatpush1.msra.mxu0 0.0
      %862 = vmatprep.subr.mxu0 0.0
      %863 = vmatpush1.msra.mxu0 0.0
      %864 = vmatprep.subr.mxu0 0.0
      %865 = vmatpush1.msra.mxu0 0.0
      %866 = vmatprep.subr.mxu0 0.0
      %867 = vmatpush1.msra.mxu0 0.0
      %868 = vmatprep.subr.mxu0 0.0
      %869 = vmatpush1.msra.mxu0 0.0
      %870 = vmatprep.subr.mxu0 0.0
      %871 = vmatpush1.msra.mxu0 0.0
      %872 = vmatprep.subr.mxu0 0.0
      %873 = vmatpush1.msra.mxu0 0.0
      %874 = vmatprep.subr.mxu0 0.0
      %875 = vmatpush1.msra.mxu0 0.0
      %876 = vmatprep.subr.mxu0 0.0
      %877 = vmatpush1.msra.mxu0 0.0
      %878 = vmatprep.subr.mxu0 0.0
      %879 = vmatpush1.msra.mxu0 0.0
      %880 = vmatprep.subr.mxu0 0.0
      %881 = vmatpush1.msra.mxu0 0.0
      %882 = vmatprep.subr.mxu0 0.0
      %883 = vmatpush1.msra.mxu0 0.0
      %884 = vmatprep.subr.mxu0 0.0
      %885 = vmatpush1.msra.mxu0 0.0
      %886 = vmatprep.subr.mxu0 0.0
      %887 = vmatpush1.msra.mxu0 0.0
      %888 = vmatprep.subr.mxu0 0.0
      %889 = vmatpush1.msra.mxu0 0.0
      %890 = vmatprep.subr.mxu0 0.0
      %891 = vmatpush1.msra.mxu0 0.0
      %892 = vmatprep.subr.mxu0 0.0
      %893 = vmatpush1.msra.mxu0 0.0
      %894 = vmatprep.subr.mxu0 0.0
      %895 = vmatpush1.msra.mxu0 0.0
      %896 = vmatprep.subr.mxu0 0.0
      %897 = vmatpush1.msra.mxu0 0.0
      %898 = vmatprep.subr.mxu0 0.0
      %899 = vmatpush1.msra.mxu0 0.0
      %900 = vmatprep.subr.mxu0 0.0
      %901 = vmatpush1.msra.mxu0 0.0
      %902 = vmatprep.subr.mxu0 0.0
      %903 = vmatpush1.msra.mxu0 0.0
      %904 = vmatprep.mubr.f32.mxu0 0.0
      %905 = vmatmul.mubr.f32.gmra.mrb[0].mxu0 %v838
      %v906 = vpop.f32.mrb[0].mxu0
      %v907 = vadd.f32 0.0, %v906
      %v908 = vpop.f32.mrb[0].mxu0
      %909 = vdwg.mxu0
      %910 = vrot.lane.b32.xlu0 %v398, 116
      %v911 = vpop.permute.xlu0 %910
      %912 = vrot.lane.b32.xlu0 %v398, 84
      %v913 = vpop.permute.xlu0 %912
      %v914 = vsel %vm405, %v911, 0
      %v916 = vsel %vm405, %v913, 0
      %918 = vmatprep.subr.mxu0 0.0
      %919 = vmatpush1.xpose.msra.mxu0 %v916
      %920 = vmatprep.subr.mxu0 0.0
      %921 = vmatpush1.xpose.msra.mxu0 0.0
      %922 = vmatprep.subr.mxu0 0.0
      %923 = vmatpush1.xpose.msra.mxu0 0.0
      %924 = vmatprep.subr.mxu0 0.0
      %925 = vmatpush1.xpose.msra.mxu0 0.0
      %926 = vmatprep.subr.mxu0 0.0
      %927 = vmatpush1.xpose.msra.mxu0 0.0
      %928 = vmatprep.subr.mxu0 0.0
      %929 = vmatpush1.xpose.msra.mxu0 0.0
      %930 = vmatprep.subr.mxu0 0.0
      %931 = vmatpush1.xpose.msra.mxu0 0.0
      %932 = vmatprep.subr.mxu0 0.0
      %933 = vmatpush1.xpose.msra.mxu0 0.0
      %934 = vmatprep.subr.mxu0 0.0
      %935 = vmatpush1.xpose.msra.mxu0 0.0
      %936 = vmatprep.subr.mxu0 0.0
      %937 = vmatpush1.xpose.msra.mxu0 0.0
      %938 = vmatprep.subr.mxu0 0.0
      %939 = vmatpush1.xpose.msra.mxu0 0.0
      %940 = vmatprep.subr.mxu0 0.0
      %941 = vmatpush1.xpose.msra.mxu0 0.0
      %942 = vmatprep.subr.mxu0 0.0
      %943 = vmatpush1.xpose.msra.mxu0 0.0
      %944 = vmatprep.subr.mxu0 0.0
      %945 = vmatpush1.xpose.msra.mxu0 0.0
      %946 = vmatprep.subr.mxu0 0.0
      %947 = vmatpush1.xpose.msra.mxu0 0.0
      %948 = vmatprep.subr.mxu0 0.0
      %949 = vmatpush1.xpose.msra.mxu0 0.0
      %950 = vmatprep.subr.mxu0 0.0
      %951 = vmatpush1.xpose.msra.mxu0 0.0
      %952 = vmatprep.subr.mxu0 0.0
      %953 = vmatpush1.xpose.msra.mxu0 0.0
      %954 = vmatprep.subr.mxu0 0.0
      %955 = vmatpush1.xpose.msra.mxu0 0.0
      %956 = vmatprep.subr.mxu0 0.0
      %957 = vmatpush1.xpose.msra.mxu0 0.0
      %958 = vmatprep.subr.mxu0 0.0
      %959 = vmatpush1.xpose.msra.mxu0 0.0
      %960 = vmatprep.subr.mxu0 0.0
      %961 = vmatpush1.xpose.msra.mxu0 0.0
      %962 = vmatprep.subr.mxu0 0.0
      %963 = vmatpush1.xpose.msra.mxu0 0.0
      %964 = vmatprep.subr.mxu0 0.0
      %965 = vmatpush1.xpose.msra.mxu0 0.0
      %966 = vmatprep.subr.mxu0 0.0
      %967 = vmatpush1.xpose.msra.mxu0 0.0
      %968 = vmatprep.subr.mxu0 0.0
      %969 = vmatpush1.xpose.msra.mxu0 0.0
      %970 = vmatprep.subr.mxu0 0.0
      %971 = vmatpush1.xpose.msra.mxu0 0.0
      %972 = vmatprep.subr.mxu0 0.0
      %973 = vmatpush1.xpose.msra.mxu0 0.0
      %974 = vmatprep.subr.mxu0 0.0
      %975 = vmatpush1.xpose.msra.mxu0 0.0
      %976 = vmatprep.subr.mxu0 0.0
      %977 = vmatpush1.xpose.msra.mxu0 0.0
      %978 = vmatprep.subr.mxu0 0.0
      %979 = vmatpush1.xpose.msra.mxu0 0.0
      %980 = vmatprep.subr.mxu0 0.0
      %981 = vmatpush1.xpose.msra.mxu0 0.0
      %982 = vmatprep.mubr.f32.mxu0 0.0
      %983 = vmatmul.mubr.f32.gmra.mrb[0].mxu0 %v914
      %v984 = vpop.f32.mrb[0].mxu0
      %v985 = vadd.f32 0.0, %v984
      %v986 = vpop.f32.mrb[0].mxu0
      %987 = vdwg.mxu0
      %v988 = vmul.f32 %v985, 0.5
      %v989 = vadd.f32 %v988, %v485
      %v990 = vsel %vm488, %v989, -inf
      %991 = vmax.xlane.f32.xlu0 %v990
      %v992 = vpop.xlane.xlu0 %991
      %v993 = vsub.f32 %v989, %v992
      %v994 = vmul.f32 %v993, 1.442695
      %v995 = vpow.pop %v994
      %v996 = vsel %vm488, %v995, 0.0
      %997 = vadd.xlane.f32.xlu0 %v996
      %v998 = vpop.xlane.xlu0 %997
      %v999 = vrcp.pop %v998
      %v1000 = vmul.f32 %v995, %v999
      %1001 = vrot.lane.b32.xlu0 %v398, 52
      %v1002 = vpop.permute.xlu0 %1001
      %v1005 = vsel %vm488, %v1000, 0
      %1007 = vmatprep.subr.mxu0 0.0
      %1008 = vmatpush1.msra.mxu0 %v1002
      %1009 = vmatprep.subr.mxu0 0.0
      %1010 = vmatpush1.msra.mxu0 0.0
      %1011 = vmatprep.subr.mxu0 0.0
      %1012 = vmatpush1.msra.mxu0 0.0
      %1013 = vmatprep.subr.mxu0 0.0
      %1014 = vmatpush1.msra.mxu0 0.0
      %1015 = vmatprep.subr.mxu0 0.0
      %1016 = vmatpush1.msra.mxu0 0.0
      %1017 = vmatprep.subr.mxu0 0.0
      %1018 = vmatpush1.msra.mxu0 0.0
      %1019 = vmatprep.subr.mxu0 0.0
      %1020 = vmatpush1.msra.mxu0 0.0
      %1021 = vmatprep.subr.mxu0 0.0
      %1022 = vmatpush1.msra.mxu0 0.0
      %1023 = vmatprep.subr.mxu0 0.0
      %1024 = vmatpush1.msra.mxu0 0.0
      %1025 = vmatprep.subr.mxu0 0.0
      %1026 = vmatpush1.msra.mxu0 0.0
      %1027 = vmatprep.subr.mxu0 0.0
      %1028 = vmatpush1.msra.mxu0 0.0
      %1029 = vmatprep.subr.mxu0 0.0
      %1030 = vmatpush1.msra.mxu0 0.0
      %1031 = vmatprep.subr.mxu0 0.0
      %1032 = vmatpush1.msra.mxu0 0.0
      %1033 = vmatprep.subr.mxu0 0.0
      %1034 = vmatpush1.msra.mxu0 0.0
      %1035 = vmatprep.subr.mxu0 0.0
      %1036 = vmatpush1.msra.mxu0 0.0
      %1037 = vmatprep.subr.mxu0 0.0
      %1038 = vmatpush1.msra.mxu0 0.0
      %1039 = vmatprep.subr.mxu0 0.0
      %1040 = vmatpush1.msra.mxu0 0.0
      %1041 = vmatprep.subr.mxu0 0.0
      %1042 = vmatpush1.msra.mxu0 0.0
      %1043 = vmatprep.subr.mxu0 0.0
      %1044 = vmatpush1.msra.mxu0 0.0
      %1045 = vmatprep.subr.mxu0 0.0
      %1046 = vmatpush1.msra.mxu0 0.0
      %1047 = vmatprep.subr.mxu0 0.0
      %1048 = vmatpush1.msra.mxu0 0.0
      %1049 = vmatprep.subr.mxu0 0.0
      %1050 = vmatpush1.msra.mxu0 0.0
      %1051 = vmatprep.subr.mxu0 0.0
      %1052 = vmatpush1.msra.mxu0 0.0
      %1053 = vmatprep.subr.mxu0 0.0
      %1054 = vmatpush1.msra.mxu0 0.0
      %1055 = vmatprep.subr.mxu0 0.0
      %1056 = vmatpush1.msra.mxu0 0.0
      %1057 = vmatprep.subr.mxu0 0.0
      %1058 = vmatpush1.msra.mxu0 0.0
      %1059 = vmatprep.subr.mxu0 0.0
      %1060 = vmatpush1.msra.mxu0 0.0
      %1061 = vmatprep.subr.mxu0 0.0
      %1062 = vmatpush1.msra.mxu0 0.0
      %1063 = vmatprep.subr.mxu0 0.0
      %1064 = vmatpush1.msra.mxu0 0.0
      %1065 = vmatprep.subr.mxu0 0.0
      %1066 = vmatpush1.msra.mxu0 0.0
      %1067 = vmatprep.subr.mxu0 0.0
      %1068 = vmatpush1.msra.mxu0 0.0
      %1069 = vmatprep.subr.mxu0 0.0
      %1070 = vmatpush1.msra.mxu0 0.0
      %1071 = vmatprep.mubr.f32.mxu0 0.0
      %1072 = vmatmul.mubr.f32.gmra.mrb[0].mxu0 %v1005
      %v1073 = vpop.f32.mrb[0].mxu0
      %v1074 = vadd.f32 0.0, %v1073
      %v1075 = vpop.f32.mrb[0].mxu0
      %1076 = vdwg.mxu0
      %1077 = vrot.lane.b32.xlu0 %v398, 112
      %v1078 = vpop.permute.xlu0 %1077
      %1079 = vrot.lane.b32.xlu0 %v398, 80
      %v1080 = vpop.permute.xlu0 %1079
      %v1081 = vsel %vm405, %v1078, 0
      %v1083 = vsel %vm405, %v1080, 0
      %1085 = vmatprep.subr.mxu0 0.0
      %1086 = vmatpush1.xpose.msra.mxu0 %v1083
      %1087 = vmatprep.subr.mxu0 0.0
      %1088 = vmatpush1.xpose.msra.mxu0 0.0
      %1089 = vmatprep.subr.mxu0 0.0
      %1090 = vmatpush1.xpose.msra.mxu0 0.0
      %1091 = vmatprep.subr.mxu0 0.0
      %1092 = vmatpush1.xpose.msra.mxu0 0.0
      %1093 = vmatprep.subr.mxu0 0.0
      %1094 = vmatpush1.xpose.msra.mxu0 0.0
      %1095 = vmatprep.subr.mxu0 0.0
      %1096 = vmatpush1.xpose.msra.mxu0 0.0
      %1097 = vmatprep.subr.mxu0 0.0
      %1098 = vmatpush1.xpose.msra.mxu0 0.0
      %1099 = vmatprep.subr.mxu0 0.0
      %1100 = vmatpush1.xpose.msra.mxu0 0.0
      %1101 = vmatprep.subr.mxu0 0.0
      %1102 = vmatpush1.xpose.msra.mxu0 0.0
      %1103 = vmatprep.subr.mxu0 0.0
      %1104 = vmatpush1.xpose.msra.mxu0 0.0
      %1105 = vmatprep.subr.mxu0 0.0
      %1106 = vmatpush1.xpose.msra.mxu0 0.0
      %1107 = vmatprep.subr.mxu0 0.0
      %1108 = vmatpush1.xpose.msra.mxu0 0.0
      %1109 = vmatprep.subr.mxu0 0.0
      %1110 = vmatpush1.xpose.msra.mxu0 0.0
      %1111 = vmatprep.subr.mxu0 0.0
      %1112 = vmatpush1.xpose.msra.mxu0 0.0
      %1113 = vmatprep.subr.mxu0 0.0
      %1114 = vmatpush1.xpose.msra.mxu0 0.0
      %1115 = vmatprep.subr.mxu0 0.0
      %1116 = vmatpush1.xpose.msra.mxu0 0.0
      %1117 = vmatprep.subr.mxu0 0.0
      %1118 = vmatpush1.xpose.msra.mxu0 0.0
      %1119 = vmatprep.subr.mxu0 0.0
      %1120 = vmatpush1.xpose.msra.mxu0 0.0
      %1121 = vmatprep.subr.mxu0 0.0
      %1122 = vmatpush1.xpose.msra.mxu0 0.0
      %1123 = vmatprep.subr.mxu0 0.0
      %1124 = vmatpush1.xpose.msra.mxu0 0.0
      %1125 = vmatprep.subr.mxu0 0.0
      %1126 = vmatpush1.xpose.msra.mxu0 0.0
      %1127 = vmatprep.subr.mxu0 0.0
      %1128 = vmatpush1.xpose.msra.mxu0 0.0
      %1129 = vmatprep.subr.mxu0 0.0
      %1130 = vmatpush1.xpose.msra.mxu0 0.0
      %1131 = vmatprep.subr.mxu0 0.0
      %1132 = vmatpush1.xpose.msra.mxu0 0.0
      %1133 = vmatprep.subr.mxu0 0.0
      %1134 = vmatpush1.xpose.msra.mxu0 0.0
      %1135 = vmatprep.subr.mxu0 0.0
      %1136 = vmatpush1.xpose.msra.mxu0 0.0
      %1137 = vmatprep.subr.mxu0 0.0
      %1138 = vmatpush1.xpose.msra.mxu0 0.0
      %1139 = vmatprep.subr.mxu0 0.0
      %1140 = vmatpush1.xpose.msra.mxu0 0.0
      %1141 = vmatprep.subr.mxu0 0.0
      %1142 = vmatpush1.xpose.msra.mxu0 0.0
      %1143 = vmatprep.subr.mxu0 0.0
      %1144 = vmatpush1.xpose.msra.mxu0 0.0
      %1145 = vmatprep.subr.mxu0 0.0
      %1146 = vmatpush1.xpose.msra.mxu0 0.0
      %1147 = vmatprep.subr.mxu0 0.0
      %1148 = vmatpush1.xpose.msra.mxu0 0.0
      %1149 = vmatprep.mubr.f32.mxu0 0.0
      %1150 = vmatmul.mubr.f32.gmra.mrb[0].mxu0 %v1081
      %v1151 = vpop.f32.mrb[0].mxu0
      %v1152 = vadd.f32 0.0, %v1151
      %v1153 = vpop.f32.mrb[0].mxu0
      %1154 = vdwg.mxu0
      %v1155 = vmul.f32 %v1152, 0.5
      %v1156 = vadd.f32 %v1155, %v485
      %v1157 = vsel %vm488, %v1156, -inf
      %1158 = vmax.xlane.f32.xlu0 %v1157
      %v1159 = vpop.xlane.xlu0 %1158
      %v1160 = vsub.f32 %v1156, %v1159
      %v1161 = vmul.f32 %v1160, 1.442695
      %v1162 = vpow.pop %v1161
      %v1163 = vsel %vm488, %v1162, 0.0
      %1164 = vadd.xlane.f32.xlu0 %v1163
      %v1165 = vpop.xlane.xlu0 %1164
      %v1166 = vrcp.pop %v1165
      %v1167 = vmul.f32 %v1162, %v1166
      %1168 = vrot.lane.b32.xlu0 %v398, 48
      %v1169 = vpop.permute.xlu0 %1168
      %v1172 = vsel %vm488, %v1167, 0
      %1174 = vmatprep.subr.mxu0 0.0
      %1175 = vmatpush1.msra.mxu0 %v1169
      %1176 = vmatprep.subr.mxu0 0.0
      %1177 = vmatpush1.msra.mxu0 0.0
      %1178 = vmatprep.subr.mxu0 0.0
      %1179 = vmatpush1.msra.mxu0 0.0
      %1180 = vmatprep.subr.mxu0 0.0
      %1181 = vmatpush1.msra.mxu0 0.0
      %1182 = vmatprep.subr.mxu0 0.0
      %1183 = vmatpush1.msra.mxu0 0.0
      %1184 = vmatprep.subr.mxu0 0.0
      %1185 = vmatpush1.msra.mxu0 0.0
      %1186 = vmatprep.subr.mxu0 0.0
      %1187 = vmatpush1.msra.mxu0 0.0
      %1188 = vmatprep.subr.mxu0 0.0
      %1189 = vmatpush1.msra.mxu0 0.0
      %1190 = vmatprep.subr.mxu0 0.0
      %1191 = vmatpush1.msra.mxu0 0.0
      %1192 = vmatprep.subr.mxu0 0.0
      %1193 = vmatpush1.msra.mxu0 0.0
      %1194 = vmatprep.subr.mxu0 0.0
      %1195 = vmatpush1.msra.mxu0 0.0
      %1196 = vmatprep.subr.mxu0 0.0
      %1197 = vmatpush1.msra.mxu0 0.0
      %1198 = vmatprep.subr.mxu0 0.0
      %1199 = vmatpush1.msra.mxu0 0.0
      %1200 = vmatprep.subr.mxu0 0.0
      %1201 = vmatpush1.msra.mxu0 0.0
      %1202 = vmatprep.subr.mxu0 0.0
      %1203 = vmatpush1.msra.mxu0 0.0
      %1204 = vmatprep.subr.mxu0 0.0
      %1205 = vmatpush1.msra.mxu0 0.0
      %1206 = vmatprep.subr.mxu0 0.0
      %1207 = vmatpush1.msra.mxu0 0.0
      %1208 = vmatprep.subr.mxu0 0.0
      %1209 = vmatpush1.msra.mxu0 0.0
      %1210 = vmatprep.subr.mxu0 0.0
      %1211 = vmatpush1.msra.mxu0 0.0
      %1212 = vmatprep.subr.mxu0 0.0
      %1213 = vmatpush1.msra.mxu0 0.0
      %1214 = vmatprep.subr.mxu0 0.0
      %1215 = vmatpush1.msra.mxu0 0.0
      %1216 = vmatprep.subr.mxu0 0.0
      %1217 = vmatpush1.msra.mxu0 0.0
      %1218 = vmatprep.subr.mxu0 0.0
      %1219 = vmatpush1.msra.mxu0 0.0
      %1220 = vmatprep.subr.mxu0 0.0
      %1221 = vmatpush1.msra.mxu0 0.0
      %1222 = vmatprep.subr.mxu0 0.0
      %1223 = vmatpush1.msra.mxu0 0.0
      %1224 = vmatprep.subr.mxu0 0.0
      %1225 = vmatpush1.msra.mxu0 0.0
      %1226 = vmatprep.subr.mxu0 0.0
      %1227 = vmatpush1.msra.mxu0 0.0
      %1228 = vmatprep.subr.mxu0 0.0
      %1229 = vmatpush1.msra.mxu0 0.0
      %1230 = vmatprep.subr.mxu0 0.0
      %1231 = vmatpush1.msra.mxu0 0.0
      %1232 = vmatprep.subr.mxu0 0.0
      %1233 = vmatpush1.msra.mxu0 0.0
      %1234 = vmatprep.subr.mxu0 0.0
      %1235 = vmatpush1.msra.mxu0 0.0
      %1236 = vmatprep.subr.mxu0 0.0
      %1237 = vmatpush1.msra.mxu0 0.0
      %1238 = vmatprep.mubr.f32.mxu0 0.0
      %1239 = vmatmul.mubr.f32.gmra.mrb[0].mxu0 %v1172
      %v1240 = vpop.f32.mrb[0].mxu0
      %v1241 = vadd.f32 0.0, %v1240
      %v1242 = vpop.f32.mrb[0].mxu0
      %1243 = vdwg.mxu0
      %1244 = vrot.lane.b32.xlu0 %v398, 108
      %v1245 = vpop.permute.xlu0 %1244
      %1246 = vrot.lane.b32.xlu0 %v398, 76
      %v1247 = vpop.permute.xlu0 %1246
      %v1248 = vsel %vm405, %v1245, 0
      %v1250 = vsel %vm405, %v1247, 0
      %1252 = vmatprep.subr.mxu0 0.0
      %1253 = vmatpush1.xpose.msra.mxu0 %v1250
      %1254 = vmatprep.subr.mxu0 0.0
      %1255 = vmatpush1.xpose.msra.mxu0 0.0
      %1256 = vmatprep.subr.mxu0 0.0
      %1257 = vmatpush1.xpose.msra.mxu0 0.0
      %1258 = vmatprep.subr.mxu0 0.0
      %1259 = vmatpush1.xpose.msra.mxu0 0.0
      %1260 = vmatprep.subr.mxu0 0.0
      %1261 = vmatpush1.xpose.msra.mxu0 0.0
      %1262 = vmatprep.subr.mxu0 0.0
      %1263 = vmatpush1.xpose.msra.mxu0 0.0
      %1264 = vmatprep.subr.mxu0 0.0
      %1265 = vmatpush1.xpose.msra.mxu0 0.0
      %1266 = vmatprep.subr.mxu0 0.0
      %1267 = vmatpush1.xpose.msra.mxu0 0.0
      %1268 = vmatprep.subr.mxu0 0.0
      %1269 = vmatpush1.xpose.msra.mxu0 0.0
      %1270 = vmatprep.subr.mxu0 0.0
      %1271 = vmatpush1.xpose.msra.mxu0 0.0
      %1272 = vmatprep.subr.mxu0 0.0
      %1273 = vmatpush1.xpose.msra.mxu0 0.0
      %1274 = vmatprep.subr.mxu0 0.0
      %1275 = vmatpush1.xpose.msra.mxu0 0.0
      %1276 = vmatprep.subr.mxu0 0.0
      %1277 = vmatpush1.xpose.msra.mxu0 0.0
      %1278 = vmatprep.subr.mxu0 0.0
      %1279 = vmatpush1.xpose.msra.mxu0 0.0
      %1280 = vmatprep.subr.mxu0 0.0
      %1281 = vmatpush1.xpose.msra.mxu0 0.0
      %1282 = vmatprep.subr.mxu0 0.0
      %1283 = vmatpush1.xpose.msra.mxu0 0.0
      %1284 = vmatprep.subr.mxu0 0.0
      %1285 = vmatpush1.xpose.msra.mxu0 0.0
      %1286 = vmatprep.subr.mxu0 0.0
      %1287 = vmatpush1.xpose.msra.mxu0 0.0
      %1288 = vmatprep.subr.mxu0 0.0
      %1289 = vmatpush1.xpose.msra.mxu0 0.0
      %1290 = vmatprep.subr.mxu0 0.0
      %1291 = vmatpush1.xpose.msra.mxu0 0.0
      %1292 = vmatprep.subr.mxu0 0.0
      %1293 = vmatpush1.xpose.msra.mxu0 0.0
      %1294 = vmatprep.subr.mxu0 0.0
      %1295 = vmatpush1.xpose.msra.mxu0 0.0
      %1296 = vmatprep.subr.mxu0 0.0
      %1297 = vmatpush1.xpose.msra.mxu0 0.0
      %1298 = vmatprep.subr.mxu0 0.0
      %1299 = vmatpush1.xpose.msra.mxu0 0.0
      %1300 = vmatprep.subr.mxu0 0.0
      %1301 = vmatpush1.xpose.msra.mxu0 0.0
      %1302 = vmatprep.subr.mxu0 0.0
      %1303 = vmatpush1.xpose.msra.mxu0 0.0
      %1304 = vmatprep.subr.mxu0 0.0
      %1305 = vmatpush1.xpose.msra.mxu0 0.0
      %1306 = vmatprep.subr.mxu0 0.0
      %1307 = vmatpush1.xpose.msra.mxu0 0.0
      %1308 = vmatprep.subr.mxu0 0.0
      %1309 = vmatpush1.xpose.msra.mxu0 0.0
      %1310 = vmatprep.subr.mxu0 0.0
      %1311 = vmatpush1.xpose.msra.mxu0 0.0
      %1312 = vmatprep.subr.mxu0 0.0
      %1313 = vmatpush1.xpose.msra.mxu0 0.0
      %1314 = vmatprep.subr.mxu0 0.0
      %1315 = vmatpush1.xpose.msra.mxu0 0.0
      %1316 = vmatprep.mubr.f32.mxu0 0.0
      %1317 = vmatmul.mubr.f32.gmra.mrb[0].mxu0 %v1248
      %v1318 = vpop.f32.mrb[0].mxu0
      %v1319 = vadd.f32 0.0, %v1318
      %v1320 = vpop.f32.mrb[0].mxu0
      %1321 = vdwg.mxu0
      %v1322 = vmul.f32 %v1319, 0.5
      %v1323 = vadd.f32 %v1322, %v485
      %v1324 = vsel %vm488, %v1323, -inf
      %1325 = vmax.xlane.f32.xlu0 %v1324
      %v1326 = vpop.xlane.xlu0 %1325
      %v1327 = vsub.f32 %v1323, %v1326
      %v1328 = vmul.f32 %v1327, 1.442695
      %v1329 = vpow.pop %v1328
      %v1330 = vsel %vm488, %v1329, 0.0
      %1331 = vadd.xlane.f32.xlu0 %v1330
      %v1332 = vpop.xlane.xlu0 %1331
      %v1333 = vrcp.pop %v1332
      %v1334 = vmul.f32 %v1329, %v1333
      %1335 = vrot.lane.b32.xlu0 %v398, 44
      %v1336 = vpop.permute.xlu0 %1335
      %v1339 = vsel %vm488, %v1334, 0
      %1341 = vmatprep.subr.mxu0 0.0
      %1342 = vmatpush1.msra.mxu0 %v1336
      %1343 = vmatprep.subr.mxu0 0.0
      %1344 = vmatpush1.msra.mxu0 0.0
      %1345 = vmatprep.subr.mxu0 0.0
      %1346 = vmatpush1.msra.mxu0 0.0
      %1347 = vmatprep.subr.mxu0 0.0
      %1348 = vmatpush1.msra.mxu0 0.0
      %1349 = vmatprep.subr.mxu0 0.0
      %1350 = vmatpush1.msra.mxu0 0.0
      %1351 = vmatprep.subr.mxu0 0.0
      %1352 = vmatpush1.msra.mxu0 0.0
      %1353 = vmatprep.subr.mxu0 0.0
      %1354 = vmatpush1.msra.mxu0 0.0
      %1355 = vmatprep.subr.mxu0 0.0
      %1356 = vmatpush1.msra.mxu0 0.0
      %1357 = vmatprep.subr.mxu0 0.0
      %1358 = vmatpush1.msra.mxu0 0.0
      %1359 = vmatprep.subr.mxu0 0.0
      %1360 = vmatpush1.msra.mxu0 0.0
      %1361 = vmatprep.subr.mxu0 0.0
      %1362 = vmatpush1.msra.mxu0 0.0
      %1363 = vmatprep.subr.mxu0 0.0
      %1364 = vmatpush1.msra.mxu0 0.0
      %1365 = vmatprep.subr.mxu0 0.0
      %1366 = vmatpush1.msra.mxu0 0.0
      %1367 = vmatprep.subr.mxu0 0.0
      %1368 = vmatpush1.msra.mxu0 0.0
      %1369 = vmatprep.subr.mxu0 0.0
      %1370 = vmatpush1.msra.mxu0 0.0
      %1371 = vmatprep.subr.mxu0 0.0
      %1372 = vmatpush1.msra.mxu0 0.0
      %1373 = vmatprep.subr.mxu0 0.0
      %1374 = vmatpush1.msra.mxu0 0.0
      %1375 = vmatprep.subr.mxu0 0.0
      %1376 = vmatpush1.msra.mxu0 0.0
      %1377 = vmatprep.subr.mxu0 0.0
      %1378 = vmatpush1.msra.mxu0 0.0
      %1379 = vmatprep.subr.mxu0 0.0
      %1380 = vmatpush1.msra.mxu0 0.0
      %1381 = vmatprep.subr.mxu0 0.0
      %1382 = vmatpush1.msra.mxu0 0.0
      %1383 = vmatprep.subr.mxu0 0.0
      %1384 = vmatpush1.msra.mxu0 0.0
      %1385 = vmatprep.subr.mxu0 0.0
      %1386 = vmatpush1.msra.mxu0 0.0
      %1387 = vmatprep.subr.mxu0 0.0
      %1388 = vmatpush1.msra.mxu0 0.0
      %1389 = vmatprep.subr.mxu0 0.0
      %1390 = vmatpush1.msra.mxu0 0.0
      %1391 = vmatprep.subr.mxu0 0.0
      %1392 = vmatpush1.msra.mxu0 0.0
      %1393 = vmatprep.subr.mxu0 0.0
      %1394 = vmatpush1.msra.mxu0 0.0
      %1395 = vmatprep.subr.mxu0 0.0
      %1396 = vmatpush1.msra.mxu0 0.0
      %1397 = vmatprep.subr.mxu0 0.0
      %1398 = vmatpush1.msra.mxu0 0.0
      %1399 = vmatprep.subr.mxu0 0.0
      %1400 = vmatpush1.msra.mxu0 0.0
      %1401 = vmatprep.subr.mxu0 0.0
      %1402 = vmatpush1.msra.mxu0 0.0
      %1403 = vmatprep.subr.mxu0 0.0
      %1404 = vmatpush1.msra.mxu0 0.0
      %1405 = vmatprep.mubr.f32.mxu0 0.0
      %1406 = vmatmul.mubr.f32.gmra.mrb[0].mxu0 %v1339
      %v1407 = vpop.f32.mrb[0].mxu0
      %v1408 = vadd.f32 0.0, %v1407
      %v1409 = vpop.f32.mrb[0].mxu0
      %1410 = vdwg.mxu0
      %1411 = vrot.lane.b32.xlu0 %v398, 104
      %v1412 = vpop.permute.xlu0 %1411
      %1413 = vrot.lane.b32.xlu0 %v398, 72
      %v1414 = vpop.permute.xlu0 %1413
      %v1415 = vsel %vm405, %v1412, 0
      %v1417 = vsel %vm405, %v1414, 0
      %1419 = vmatprep.subr.mxu0 0.0
      %1420 = vmatpush1.xpose.msra.mxu0 %v1417
      %1421 = vmatprep.subr.mxu0 0.0
      %1422 = vmatpush1.xpose.msra.mxu0 0.0
      %1423 = vmatprep.subr.mxu0 0.0
      %1424 = vmatpush1.xpose.msra.mxu0 0.0
      %1425 = vmatprep.subr.mxu0 0.0
      %1426 = vmatpush1.xpose.msra.mxu0 0.0
      %1427 = vmatprep.subr.mxu0 0.0
      %1428 = vmatpush1.xpose.msra.mxu0 0.0
      %1429 = vmatprep.subr.mxu0 0.0
      %1430 = vmatpush1.xpose.msra.mxu0 0.0
      %1431 = vmatprep.subr.mxu0 0.0
      %1432 = vmatpush1.xpose.msra.mxu0 0.0
      %1433 = vmatprep.subr.mxu0 0.0
      %1434 = vmatpush1.xpose.msra.mxu0 0.0
      %1435 = vmatprep.subr.mxu0 0.0
      %1436 = vmatpush1.xpose.msra.mxu0 0.0
      %1437 = vmatprep.subr.mxu0 0.0
      %1438 = vmatpush1.xpose.msra.mxu0 0.0
      %1439 = vmatprep.subr.mxu0 0.0
      %1440 = vmatpush1.xpose.msra.mxu0 0.0
      %1441 = vmatprep.subr.mxu0 0.0
      %1442 = vmatpush1.xpose.msra.mxu0 0.0
      %1443 = vmatprep.subr.mxu0 0.0
      %1444 = vmatpush1.xpose.msra.mxu0 0.0
      %1445 = vmatprep.subr.mxu0 0.0
      %1446 = vmatpush1.xpose.msra.mxu0 0.0
      %1447 = vmatprep.subr.mxu0 0.0
      %1448 = vmatpush1.xpose.msra.mxu0 0.0
      %1449 = vmatprep.subr.mxu0 0.0
      %1450 = vmatpush1.xpose.msra.mxu0 0.0
      %1451 = vmatprep.subr.mxu0 0.0
      %1452 = vmatpush1.xpose.msra.mxu0 0.0
      %1453 = vmatprep.subr.mxu0 0.0
      %1454 = vmatpush1.xpose.msra.mxu0 0.0
      %1455 = vmatprep.subr.mxu0 0.0
      %1456 = vmatpush1.xpose.msra.mxu0 0.0
      %1457 = vmatprep.subr.mxu0 0.0
      %1458 = vmatpush1.xpose.msra.mxu0 0.0
      %1459 = vmatprep.subr.mxu0 0.0
      %1460 = vmatpush1.xpose.msra.mxu0 0.0
      %1461 = vmatprep.subr.mxu0 0.0
      %1462 = vmatpush1.xpose.msra.mxu0 0.0
      %1463 = vmatprep.subr.mxu0 0.0
      %1464 = vmatpush1.xpose.msra.mxu0 0.0
      %1465 = vmatprep.subr.mxu0 0.0
      %1466 = vmatpush1.xpose.msra.mxu0 0.0
      %1467 = vmatprep.subr.mxu0 0.0
      %1468 = vmatpush1.xpose.msra.mxu0 0.0
      %1469 = vmatprep.subr.mxu0 0.0
      %1470 = vmatpush1.xpose.msra.mxu0 0.0
      %1471 = vmatprep.subr.mxu0 0.0
      %1472 = vmatpush1.xpose.msra.mxu0 0.0
      %1473 = vmatprep.subr.mxu0 0.0
      %1474 = vmatpush1.xpose.msra.mxu0 0.0
      %1475 = vmatprep.subr.mxu0 0.0
      %1476 = vmatpush1.xpose.msra.mxu0 0.0
      %1477 = vmatprep.subr.mxu0 0.0
      %1478 = vmatpush1.xpose.msra.mxu0 0.0
      %1479 = vmatprep.subr.mxu0 0.0
      %1480 = vmatpush1.xpose.msra.mxu0 0.0
      %1481 = vmatprep.subr.mxu0 0.0
      %1482 = vmatpush1.xpose.msra.mxu0 0.0
      %1483 = vmatprep.mubr.f32.mxu0 0.0
      %1484 = vmatmul.mubr.f32.gmra.mrb[0].mxu0 %v1415
      %v1485 = vpop.f32.mrb[0].mxu0
      %v1486 = vadd.f32 0.0, %v1485
      %v1487 = vpop.f32.mrb[0].mxu0
      %1488 = vdwg.mxu0
      %v1489 = vmul.f32 %v1486, 0.5
      %v1490 = vadd.f32 %v1489, %v485
      %v1491 = vsel %vm488, %v1490, -inf
      %1492 = vmax.xlane.f32.xlu0 %v1491
      %v1493 = vpop.xlane.xlu0 %1492
      %v1494 = vsub.f32 %v1490, %v1493
      %v1495 = vmul.f32 %v1494, 1.442695
      %v1496 = vpow.pop %v1495
      %v1497 = vsel %vm488, %v1496, 0.0
      %1498 = vadd.xlane.f32.xlu0 %v1497
      %v1499 = vpop.xlane.xlu0 %1498
      %v1500 = vrcp.pop %v1499
      %v1501 = vmul.f32 %v1496, %v1500
      %1502 = vrot.lane.b32.xlu0 %v398, 40
      %v1503 = vpop.permute.xlu0 %1502
      %v1506 = vsel %vm488, %v1501, 0
      %1508 = vmatprep.subr.mxu0 0.0
      %1509 = vmatpush1.msra.mxu0 %v1503
      %1510 = vmatprep.subr.mxu0 0.0
      %1511 = vmatpush1.msra.mxu0 0.0
      %1512 = vmatprep.subr.mxu0 0.0
      %1513 = vmatpush1.msra.mxu0 0.0
      %1514 = vmatprep.subr.mxu0 0.0
      %1515 = vmatpush1.msra.mxu0 0.0
      %1516 = vmatprep.subr.mxu0 0.0
      %1517 = vmatpush1.msra.mxu0 0.0
      %1518 = vmatprep.subr.mxu0 0.0
      %1519 = vmatpush1.msra.mxu0 0.0
      %1520 = vmatprep.subr.mxu0 0.0
      %1521 = vmatpush1.msra.mxu0 0.0
      %1522 = vmatprep.subr.mxu0 0.0
      %1523 = vmatpush1.msra.mxu0 0.0
      %1524 = vmatprep.subr.mxu0 0.0
      %1525 = vmatpush1.msra.mxu0 0.0
      %1526 = vmatprep.subr.mxu0 0.0
      %1527 = vmatpush1.msra.mxu0 0.0
      %1528 = vmatprep.subr.mxu0 0.0
      %1529 = vmatpush1.msra.mxu0 0.0
      %1530 = vmatprep.subr.mxu0 0.0
      %1531 = vmatpush1.msra.mxu0 0.0
      %1532 = vmatprep.subr.mxu0 0.0
      %1533 = vmatpush1.msra.mxu0 0.0
      %1534 = vmatprep.subr.mxu0 0.0
      %1535 = vmatpush1.msra.mxu0 0.0
      %1536 = vmatprep.subr.mxu0 0.0
      %1537 = vmatpush1.msra.mxu0 0.0
      %1538 = vmatprep.subr.mxu0 0.0
      %1539 = vmatpush1.msra.mxu0 0.0
      %1540 = vmatprep.subr.mxu0 0.0
      %1541 = vmatpush1.msra.mxu0 0.0
      %1542 = vmatprep.subr.mxu0 0.0
      %1543 = vmatpush1.msra.mxu0 0.0
      %1544 = vmatprep.subr.mxu0 0.0
      %1545 = vmatpush1.msra.mxu0 0.0
      %1546 = vmatprep.subr.mxu0 0.0
      %1547 = vmatpush1.msra.mxu0 0.0
      %1548 = vmatprep.subr.mxu0 0.0
      %1549 = vmatpush1.msra.mxu0 0.0
      %1550 = vmatprep.subr.mxu0 0.0
      %1551 = vmatpush1.msra.mxu0 0.0
      %1552 = vmatprep.subr.mxu0 0.0
      %1553 = vmatpush1.msra.mxu0 0.0
      %1554 = vmatprep.subr.mxu0 0.0
      %1555 = vmatpush1.msra.mxu0 0.0
      %1556 = vmatprep.subr.mxu0 0.0
      %1557 = vmatpush1.msra.mxu0 0.0
      %1558 = vmatprep.subr.mxu0 0.0
      %1559 = vmatpush1.msra.mxu0 0.0
      %1560 = vmatprep.subr.mxu0 0.0
      %1561 = vmatpush1.msra.mxu0 0.0
      %1562 = vmatprep.subr.mxu0 0.0
      %1563 = vmatpush1.msra.mxu0 0.0
      %1564 = vmatprep.subr.mxu0 0.0
      %1565 = vmatpush1.msra.mxu0 0.0
      %1566 = vmatprep.subr.mxu0 0.0
      %1567 = vmatpush1.msra.mxu0 0.0
      %1568 = vmatprep.subr.mxu0 0.0
      %1569 = vmatpush1.msra.mxu0 0.0
      %1570 = vmatprep.subr.mxu0 0.0
      %1571 = vmatpush1.msra.mxu0 0.0
      %1572 = vmatprep.mubr.f32.mxu0 0.0
      %1573 = vmatmul.mubr.f32.gmra.mrb[0].mxu0 %v1506
      %v1574 = vpop.f32.mrb[0].mxu0
      %v1575 = vadd.f32 0.0, %v1574
      %v1576 = vpop.f32.mrb[0].mxu0
      %1577 = vdwg.mxu0
      %1578 = vrot.lane.b32.xlu0 %v398, 100
      %v1579 = vpop.permute.xlu0 %1578
      %1580 = vrot.lane.b32.xlu0 %v398, 68
      %v1581 = vpop.permute.xlu0 %1580
      %v1582 = vsel %vm405, %v1579, 0
      %v1584 = vsel %vm405, %v1581, 0
      %1586 = vmatprep.subr.mxu0 0.0
      %1587 = vmatpush1.xpose.msra.mxu0 %v1584
      %1588 = vmatprep.subr.mxu0 0.0
      %1589 = vmatpush1.xpose.msra.mxu0 0.0
      %1590 = vmatprep.subr.mxu0 0.0
      %1591 = vmatpush1.xpose.msra.mxu0 0.0
      %1592 = vmatprep.subr.mxu0 0.0
      %1593 = vmatpush1.xpose.msra.mxu0 0.0
      %1594 = vmatprep.subr.mxu0 0.0
      %1595 = vmatpush1.xpose.msra.mxu0 0.0
      %1596 = vmatprep.subr.mxu0 0.0
      %1597 = vmatpush1.xpose.msra.mxu0 0.0
      %1598 = vmatprep.subr.mxu0 0.0
      %1599 = vmatpush1.xpose.msra.mxu0 0.0
      %1600 = vmatprep.subr.mxu0 0.0
      %1601 = vmatpush1.xpose.msra.mxu0 0.0
      %1602 = vmatprep.subr.mxu0 0.0
      %1603 = vmatpush1.xpose.msra.mxu0 0.0
      %1604 = vmatprep.subr.mxu0 0.0
      %1605 = vmatpush1.xpose.msra.mxu0 0.0
      %1606 = vmatprep.subr.mxu0 0.0
      %1607 = vmatpush1.xpose.msra.mxu0 0.0
      %1608 = vmatprep.subr.mxu0 0.0
      %1609 = vmatpush1.xpose.msra.mxu0 0.0
      %1610 = vmatprep.subr.mxu0 0.0
      %1611 = vmatpush1.xpose.msra.mxu0 0.0
      %1612 = vmatprep.subr.mxu0 0.0
      %1613 = vmatpush1.xpose.msra.mxu0 0.0
      %1614 = vmatprep.subr.mxu0 0.0
      %1615 = vmatpush1.xpose.msra.mxu0 0.0
      %1616 = vmatprep.subr.mxu0 0.0
      %1617 = vmatpush1.xpose.msra.mxu0 0.0
      %1618 = vmatprep.subr.mxu0 0.0
      %1619 = vmatpush1.xpose.msra.mxu0 0.0
      %1620 = vmatprep.subr.mxu0 0.0
      %1621 = vmatpush1.xpose.msra.mxu0 0.0
      %1622 = vmatprep.subr.mxu0 0.0
      %1623 = vmatpush1.xpose.msra.mxu0 0.0
      %1624 = vmatprep.subr.mxu0 0.0
      %1625 = vmatpush1.xpose.msra.mxu0 0.0
      %1626 = vmatprep.subr.mxu0 0.0
      %1627 = vmatpush1.xpose.msra.mxu0 0.0
      %1628 = vmatprep.subr.mxu0 0.0
      %1629 = vmatpush1.xpose.msra.mxu0 0.0
      %1630 = vmatprep.subr.mxu0 0.0
      %1631 = vmatpush1.xpose.msra.mxu0 0.0
      %1632 = vmatprep.subr.mxu0 0.0
      %1633 = vmatpush1.xpose.msra.mxu0 0.0
      %1634 = vmatprep.subr.mxu0 0.0
      %1635 = vmatpush1.xpose.msra.mxu0 0.0
      %1636 = vmatprep.subr.mxu0 0.0
      %1637 = vmatpush1.xpose.msra.mxu0 0.0
      %1638 = vmatprep.subr.mxu0 0.0
      %1639 = vmatpush1.xpose.msra.mxu0 0.0
      %1640 = vmatprep.subr.mxu0 0.0
      %1641 = vmatpush1.xpose.msra.mxu0 0.0
      %1642 = vmatprep.subr.mxu0 0.0
      %1643 = vmatpush1.xpose.msra.mxu0 0.0
      %1644 = vmatprep.subr.mxu0 0.0
      %1645 = vmatpush1.xpose.msra.mxu0 0.0
      %1646 = vmatprep.subr.mxu0 0.0
      %1647 = vmatpush1.xpose.msra.mxu0 0.0
      %1648 = vmatprep.subr.mxu0 0.0
      %1649 = vmatpush1.xpose.msra.mxu0 0.0
      %1650 = vmatprep.mubr.f32.mxu0 0.0
      %1651 = vmatmul.mubr.f32.gmra.mrb[0].mxu0 %v1582
      %v1652 = vpop.f32.mrb[0].mxu0
      %v1653 = vadd.f32 0.0, %v1652
      %v1654 = vpop.f32.mrb[0].mxu0
      %1655 = vdwg.mxu0
      %v1656 = vmul.f32 %v1653, 0.5
      %v1657 = vadd.f32 %v1656, %v485
      %v1658 = vsel %vm488, %v1657, -inf
      %1659 = vmax.xlane.f32.xlu0 %v1658
      %v1660 = vpop.xlane.xlu0 %1659
      %v1661 = vsub.f32 %v1657, %v1660
      %v1662 = vmul.f32 %v1661, 1.442695
      %v1663 = vpow.pop %v1662
      %v1664 = vsel %vm488, %v1663, 0.0
      %1665 = vadd.xlane.f32.xlu0 %v1664
      %v1666 = vpop.xlane.xlu0 %1665
      %v1667 = vrcp.pop %v1666
      %v1668 = vmul.f32 %v1663, %v1667
      %1669 = vrot.lane.b32.xlu0 %v398, 36
      %v1670 = vpop.permute.xlu0 %1669
      %v1673 = vsel %vm488, %v1668, 0
      %1675 = vmatprep.subr.mxu0 0.0
      %1676 = vmatpush1.msra.mxu0 %v1670
      %1677 = vmatprep.subr.mxu0 0.0
      %1678 = vmatpush1.msra.mxu0 0.0
      %1679 = vmatprep.subr.mxu0 0.0
      %1680 = vmatpush1.msra.mxu0 0.0
      %1681 = vmatprep.subr.mxu0 0.0
      %1682 = vmatpush1.msra.mxu0 0.0
      %1683 = vmatprep.subr.mxu0 0.0
      %1684 = vmatpush1.msra.mxu0 0.0
      %1685 = vmatprep.subr.mxu0 0.0
      %1686 = vmatpush1.msra.mxu0 0.0
      %1687 = vmatprep.subr.mxu0 0.0
      %1688 = vmatpush1.msra.mxu0 0.0
      %1689 = vmatprep.subr.mxu0 0.0
      %1690 = vmatpush1.msra.mxu0 0.0
      %1691 = vmatprep.subr.mxu0 0.0
      %1692 = vmatpush1.msra.mxu0 0.0
      %1693 = vmatprep.subr.mxu0 0.0
      %1694 = vmatpush1.msra.mxu0 0.0
      %1695 = vmatprep.subr.mxu0 0.0
      %1696 = vmatpush1.msra.mxu0 0.0
      %1697 = vmatprep.subr.mxu0 0.0
      %1698 = vmatpush1.msra.mxu0 0.0
      %1699 = vmatprep.subr.mxu0 0.0
      %1700 = vmatpush1.msra.mxu0 0.0
      %1701 = vmatprep.subr.mxu0 0.0
      %1702 = vmatpush1.msra.mxu0 0.0
      %1703 = vmatprep.subr.mxu0 0.0
      %1704 = vmatpush1.msra.mxu0 0.0
      %1705 = vmatprep.subr.mxu0 0.0
      %1706 = vmatpush1.msra.mxu0 0.0
      %1707 = vmatprep.subr.mxu0 0.0
      %1708 = vmatpush1.msra.mxu0 0.0
      %1709 = vmatprep.subr.mxu0 0.0
      %1710 = vmatpush1.msra.mxu0 0.0
      %1711 = vmatprep.subr.mxu0 0.0
      %1712 = vmatpush1.msra.mxu0 0.0
      %1713 = vmatprep.subr.mxu0 0.0
      %1714 = vmatpush1.msra.mxu0 0.0
      %1715 = vmatprep.subr.mxu0 0.0
      %1716 = vmatpush1.msra.mxu0 0.0
      %1717 = vmatprep.subr.mxu0 0.0
      %1718 = vmatpush1.msra.mxu0 0.0
      %1719 = vmatprep.subr.mxu0 0.0
      %1720 = vmatpush1.msra.mxu0 0.0
      %1721 = vmatprep.subr.mxu0 0.0
      %1722 = vmatpush1.msra.mxu0 0.0
      %1723 = vmatprep.subr.mxu0 0.0
      %1724 = vmatpush1.msra.mxu0 0.0
      %1725 = vmatprep.subr.mxu0 0.0
      %1726 = vmatpush1.msra.mxu0 0.0
      %1727 = vmatprep.subr.mxu0 0.0
      %1728 = vmatpush1.msra.mxu0 0.0
      %1729 = vmatprep.subr.mxu0 0.0
      %1730 = vmatpush1.msra.mxu0 0.0
      %1731 = vmatprep.subr.mxu0 0.0
      %1732 = vmatpush1.msra.mxu0 0.0
      %1733 = vmatprep.subr.mxu0 0.0
      %1734 = vmatpush1.msra.mxu0 0.0
      %1735 = vmatprep.subr.mxu0 0.0
      %1736 = vmatpush1.msra.mxu0 0.0
      %1737 = vmatprep.subr.mxu0 0.0
      %1738 = vmatpush1.msra.mxu0 0.0
      %1739 = vmatprep.mubr.f32.mxu0 0.0
      %1740 = vmatmul.mubr.f32.gmra.mrb[0].mxu0 %v1673
      %v1741 = vpop.f32.mrb[0].mxu0
      %v1742 = vadd.f32 0.0, %v1741
      %v1743 = vpop.f32.mrb[0].mxu0
      %1744 = vdwg.mxu0
      %1746 = vrot.lane.b32.xlu0 %v740, 4
      %v1747 = vpop.permute.xlu0 %1746
      %1750 = vrot.lane.b32.xlu0 %v907, 8
      %v1751 = vpop.permute.xlu0 %1750
      %1754 = vrot.lane.b32.xlu0 %v1074, 12
      %v1755 = vpop.permute.xlu0 %1754
      %1758 = vrot.lane.b32.xlu0 %v1241, 16
      %v1759 = vpop.permute.xlu0 %1758
      %1762 = vrot.lane.b32.xlu0 %v1408, 20
      %v1763 = vpop.permute.xlu0 %1762
      %1766 = vrot.lane.b32.xlu0 %v1575, 24
      %v1767 = vpop.permute.xlu0 %1766
      %1770 = vrot.lane.b32.xlu0 %v1742, 28
      %v1771 = vpop.permute.xlu0 %1770
      %v1773 = vsel %vm405, %v573, %v1747
      %v1774 = vsel %vm488, %v1773, %v1751
      %vm1775 = vcmask 97280
      %v1776 = vsel %vm1775, %v1774, %v1755
      %vm1777 = vcmask 130048
      %v1778 = vsel %vm1777, %v1776, %v1759
      %vm1779 = vcmask 162816
      %v1780 = vsel %vm1779, %v1778, %v1763
      %vm1781 = vcmask 195584
      %v1782 = vsel %vm1781, %v1780, %v1767
      %vm1783 = vcmask 228352
      %v1784 = vsel %vm1783, %v1782, %v1771
      %v1785 = vld [vmem:[%s3] sm:$0xff]
      %v1786 = vld [vmem:[%s3 + $0x8] sm:$0xff]
      %v1787 = vld [vmem:[%s3 + $0x10] sm:$0xff]
      %v1788 = vld [vmem:[%s3 + $0x18] sm:$0xff]
      %v1789 = vld [vmem:[%s4] sm:$0x1]
      %v1791 = vlaneseq
      %v1792 = vshrl.u32 %v1791, 7
      %v1793 = vsub.s32 0, %v1792
      %v1794 = vrot.slane %v1789, %v1793
      %v1797 = vsel %vm327, %v1784, 0
      %1799 = vmatprep.subr.mxu0 0.0
      %1800 = vmatpush1.msra.mxu0 %v1785
      %1801 = vmatprep.subr.mxu0 0.0
      %1802 = vmatpush1.msra.mxu0 %v1786
      %1803 = vmatprep.subr.mxu0 0.0
      %1804 = vmatpush1.msra.mxu0 %v1787
      %1805 = vmatprep.subr.mxu0 0.0
      %1806 = vmatpush1.msra.mxu0 %v1788
      %1807 = vmatprep.subr.mxu0 0.0
      %1808 = vmatpush1.msra.mxu0 0.0
      %1809 = vmatprep.subr.mxu0 0.0
      %1810 = vmatpush1.msra.mxu0 0.0
      %1811 = vmatprep.subr.mxu0 0.0
      %1812 = vmatpush1.msra.mxu0 0.0
      %1813 = vmatprep.subr.mxu0 0.0
      %1814 = vmatpush1.msra.mxu0 0.0
      %1815 = vmatprep.subr.mxu0 0.0
      %1816 = vmatpush1.msra.mxu0 0.0
      %1817 = vmatprep.subr.mxu0 0.0
      %1818 = vmatpush1.msra.mxu0 0.0
      %1819 = vmatprep.subr.mxu0 0.0
      %1820 = vmatpush1.msra.mxu0 0.0
      %1821 = vmatprep.subr.mxu0 0.0
      %1822 = vmatpush1.msra.mxu0 0.0
      %1823 = vmatprep.subr.mxu0 0.0
      %1824 = vmatpush1.msra.mxu0 0.0
      %1825 = vmatprep.subr.mxu0 0.0
      %1826 = vmatpush1.msra.mxu0 0.0
      %1827 = vmatprep.subr.mxu0 0.0
      %1828 = vmatpush1.msra.mxu0 0.0
      %1829 = vmatprep.subr.mxu0 0.0
      %1830 = vmatpush1.msra.mxu0 0.0
      %1831 = vmatprep.subr.mxu0 0.0
      %1832 = vmatpush1.msra.mxu0 0.0
      %1833 = vmatprep.subr.mxu0 0.0
      %1834 = vmatpush1.msra.mxu0 0.0
      %1835 = vmatprep.subr.mxu0 0.0
      %1836 = vmatpush1.msra.mxu0 0.0
      %1837 = vmatprep.subr.mxu0 0.0
      %1838 = vmatpush1.msra.mxu0 0.0
      %1839 = vmatprep.subr.mxu0 0.0
      %1840 = vmatpush1.msra.mxu0 0.0
      %1841 = vmatprep.subr.mxu0 0.0
      %1842 = vmatpush1.msra.mxu0 0.0
      %1843 = vmatprep.subr.mxu0 0.0
      %1844 = vmatpush1.msra.mxu0 0.0
      %1845 = vmatprep.subr.mxu0 0.0
      %1846 = vmatpush1.msra.mxu0 0.0
      %1847 = vmatprep.subr.mxu0 0.0
      %1848 = vmatpush1.msra.mxu0 0.0
      %1849 = vmatprep.subr.mxu0 0.0
      %1850 = vmatpush1.msra.mxu0 0.0
      %1851 = vmatprep.subr.mxu0 0.0
      %1852 = vmatpush1.msra.mxu0 0.0
      %1853 = vmatprep.subr.mxu0 0.0
      %1854 = vmatpush1.msra.mxu0 0.0
      %1855 = vmatprep.subr.mxu0 0.0
      %1856 = vmatpush1.msra.mxu0 0.0
      %1857 = vmatprep.subr.mxu0 0.0
      %1858 = vmatpush1.msra.mxu0 0.0
      %1859 = vmatprep.subr.mxu0 0.0
      %1860 = vmatpush1.msra.mxu0 0.0
      %1861 = vmatprep.subr.mxu0 0.0
      %1862 = vmatpush1.msra.mxu0 0.0
      %1863 = vmatprep.mubr.f32.mxu0 0.0
      %1864 = vmatmul.mubr.f32.gmra.mrb[0].mxu0 %v1797
      %v1865 = vpop.f32.mrb[0].mxu0
      %v1866 = vadd.f32 %v1794, %v1865
      %v1867 = vpop.f32.mrb[0].mxu0
      %1868 = vdwg.mxu0
      %v1869 = vadd.f32 %v1866, %v315
      %v1870 = vsel %vm327, %v1869, 0.0
      %1871 = vadd.xlane.f32.xlu0 %v1870
      %v1872 = vpop.xlane.xlu0 %1871
      %v1873 = vrcp.pop 32.0
      %v1874 = vmul.f32 %v1872, %v1873
      %v1875 = vsub.f32 %v1869, %v1874
      %v1876 = vmul.f32 %v1875, %v1875
      %v1877 = vsel %vm327, %v1876, 0.0
      %1878 = vadd.xlane.f32.xlu0 %v1877
      %v1879 = vpop.xlane.xlu0 %1878
      %v1880 = vmul.f32 %v1879, %v1873
      %v1881 = vadd.f32 %v1880, 1e-05
      %v1882 = vrsqrt.pop %v1881
      %v1883 = vmul.f32 %v1875, %v1882
      %v1884 = vld [vmem:[%s5] sm:$0x1]
      %v1886 = vlaneseq
      %v1887 = vshrl.u32 %v1886, 7
      %v1888 = vsub.s32 0, %v1887
      %v1889 = vrot.slane %v1884, %v1888
      %v1891 = vmul.f32 %v1883, %v1889
      %v1892 = vld [vmem:[%s6] sm:$0x1]
      %v1894 = vlaneseq
      %v1895 = vshrl.u32 %v1894, 7
      %v1896 = vsub.s32 0, %v1895
      %v1897 = vrot.slane %v1892, %v1896
      %v1899 = vadd.f32 %v1891, %v1897
      %1900 = vst.msk [vmem:[%s314] sm:$0xff] %vm327, %v1899
      %p1901 = scmp.lt.s32.totalorder %s19, 1
      %s1902 = scalar_select %p1901, %s19, 1
      %s1903 = smul.addr %s1902, 8
      %s1904 = scalar_lea.vmem %s8, %s1903
      // Predicated region
      $region53: #{_lambda_.6} parent=51 // pred_check
        %p1905 = pneg %p215
      $region54: #{_lambda_.6} parent=51 // pred_check_branch
        %1907 = sbr.rel (%p1905) target = $region56
      $region55: #{_lambda_.6} parent=51 // pred_region
        _
      $region56: #{_lambda_.6} parent=51 // pred_fallthru
        _
    $region52: #{_lambda_.6} parent=5 // pred_fallthru
      _
    %p1908 = scmp.le.s32.totalorder 2, %s14
    // Predicated region
    $region57: #{_lambda_.6} parent=5 // pred_check
      %p1909 = pneg %p1908
    $region58: #{_lambda_.6} parent=5 // pred_check_branch
      %1911 = sbr.rel (%p1909) target = $region60
    $region59: #{_lambda_.6} parent=5 // pred_region
      %s1912 = ssub.s32 %s14, 2
      // Predicated region
      $region61: #{_lambda_.6} parent=59 // pred_check
        %p1913 = pneg %p221
      $region62: #{_lambda_.6} parent=59 // pred_check_branch
        %1915 = sbr.rel (%p1913) target = $region64
      $region63: #{_lambda_.6} parent=59 // pred_region
        %p1916 = scmp.lt.s32.totalorder %s20, 1
        %s1917 = scalar_select %p1916, %s20, 1
        %s1918 = smul.addr %s1917, 8
        %s1919 = scalar_lea.vmem %s8, %s1918
      $region64: #{_lambda_.6} parent=59 // pred_fallthru
        _
    $region60: #{_lambda_.6} parent=5 // pred_fallthru
      _
  $region6: #{_lambda_.6} parent=0 // loop_footer
    %s18 = sadd.s32 1, %s14
  $region7: #{_lambda_.6} parent=0 // loop_footer_branch
    %13 = sbr.rel target = $region3
  $region8: #{_lambda_.6} parent=0 // loop_exit
    _

</llo_original>
